<compile_context>
chip_gen: v7x
topology: tpu7x:2x2x1
jax: 0.10.0
libtpu: 0.0.40
codegen_flags: <defaults>
</compile_context>

<pallas_src>
import jax
import jax.numpy as jnp
from jax.experimental import pallas as pl
from jax.experimental.pallas import tpu as pltpu


_TAPS = tuple((dy, dx) for dy in range(3) for dx in range(3))


def make_residual_block_kernel(TH, Wout, Cin, Cout, stride, Hout, use_proj):
    nrows = (TH + 1) * stride + 3        # padded-input rows needed per tile

    def kernel(*refs):
        if use_proj:
            (x_ref, w1_ref, s1_ref, b1_ref, w2_ref, s2_ref, b2_ref,
             wsc_ref, ssc_ref, bsc_ref, out_ref, h1p_ref) = refs
        else:
            (x_ref, w1_ref, s1_ref, b1_ref, w2_ref, s2_ref, b2_ref,
             out_ref, h1p_ref) = refs

        r = pl.program_id(1)
        row0 = r * (TH * stride)
        if (TH * stride) % 8 == 0:
            row0 = pl.multiple_of(row0, 8)

        # Padded-input rows covering this tile's TH output rows + conv2's 1-row halo.
        xt = x_ref[pl.ds(row0, nrows), :, :]               # (nrows, W+2, Cin) bf16

        # ---- conv1: 3x3 / stride -> 9 shifted bf16 matmuls, f32 accumulator ----
        acc1 = jnp.zeros(((TH + 2) * Wout, Cout), jnp.float32)
        center = None
        for t, (dy, dx) in enumerate(_TAPS):
            patch = jax.lax.slice(
                xt,
                (dy, dx, 0),
                (dy + (TH + 1) * stride + 1, dx + (Wout - 1) * stride + 1, Cin),
                (stride, stride, 1))                       # (TH+2, Wout, Cin)
            if (dy, dx) == (1, 1):
                center = patch                             # reused by the shortcut
            acc1 = acc1 + jnp.dot(patch.reshape((TH + 2) * Wout, Cin), w1_ref[t],
                                  preferred_element_type=jnp.float32)

        # ---- BN1 (folded) + ReLU in f32; zero conv2's row halo outside the image ----
        h1 = jnp.maximum(acc1 * s1_ref[...] + b1_ref[...], 0.0)
        h1 = h1.reshape(TH + 2, Wout, Cout)
        hrow = r * TH - 1 + jax.lax.broadcasted_iota(jnp.int32, (TH + 2, Wout, Cout), 0)
        h1 = jnp.where((hrow >= 0) & (hrow < Hout), h1, 0.0).astype(jnp.bfloat16)

        # ---- conv2 column halo: zero only the 2 halo columns, write interior once ----
        h1p_ref[:, 0:1, :] = jnp.zeros((TH + 2, 1, Cout), jnp.bfloat16)
        h1p_ref[:, Wout + 1:Wout + 2, :] = jnp.zeros((TH + 2, 1, Cout), jnp.bfloat16)
        h1p_ref[:, 1:Wout + 1, :] = h1
        h1p = h1p_ref[...]                                 # (TH+2, Wout+2, Cout) bf16

        # ---- conv2: 3x3 / stride 1 -> 9 bf16 matmuls, f32 accumulator ----
        acc2 = jnp.zeros((TH * Wout, Cout), jnp.float32)
        for t, (dy, dx) in enumerate(_TAPS):
            q = h1p[dy:dy + TH, dx:dx + Wout, :]
            acc2 = acc2 + jnp.dot(q.reshape(TH * Wout, Cout), w2_ref[t],
                                  preferred_element_type=jnp.float32)
        left = acc2 * s2_ref[...] + b2_ref[...]            # BN2 (folded), f32

        # ---- shortcut: center conv1 tap rows 1..TH are x at the output positions ----
        xs = center[1:TH + 1, :, :].reshape(TH * Wout, Cin)
        if use_proj:
            sc = (jnp.dot(xs, wsc_ref[...], preferred_element_type=jnp.float32)
                  * ssc_ref[...] + bsc_ref[...])
        else:
            sc = xs.astype(jnp.float32)

        out = jnp.maximum(left + sc, 0.0)                  # residual add + final ReLU
        out_ref[...] = out.reshape(TH, Wout, Cout)

    return kernel


def residual_block_forward(x_nchw, params, stride):
    N, Cin, H, W = x_nchw.shape
    Cout = params["w1"].shape[-1]
    use_proj = "w_sc" in params

    Hout = (H - 1) // stride + 1
    Wout = (W - 1) // stride + 1
    TH = 8 if (Hout % 8 == 0 and Hout > 8) else Hout       # output rows per tile
    n_row_tiles = Hout // TH

    # NCHW -> NHWC (bf16). Pad H by stride+1 and W by 1 so every tile's input
    # window (conv1 taps for its TH rows + conv2's 1-row halo) is in bounds.
    x_nhwc = jnp.transpose(x_nchw, (0, 2, 3, 1)).astype(jnp.bfloat16)
    xpad = jnp.pad(x_nhwc, ((0, 0), (stride + 1, stride + 1), (1, 1), (0, 0)))
    Hpad, Wpad = H + 2 * (stride + 1), W + 2

    w1 = params["w1"].astype(jnp.bfloat16).reshape(9, Cin, Cout)   # HWIO -> (tap, Cin, Cout)
    w2 = params["w2"].astype(jnp.bfloat16).reshape(9, Cout, Cout)

    def full_spec(shape):
        return pl.BlockSpec(shape, lambda b, r: (0,) * len(shape))

    in_specs = [
        pl.BlockSpec((None, Hpad, Wpad, Cin), lambda b, r: (b, 0, 0, 0)),
        full_spec((9, Cin, Cout)), full_spec((1, Cout)), full_spec((1, Cout)),
        full_spec((9, Cout, Cout)), full_spec((1, Cout)), full_spec((1, Cout)),
    ]
    inputs = [xpad, w1, params["s1"], params["b1"], w2, params["s2"], params["b2"]]
    if use_proj:
        in_specs += [full_spec((Cin, Cout)), full_spec((1, Cout)), full_spec((1, Cout))]
        inputs += [params["w_sc"].astype(jnp.bfloat16), params["s_sc"], params["b_sc"]]

    kernel = make_residual_block_kernel(TH, Wout, Cin, Cout, stride, Hout, use_proj)

    # VMEM budget: double-buffered in/out blocks + weights + scratch + headroom,
    # kept well under v7x's 64 MiB physical VMEM.
    block_bytes = (2 * Hpad * Wpad * Cin * 2
                   + 2 * TH * Wout * Cout * 4
                   + (9 * Cin + 9 * Cout + Cin) * Cout * 2 + 8 * Cout * 4
                   + (TH + 2) * (Wout + 2) * Cout * 2
                   + 16 * (TH + 2) * Wout * max(Cin, Cout) * 4)
    vmem_limit = int(min(max(2 * block_bytes, 8 << 20), 32 << 20))

    flops = 2 * N * Hout * Wout * Cout * (9 * Cin + 9 * Cout + (Cin if use_proj else 0))
    bytes_accessed = int(xpad.size * 2 + (w1.size + w2.size) * 2
                         + N * Hout * Wout * Cout * 4)

    out_nhwc = pl.pallas_call(
        kernel,
        out_shape=jax.ShapeDtypeStruct((N, Hout, Wout, Cout), jnp.float32),
        grid=(N, n_row_tiles),
        in_specs=in_specs,
        out_specs=pl.BlockSpec((None, TH, Wout, Cout), lambda b, r: (b, r, 0, 0)),
        scratch_shapes=[pltpu.VMEM((TH + 2, Wout + 2, Cout), jnp.bfloat16)],
        compiler_params=pltpu.CompilerParams(
            dimension_semantics=("parallel", "parallel"),
            vmem_limit_bytes=vmem_limit),
        cost_estimate=pl.CostEstimate(flops=flops, transcendentals=0,
                                      bytes_accessed=bytes_accessed),
    )(*inputs)

    return jnp.transpose(out_nhwc, (0, 3, 1, 2)).astype(jnp.float32)   # back to NCHW


def init_params(key, cin, cout, stride):
    eps = 1e-5
    ks = jax.random.split(key, 16)

    def bn_fold(kg, kb, km, kv, c):
        gamma = 1.0 + 0.1 * jax.random.normal(kg, (c,), jnp.float32)
        beta = 0.1 * jax.random.normal(kb, (c,), jnp.float32)
        mean = 0.1 * jax.random.normal(km, (c,), jnp.float32)
        var = jnp.abs(jax.random.normal(kv, (c,), jnp.float32)) + 0.5
        scale = gamma / jnp.sqrt(var + eps)
        bias = beta - mean * scale
        return scale.reshape(1, c), bias.reshape(1, c)

    p = {}
    p["w1"] = 0.1 * jax.random.normal(ks[0], (3, 3, cin, cout), jnp.float32)   # HWIO
    p["s1"], p["b1"] = bn_fold(ks[1], ks[2], ks[3], ks[4], cout)
    p["w2"] = 0.1 * jax.random.normal(ks[5], (3, 3, cout, cout), jnp.float32)
    p["s2"], p["b2"] = bn_fold(ks[6], ks[7], ks[8], ks[9], cout)
    if stride != 1 or cin != cout:
        p["w_sc"] = 0.1 * jax.random.normal(ks[10], (cin, cout), jnp.float32)  # 1x1 conv
        p["s_sc"], p["b_sc"] = bn_fold(ks[11], ks[12], ks[13], ks[14], cout)
    return p


def ref_forward(x_nchw, params, stride):
    """Pure-JAX reference (bf16 conv inputs / f32 accumulation, matching the kernel)."""
    dn = ("NHWC", "HWIO", "NHWC")
    x = jnp.transpose(x_nchw, (0, 2, 3, 1)).astype(jnp.bfloat16)
    cin, cout = params["w1"].shape[2], params["w1"].shape[3]
    w1 = params["w1"].astype(jnp.bfloat16)
    w2 = params["w2"].astype(jnp.bfloat16)

    y = jax.lax.conv_general_dilated(x, w1, (stride, stride), ((1, 1), (1, 1)),
                                     dimension_numbers=dn,
                                     preferred_element_type=jnp.float32)
    y = y * params["s1"].reshape(1, 1, 1, -1) + params["b1"].reshape(1, 1, 1, -1)
    y = jnp.maximum(y, 0.0).astype(jnp.bfloat16)
    y = jax.lax.conv_general_dilated(y, w2, (1, 1), ((1, 1), (1, 1)),
                                     dimension_numbers=dn,
                                     preferred_element_type=jnp.float32)
    y = y * params["s2"].reshape(1, 1, 1, -1) + params["b2"].reshape(1, 1, 1, -1)

    if "w_sc" in params:
        w_sc = params["w_sc"].astype(jnp.bfloat16).reshape(1, 1, cin, cout)
        s = jax.lax.conv_general_dilated(x, w_sc, (stride, stride), ((0, 0), (0, 0)),
                                         dimension_numbers=dn,
                                         preferred_element_type=jnp.float32)
        s = s * params["s_sc"].reshape(1, 1, 1, -1) + params["b_sc"].reshape(1, 1, 1, -1)
    else:
        s = x[:, ::stride, ::stride, :].astype(jnp.float32)

    out = jnp.maximum(y + s, 0.0)
    return jnp.transpose(out, (0, 3, 1, 2))


if __name__ == "__main__":
    key = jax.random.PRNGKey(0)
    kx, kp = jax.random.split(key)

    N, Cin, H, W = 2, 4, 16, 16
    Cout, stride = 8, 1                  # Cin != Cout -> projection shortcut exercised

    x = jax.random.normal(kx, (N, Cin, H, W), jnp.float32)
    params = init_params(kp, Cin, Cout, stride)

    out = jax.block_until_ready(residual_block_forward(x, params, stride))
    ref = jax.block_until_ready(ref_forward(x, params, stride))

    assert out.shape == ref.shape, (out.shape, ref.shape)
    max_err = float(jnp.max(jnp.abs(out - ref)))
    assert jnp.allclose(out, ref, atol=2e-2, rtol=2e-2), max_err

    print("KERNEL_OK")
</pallas_src>

<mosaic_0001>
module attributes {stable_mosaic.version = 11 : i64} {
  func.func @kernel(%arg0: i32, %arg1: i32, %arg2: memref<1x20x18x4xbf16, #tpu.memory_space<vmem>>, %arg3: memref<9x4x8xbf16, #tpu.memory_space<vmem>>, %arg4: memref<1x8xf32, #tpu.memory_space<vmem>>, %arg5: memref<1x8xf32, #tpu.memory_space<vmem>>, %arg6: memref<9x8x8xbf16, #tpu.memory_space<vmem>>, %arg7: memref<1x8xf32, #tpu.memory_space<vmem>>, %arg8: memref<1x8xf32, #tpu.memory_space<vmem>>, %arg9: memref<4x8xbf16, #tpu.memory_space<vmem>>, %arg10: memref<1x8xf32, #tpu.memory_space<vmem>>, %arg11: memref<1x8xf32, #tpu.memory_space<vmem>>, %arg12: memref<1x8x16x8xf32, #tpu.memory_space<vmem>>, %arg13: memref<10x18x8xbf16, #tpu.memory_space<vmem>>) attributes {dimension_semantics = [#tpu.dimension_semantics<parallel>, #tpu.dimension_semantics<parallel>], iteration_bounds = array<i64: 2, 2>, scalar_prefetch = 0 : i64, scratch_operands = 1 : i64, tpu.core_type = #tpu.core_type<tc>, window_params = [{transform_indices = @transform_0, window_bounds = array<i64: 1, 20, 18, 4>}, {pipeline_mode = #tpu.pipeline_mode<synchronous>, transform_indices = @transform_1, window_bounds = array<i64: 9, 4, 8>}, {pipeline_mode = #tpu.pipeline_mode<synchronous>, transform_indices = @transform_2, window_bounds = array<i64: 1, 8>}, {pipeline_mode = #tpu.pipeline_mode<synchronous>, transform_indices = @transform_3, window_bounds = array<i64: 1, 8>}, {pipeline_mode = #tpu.pipeline_mode<synchronous>, transform_indices = @transform_4, window_bounds = array<i64: 9, 8, 8>}, {pipeline_mode = #tpu.pipeline_mode<synchronous>, transform_indices = @transform_5, window_bounds = array<i64: 1, 8>}, {pipeline_mode = #tpu.pipeline_mode<synchronous>, transform_indices = @transform_6, window_bounds = array<i64: 1, 8>}, {pipeline_mode = #tpu.pipeline_mode<synchronous>, transform_indices = @transform_7, window_bounds = array<i64: 4, 8>}, {pipeline_mode = #tpu.pipeline_mode<synchronous>, transform_indices = @transform_8, window_bounds = array<i64: 1, 8>}, {pipeline_mode = #tpu.pipeline_mode<synchronous>, transform_indices = @transform_9, window_bounds = array<i64: 1, 8>}, {transform_indices = @transform_10, window_bounds = array<i64: 1, 8, 16, 8>}]} {
    %c8_i32 = arith.constant 8 : i32
    %0 = arith.muli %arg1, %c8_i32 : i32
    %1 = tpu.assume_multiple %0, 8 : i32
    %c0 = arith.constant 0 : index
    %2 = arith.index_cast %1 : i32 to index
    %c0_0 = arith.constant 0 : index
    %c0_1 = arith.constant 0 : index
    %3 = vector.load %arg2[%c0, %2, %c0_0, %c0_1] : memref<1x20x18x4xbf16, #tpu.memory_space<vmem>>, vector<1x12x18x4xbf16>
    %4 = vector.shape_cast %3 : vector<1x12x18x4xbf16> to vector<12x18x4xbf16>
    %cst = arith.constant 0.000000e+00 : f32
    %5 = vector.broadcast %cst : f32 to vector<160x8xf32>
    %6 = vector.extract_strided_slice %4 {offsets = [0, 0, 0], sizes = [10, 16, 4], strides = [1, 1, 1]} : vector<12x18x4xbf16> to vector<10x16x4xbf16>
    %7 = vector.shape_cast %6 : vector<10x16x4xbf16> to vector<160x4xbf16>
    %c0_2 = arith.constant 0 : index
    %c0_3 = arith.constant 0 : index
    %c0_4 = arith.constant 0 : index
    %8 = vector.load %arg3[%c0_2, %c0_3, %c0_4] : memref<9x4x8xbf16, #tpu.memory_space<vmem>>, vector<1x4x8xbf16>
    %9 = vector.shape_cast %8 : vector<1x4x8xbf16> to vector<4x8xbf16>
    %cst_5 = arith.constant dense<0.000000e+00> : vector<160x8xf32>
    %10 = tpu.matmul %7, %9, %cst_5 {dimension_numbers = #tpu.dot_dimension_numbers<[1], [0], [0], [1], [0, 0, 1, 1], [], []>} : vector<160x4xbf16>, vector<4x8xbf16>, vector<160x8xf32> -> vector<160x8xf32>
    %11 = arith.addf %5, %10 : vector<160x8xf32>
    %12 = vector.extract_strided_slice %4 {offsets = [0, 1, 0], sizes = [10, 16, 4], strides = [1, 1, 1]} : vector<12x18x4xbf16> to vector<10x16x4xbf16>
    %13 = vector.shape_cast %12 : vector<10x16x4xbf16> to vector<160x4xbf16>
    %c1 = arith.constant 1 : index
    %c0_6 = arith.constant 0 : index
    %c0_7 = arith.constant 0 : index
    %14 = vector.load %arg3[%c1, %c0_6, %c0_7] : memref<9x4x8xbf16, #tpu.memory_space<vmem>>, vector<1x4x8xbf16>
    %15 = vector.shape_cast %14 : vector<1x4x8xbf16> to vector<4x8xbf16>
    %cst_8 = arith.constant dense<0.000000e+00> : vector<160x8xf32>
    %16 = tpu.matmul %13, %15, %cst_8 {dimension_numbers = #tpu.dot_dimension_numbers<[1], [0], [0], [1], [0, 0, 1, 1], [], []>} : vector<160x4xbf16>, vector<4x8xbf16>, vector<160x8xf32> -> vector<160x8xf32>
    %17 = arith.addf %11, %16 : vector<160x8xf32>
    %18 = vector.extract_strided_slice %4 {offsets = [0, 2, 0], sizes = [10, 16, 4], strides = [1, 1, 1]} : vector<12x18x4xbf16> to vector<10x16x4xbf16>
    %19 = vector.shape_cast %18 : vector<10x16x4xbf16> to vector<160x4xbf16>
    %c2 = arith.constant 2 : index
    %c0_9 = arith.constant 0 : index
    %c0_10 = arith.constant 0 : index
    %20 = vector.load %arg3[%c2, %c0_9, %c0_10] : memref<9x4x8xbf16, #tpu.memory_space<vmem>>, vector<1x4x8xbf16>
    %21 = vector.shape_cast %20 : vector<1x4x8xbf16> to vector<4x8xbf16>
    %cst_11 = arith.constant dense<0.000000e+00> : vector<160x8xf32>
    %22 = tpu.matmul %19, %21, %cst_11 {dimension_numbers = #tpu.dot_dimension_numbers<[1], [0], [0], [1], [0, 0, 1, 1], [], []>} : vector<160x4xbf16>, vector<4x8xbf16>, vector<160x8xf32> -> vector<160x8xf32>
    %23 = arith.addf %17, %22 : vector<160x8xf32>
    %24 = vector.extract_strided_slice %4 {offsets = [1, 0, 0], sizes = [10, 16, 4], strides = [1, 1, 1]} : vector<12x18x4xbf16> to vector<10x16x4xbf16>
    %25 = vector.shape_cast %24 : vector<10x16x4xbf16> to vector<160x4xbf16>
    %c3 = arith.constant 3 : index
    %c0_12 = arith.constant 0 : index
    %c0_13 = arith.constant 0 : index
    %26 = vector.load %arg3[%c3, %c0_12, %c0_13] : memref<9x4x8xbf16, #tpu.memory_space<vmem>>, vector<1x4x8xbf16>
    %27 = vector.shape_cast %26 : vector<1x4x8xbf16> to vector<4x8xbf16>
    %cst_14 = arith.constant dense<0.000000e+00> : vector<160x8xf32>
    %28 = tpu.matmul %25, %27, %cst_14 {dimension_numbers = #tpu.dot_dimension_numbers<[1], [0], [0], [1], [0, 0, 1, 1], [], []>} : vector<160x4xbf16>, vector<4x8xbf16>, vector<160x8xf32> -> vector<160x8xf32>
    %29 = arith.addf %23, %28 : vector<160x8xf32>
    %30 = vector.extract_strided_slice %4 {offsets = [1, 1, 0], sizes = [10, 16, 4], strides = [1, 1, 1]} : vector<12x18x4xbf16> to vector<10x16x4xbf16>
    %31 = vector.shape_cast %30 : vector<10x16x4xbf16> to vector<160x4xbf16>
    %c4 = arith.constant 4 : index
    %c0_15 = arith.constant 0 : index
    %c0_16 = arith.constant 0 : index
    %32 = vector.load %arg3[%c4, %c0_15, %c0_16] : memref<9x4x8xbf16, #tpu.memory_space<vmem>>, vector<1x4x8xbf16>
    %33 = vector.shape_cast %32 : vector<1x4x8xbf16> to vector<4x8xbf16>
    %cst_17 = arith.constant dense<0.000000e+00> : vector<160x8xf32>
    %34 = tpu.matmul %31, %33, %cst_17 {dimension_numbers = #tpu.dot_dimension_numbers<[1], [0], [0], [1], [0, 0, 1, 1], [], []>} : vector<160x4xbf16>, vector<4x8xbf16>, vector<160x8xf32> -> vector<160x8xf32>
    %35 = arith.addf %29, %34 : vector<160x8xf32>
    %36 = vector.extract_strided_slice %4 {offsets = [1, 2, 0], sizes = [10, 16, 4], strides = [1, 1, 1]} : vector<12x18x4xbf16> to vector<10x16x4xbf16>
    %37 = vector.shape_cast %36 : vector<10x16x4xbf16> to vector<160x4xbf16>
    %c5 = arith.constant 5 : index
    %c0_18 = arith.constant 0 : index
    %c0_19 = arith.constant 0 : index
    %38 = vector.load %arg3[%c5, %c0_18, %c0_19] : memref<9x4x8xbf16, #tpu.memory_space<vmem>>, vector<1x4x8xbf16>
    %39 = vector.shape_cast %38 : vector<1x4x8xbf16> to vector<4x8xbf16>
    %cst_20 = arith.constant dense<0.000000e+00> : vector<160x8xf32>
    %40 = tpu.matmul %37, %39, %cst_20 {dimension_numbers = #tpu.dot_dimension_numbers<[1], [0], [0], [1], [0, 0, 1, 1], [], []>} : vector<160x4xbf16>, vector<4x8xbf16>, vector<160x8xf32> -> vector<160x8xf32>
    %41 = arith.addf %35, %40 : vector<160x8xf32>
    %42 = vector.extract_strided_slice %4 {offsets = [2, 0, 0], sizes = [10, 16, 4], strides = [1, 1, 1]} : vector<12x18x4xbf16> to vector<10x16x4xbf16>
    %43 = vector.shape_cast %42 : vector<10x16x4xbf16> to vector<160x4xbf16>
    %c6 = arith.constant 6 : index
    %c0_21 = arith.constant 0 : index
    %c0_22 = arith.constant 0 : index
    %44 = vector.load %arg3[%c6, %c0_21, %c0_22] : memref<9x4x8xbf16, #tpu.memory_space<vmem>>, vector<1x4x8xbf16>
    %45 = vector.shape_cast %44 : vector<1x4x8xbf16> to vector<4x8xbf16>
    %cst_23 = arith.constant dense<0.000000e+00> : vector<160x8xf32>
    %46 = tpu.matmul %43, %45, %cst_23 {dimension_numbers = #tpu.dot_dimension_numbers<[1], [0], [0], [1], [0, 0, 1, 1], [], []>} : vector<160x4xbf16>, vector<4x8xbf16>, vector<160x8xf32> -> vector<160x8xf32>
    %47 = arith.addf %41, %46 : vector<160x8xf32>
    %48 = vector.extract_strided_slice %4 {offsets = [2, 1, 0], sizes = [10, 16, 4], strides = [1, 1, 1]} : vector<12x18x4xbf16> to vector<10x16x4xbf16>
    %49 = vector.shape_cast %48 : vector<10x16x4xbf16> to vector<160x4xbf16>
    %c7 = arith.constant 7 : index
    %c0_24 = arith.constant 0 : index
    %c0_25 = arith.constant 0 : index
    %50 = vector.load %arg3[%c7, %c0_24, %c0_25] : memref<9x4x8xbf16, #tpu.memory_space<vmem>>, vector<1x4x8xbf16>
    %51 = vector.shape_cast %50 : vector<1x4x8xbf16> to vector<4x8xbf16>
    %cst_26 = arith.constant dense<0.000000e+00> : vector<160x8xf32>
    %52 = tpu.matmul %49, %51, %cst_26 {dimension_numbers = #tpu.dot_dimension_numbers<[1], [0], [0], [1], [0, 0, 1, 1], [], []>} : vector<160x4xbf16>, vector<4x8xbf16>, vector<160x8xf32> -> vector<160x8xf32>
    %53 = arith.addf %47, %52 : vector<160x8xf32>
    %54 = vector.extract_strided_slice %4 {offsets = [2, 2, 0], sizes = [10, 16, 4], strides = [1, 1, 1]} : vector<12x18x4xbf16> to vector<10x16x4xbf16>
    %55 = vector.shape_cast %54 : vector<10x16x4xbf16> to vector<160x4xbf16>
    %c8 = arith.constant 8 : index
    %c0_27 = arith.constant 0 : index
    %c0_28 = arith.constant 0 : index
    %56 = vector.load %arg3[%c8, %c0_27, %c0_28] : memref<9x4x8xbf16, #tpu.memory_space<vmem>>, vector<1x4x8xbf16>
    %57 = vector.shape_cast %56 : vector<1x4x8xbf16> to vector<4x8xbf16>
    %cst_29 = arith.constant dense<0.000000e+00> : vector<160x8xf32>
    %58 = tpu.matmul %55, %57, %cst_29 {dimension_numbers = #tpu.dot_dimension_numbers<[1], [0], [0], [1], [0, 0, 1, 1], [], []>} : vector<160x4xbf16>, vector<4x8xbf16>, vector<160x8xf32> -> vector<160x8xf32>
    %59 = arith.addf %53, %58 : vector<160x8xf32>
    %c0_30 = arith.constant 0 : index
    %c0_31 = arith.constant 0 : index
    %60 = vector.load %arg4[%c0_30, %c0_31] : memref<1x8xf32, #tpu.memory_space<vmem>>, vector<1x8xf32>
    %61 = vector.broadcast %60 : vector<1x8xf32> to vector<160x8xf32>
    %62 = arith.mulf %59, %61 : vector<160x8xf32>
    %c0_32 = arith.constant 0 : index
    %c0_33 = arith.constant 0 : index
    %63 = vector.load %arg5[%c0_32, %c0_33] : memref<1x8xf32, #tpu.memory_space<vmem>>, vector<1x8xf32>
    %64 = vector.broadcast %63 : vector<1x8xf32> to vector<160x8xf32>
    %65 = arith.addf %62, %64 : vector<160x8xf32>
    %cst_34 = arith.constant 0.000000e+00 : f32
    %66 = vector.broadcast %cst_34 : f32 to vector<160x8xf32>
    %67 = arith.maximumf %65, %66 : vector<160x8xf32>
    %68 = vector.shape_cast %67 : vector<160x8xf32> to vector<10x16x8xf32>
    %c8_i32_35 = arith.constant 8 : i32
    %69 = arith.muli %arg1, %c8_i32_35 : i32
    %c1_i32 = arith.constant 1 : i32
    %70 = arith.subi %69, %c1_i32 : i32
    %71 = tpu.iota {dimensions = array<i32: 0>} : vector<10x16x8xi32>
    %72 = vector.broadcast %70 : i32 to vector<10x16x8xi32>
    %73 = arith.addi %72, %71 : vector<10x16x8xi32>
    %c0_i32 = arith.constant 0 : i32
    %74 = vector.broadcast %c0_i32 : i32 to vector<10x16x8xi32>
    %75 = arith.cmpi sge, %73, %74 : vector<10x16x8xi32>
    %c16_i32 = arith.constant 16 : i32
    %76 = vector.broadcast %c16_i32 : i32 to vector<10x16x8xi32>
    %77 = arith.cmpi slt, %73, %76 : vector<10x16x8xi32>
    %78 = arith.andi %75, %77 : vector<10x16x8xi1>
    %cst_36 = arith.constant 0.000000e+00 : f32
    %79 = vector.broadcast %cst_36 : f32 to vector<10x16x8xf32>
    %80 = arith.select %78, %68, %79 : vector<10x16x8xi1>, vector<10x16x8xf32>
    %81 = arith.truncf %80 : vector<10x16x8xf32> to vector<10x16x8xbf16>
    %cst_37 = arith.constant 0.000000e+00 : bf16
    %82 = vector.broadcast %cst_37 : bf16 to vector<10x1x8xbf16>
    %c0_38 = arith.constant 0 : index
    %c0_39 = arith.constant 0 : index
    %c0_40 = arith.constant 0 : index
    %83 = vector.load %arg13[%c0_38, %c0_39, %c0_40] : memref<10x18x8xbf16, #tpu.memory_space<vmem>>, vector<10x1x8xbf16>
    tpu.vector_store %arg13[%c0_38, %c0_39, %c0_40], %82 {strides = array<i32>} : memref<10x18x8xbf16, #tpu.memory_space<vmem>>, vector<10x1x8xbf16>,
    %cst_41 = arith.constant 0.000000e+00 : bf16
    %84 = vector.broadcast %cst_41 : bf16 to vector<10x1x8xbf16>
    %c0_42 = arith.constant 0 : index
    %c17 = arith.constant 17 : index
    %c0_43 = arith.constant 0 : index
    %85 = vector.load %arg13[%c0_42, %c17, %c0_43] : memref<10x18x8xbf16, #tpu.memory_space<vmem>>, vector<10x1x8xbf16>
    tpu.vector_store %arg13[%c0_42, %c17, %c0_43], %84 {strides = array<i32>} : memref<10x18x8xbf16, #tpu.memory_space<vmem>>, vector<10x1x8xbf16>,
    %c0_44 = arith.constant 0 : index
    %c1_45 = arith.constant 1 : index
    %c0_46 = arith.constant 0 : index
    %86 = vector.load %arg13[%c0_44, %c1_45, %c0_46] : memref<10x18x8xbf16, #tpu.memory_space<vmem>>, vector<10x16x8xbf16>
    tpu.vector_store %arg13[%c0_44, %c1_45, %c0_46], %81 {strides = array<i32>} : memref<10x18x8xbf16, #tpu.memory_space<vmem>>, vector<10x16x8xbf16>,
    %c0_47 = arith.constant 0 : index
    %c0_48 = arith.constant 0 : index
    %c0_49 = arith.constant 0 : index
    %87 = vector.load %arg13[%c0_47, %c0_48, %c0_49] : memref<10x18x8xbf16, #tpu.memory_space<vmem>>, vector<10x18x8xbf16>
    %cst_50 = arith.constant 0.000000e+00 : f32
    %88 = vector.broadcast %cst_50 : f32 to vector<128x8xf32>
    %89 = vector.extract_strided_slice %87 {offsets = [0, 0, 0], sizes = [8, 16, 8], strides = [1, 1, 1]} : vector<10x18x8xbf16> to vector<8x16x8xbf16>
    %90 = vector.shape_cast %89 : vector<8x16x8xbf16> to vector<128x8xbf16>
    %c0_51 = arith.constant 0 : index
    %c0_52 = arith.constant 0 : index
    %c0_53 = arith.constant 0 : index
    %91 = vector.load %arg6[%c0_51, %c0_52, %c0_53] : memref<9x8x8xbf16, #tpu.memory_space<vmem>>, vector<1x8x8xbf16>
    %92 = vector.shape_cast %91 : vector<1x8x8xbf16> to vector<8x8xbf16>
    %cst_54 = arith.constant dense<0.000000e+00> : vector<128x8xf32>
    %93 = tpu.matmul %90, %92, %cst_54 {dimension_numbers = #tpu.dot_dimension_numbers<[1], [0], [0], [1], [0, 0, 1, 1], [], []>} : vector<128x8xbf16>, vector<8x8xbf16>, vector<128x8xf32> -> vector<128x8xf32>
    %94 = arith.addf %88, %93 : vector<128x8xf32>
    %95 = vector.extract_strided_slice %87 {offsets = [0, 1, 0], sizes = [8, 16, 8], strides = [1, 1, 1]} : vector<10x18x8xbf16> to vector<8x16x8xbf16>
    %96 = vector.shape_cast %95 : vector<8x16x8xbf16> to vector<128x8xbf16>
    %c1_55 = arith.constant 1 : index
    %c0_56 = arith.constant 0 : index
    %c0_57 = arith.constant 0 : index
    %97 = vector.load %arg6[%c1_55, %c0_56, %c0_57] : memref<9x8x8xbf16, #tpu.memory_space<vmem>>, vector<1x8x8xbf16>
    %98 = vector.shape_cast %97 : vector<1x8x8xbf16> to vector<8x8xbf16>
    %cst_58 = arith.constant dense<0.000000e+00> : vector<128x8xf32>
    %99 = tpu.matmul %96, %98, %cst_58 {dimension_numbers = #tpu.dot_dimension_numbers<[1], [0], [0], [1], [0, 0, 1, 1], [], []>} : vector<128x8xbf16>, vector<8x8xbf16>, vector<128x8xf32> -> vector<128x8xf32>
    %100 = arith.addf %94, %99 : vector<128x8xf32>
    %101 = vector.extract_strided_slice %87 {offsets = [0, 2, 0], sizes = [8, 16, 8], strides = [1, 1, 1]} : vector<10x18x8xbf16> to vector<8x16x8xbf16>
    %102 = vector.shape_cast %101 : vector<8x16x8xbf16> to vector<128x8xbf16>
    %c2_59 = arith.constant 2 : index
    %c0_60 = arith.constant 0 : index
    %c0_61 = arith.constant 0 : index
    %103 = vector.load %arg6[%c2_59, %c0_60, %c0_61] : memref<9x8x8xbf16, #tpu.memory_space<vmem>>, vector<1x8x8xbf16>
    %104 = vector.shape_cast %103 : vector<1x8x8xbf16> to vector<8x8xbf16>
    %cst_62 = arith.constant dense<0.000000e+00> : vector<128x8xf32>
    %105 = tpu.matmul %102, %104, %cst_62 {dimension_numbers = #tpu.dot_dimension_numbers<[1], [0], [0], [1], [0, 0, 1, 1], [], []>} : vector<128x8xbf16>, vector<8x8xbf16>, vector<128x8xf32> -> vector<128x8xf32>
    %106 = arith.addf %100, %105 : vector<128x8xf32>
    %107 = vector.extract_strided_slice %87 {offsets = [1, 0, 0], sizes = [8, 16, 8], strides = [1, 1, 1]} : vector<10x18x8xbf16> to vector<8x16x8xbf16>
    %108 = vector.shape_cast %107 : vector<8x16x8xbf16> to vector<128x8xbf16>
    %c3_63 = arith.constant 3 : index
    %c0_64 = arith.constant 0 : index
    %c0_65 = arith.constant 0 : index
    %109 = vector.load %arg6[%c3_63, %c0_64, %c0_65] : memref<9x8x8xbf16, #tpu.memory_space<vmem>>, vector<1x8x8xbf16>
    %110 = vector.shape_cast %109 : vector<1x8x8xbf16> to vector<8x8xbf16>
    %cst_66 = arith.constant dense<0.000000e+00> : vector<128x8xf32>
    %111 = tpu.matmul %108, %110, %cst_66 {dimension_numbers = #tpu.dot_dimension_numbers<[1], [0], [0], [1], [0, 0, 1, 1], [], []>} : vector<128x8xbf16>, vector<8x8xbf16>, vector<128x8xf32> -> vector<128x8xf32>
    %112 = arith.addf %106, %111 : vector<128x8xf32>
    %113 = vector.extract_strided_slice %87 {offsets = [1, 1, 0], sizes = [8, 16, 8], strides = [1, 1, 1]} : vector<10x18x8xbf16> to vector<8x16x8xbf16>
    %114 = vector.shape_cast %113 : vector<8x16x8xbf16> to vector<128x8xbf16>
    %c4_67 = arith.constant 4 : index
    %c0_68 = arith.constant 0 : index
    %c0_69 = arith.constant 0 : index
    %115 = vector.load %arg6[%c4_67, %c0_68, %c0_69] : memref<9x8x8xbf16, #tpu.memory_space<vmem>>, vector<1x8x8xbf16>
    %116 = vector.shape_cast %115 : vector<1x8x8xbf16> to vector<8x8xbf16>
    %cst_70 = arith.constant dense<0.000000e+00> : vector<128x8xf32>
    %117 = tpu.matmul %114, %116, %cst_70 {dimension_numbers = #tpu.dot_dimension_numbers<[1], [0], [0], [1], [0, 0, 1, 1], [], []>} : vector<128x8xbf16>, vector<8x8xbf16>, vector<128x8xf32> -> vector<128x8xf32>
    %118 = arith.addf %112, %117 : vector<128x8xf32>
    %119 = vector.extract_strided_slice %87 {offsets = [1, 2, 0], sizes = [8, 16, 8], strides = [1, 1, 1]} : vector<10x18x8xbf16> to vector<8x16x8xbf16>
    %120 = vector.shape_cast %119 : vector<8x16x8xbf16> to vector<128x8xbf16>
    %c5_71 = arith.constant 5 : index
    %c0_72 = arith.constant 0 : index
    %c0_73 = arith.constant 0 : index
    %121 = vector.load %arg6[%c5_71, %c0_72, %c0_73] : memref<9x8x8xbf16, #tpu.memory_space<vmem>>, vector<1x8x8xbf16>
    %122 = vector.shape_cast %121 : vector<1x8x8xbf16> to vector<8x8xbf16>
    %cst_74 = arith.constant dense<0.000000e+00> : vector<128x8xf32>
    %123 = tpu.matmul %120, %122, %cst_74 {dimension_numbers = #tpu.dot_dimension_numbers<[1], [0], [0], [1], [0, 0, 1, 1], [], []>} : vector<128x8xbf16>, vector<8x8xbf16>, vector<128x8xf32> -> vector<128x8xf32>
    %124 = arith.addf %118, %123 : vector<128x8xf32>
    %125 = vector.extract_strided_slice %87 {offsets = [2, 0, 0], sizes = [8, 16, 8], strides = [1, 1, 1]} : vector<10x18x8xbf16> to vector<8x16x8xbf16>
    %126 = vector.shape_cast %125 : vector<8x16x8xbf16> to vector<128x8xbf16>
    %c6_75 = arith.constant 6 : index
    %c0_76 = arith.constant 0 : index
    %c0_77 = arith.constant 0 : index
    %127 = vector.load %arg6[%c6_75, %c0_76, %c0_77] : memref<9x8x8xbf16, #tpu.memory_space<vmem>>, vector<1x8x8xbf16>
    %128 = vector.shape_cast %127 : vector<1x8x8xbf16> to vector<8x8xbf16>
    %cst_78 = arith.constant dense<0.000000e+00> : vector<128x8xf32>
    %129 = tpu.matmul %126, %128, %cst_78 {dimension_numbers = #tpu.dot_dimension_numbers<[1], [0], [0], [1], [0, 0, 1, 1], [], []>} : vector<128x8xbf16>, vector<8x8xbf16>, vector<128x8xf32> -> vector<128x8xf32>
    %130 = arith.addf %124, %129 : vector<128x8xf32>
    %131 = vector.extract_strided_slice %87 {offsets = [2, 1, 0], sizes = [8, 16, 8], strides = [1, 1, 1]} : vector<10x18x8xbf16> to vector<8x16x8xbf16>
    %132 = vector.shape_cast %131 : vector<8x16x8xbf16> to vector<128x8xbf16>
    %c7_79 = arith.constant 7 : index
    %c0_80 = arith.constant 0 : index
    %c0_81 = arith.constant 0 : index
    %133 = vector.load %arg6[%c7_79, %c0_80, %c0_81] : memref<9x8x8xbf16, #tpu.memory_space<vmem>>, vector<1x8x8xbf16>
    %134 = vector.shape_cast %133 : vector<1x8x8xbf16> to vector<8x8xbf16>
    %cst_82 = arith.constant dense<0.000000e+00> : vector<128x8xf32>
    %135 = tpu.matmul %132, %134, %cst_82 {dimension_numbers = #tpu.dot_dimension_numbers<[1], [0], [0], [1], [0, 0, 1, 1], [], []>} : vector<128x8xbf16>, vector<8x8xbf16>, vector<128x8xf32> -> vector<128x8xf32>
    %136 = arith.addf %130, %135 : vector<128x8xf32>
    %137 = vector.extract_strided_slice %87 {offsets = [2, 2, 0], sizes = [8, 16, 8], strides = [1, 1, 1]} : vector<10x18x8xbf16> to vector<8x16x8xbf16>
    %138 = vector.shape_cast %137 : vector<8x16x8xbf16> to vector<128x8xbf16>
    %c8_83 = arith.constant 8 : index
    %c0_84 = arith.constant 0 : index
    %c0_85 = arith.constant 0 : index
    %139 = vector.load %arg6[%c8_83, %c0_84, %c0_85] : memref<9x8x8xbf16, #tpu.memory_space<vmem>>, vector<1x8x8xbf16>
    %140 = vector.shape_cast %139 : vector<1x8x8xbf16> to vector<8x8xbf16>
    %cst_86 = arith.constant dense<0.000000e+00> : vector<128x8xf32>
    %141 = tpu.matmul %138, %140, %cst_86 {dimension_numbers = #tpu.dot_dimension_numbers<[1], [0], [0], [1], [0, 0, 1, 1], [], []>} : vector<128x8xbf16>, vector<8x8xbf16>, vector<128x8xf32> -> vector<128x8xf32>
    %142 = arith.addf %136, %141 : vector<128x8xf32>
    %c0_87 = arith.constant 0 : index
    %c0_88 = arith.constant 0 : index
    %143 = vector.load %arg7[%c0_87, %c0_88] : memref<1x8xf32, #tpu.memory_space<vmem>>, vector<1x8xf32>
    %144 = vector.broadcast %143 : vector<1x8xf32> to vector<128x8xf32>
    %145 = arith.mulf %142, %144 : vector<128x8xf32>
    %c0_89 = arith.constant 0 : index
    %c0_90 = arith.constant 0 : index
    %146 = vector.load %arg8[%c0_89, %c0_90] : memref<1x8xf32, #tpu.memory_space<vmem>>, vector<1x8xf32>
    %147 = vector.broadcast %146 : vector<1x8xf32> to vector<128x8xf32>
    %148 = arith.addf %145, %147 : vector<128x8xf32>
    %149 = vector.extract_strided_slice %30 {offsets = [1, 0, 0], sizes = [8, 16, 4], strides = [1, 1, 1]} : vector<10x16x4xbf16> to vector<8x16x4xbf16>
    %150 = vector.shape_cast %149 : vector<8x16x4xbf16> to vector<128x4xbf16>
    %c0_91 = arith.constant 0 : index
    %c0_92 = arith.constant 0 : index
    %151 = vector.load %arg9[%c0_91, %c0_92] : memref<4x8xbf16, #tpu.memory_space<vmem>>, vector<4x8xbf16>
    %cst_93 = arith.constant dense<0.000000e+00> : vector<128x8xf32>
    %152 = tpu.matmul %150, %151, %cst_93 {dimension_numbers = #tpu.dot_dimension_numbers<[1], [0], [0], [1], [0, 0, 1, 1], [], []>} : vector<128x4xbf16>, vector<4x8xbf16>, vector<128x8xf32> -> vector<128x8xf32>
    %c0_94 = arith.constant 0 : index
    %c0_95 = arith.constant 0 : index
    %153 = vector.load %arg10[%c0_94, %c0_95] : memref<1x8xf32, #tpu.memory_space<vmem>>, vector<1x8xf32>
    %154 = vector.broadcast %153 : vector<1x8xf32> to vector<128x8xf32>
    %155 = arith.mulf %152, %154 : vector<128x8xf32>
    %c0_96 = arith.constant 0 : index
    %c0_97 = arith.constant 0 : index
    %156 = vector.load %arg11[%c0_96, %c0_97] : memref<1x8xf32, #tpu.memory_space<vmem>>, vector<1x8xf32>
    %157 = vector.broadcast %156 : vector<1x8xf32> to vector<128x8xf32>
    %158 = arith.addf %155, %157 : vector<128x8xf32>
    %159 = arith.addf %148, %158 : vector<128x8xf32>
    %cst_98 = arith.constant 0.000000e+00 : f32
    %160 = vector.broadcast %cst_98 : f32 to vector<128x8xf32>
    %161 = arith.maximumf %159, %160 : vector<128x8xf32>
    %162 = vector.shape_cast %161 : vector<128x8xf32> to vector<8x16x8xf32>
    %c0_99 = arith.constant 0 : index
    %c0_100 = arith.constant 0 : index
    %c0_101 = arith.constant 0 : index
    %c0_102 = arith.constant 0 : index
    %163 = vector.load %arg12[%c0_99, %c0_100, %c0_101, %c0_102] : memref<1x8x16x8xf32, #tpu.memory_space<vmem>>, vector<1x8x16x8xf32>
    %164 = vector.shape_cast %163 : vector<1x8x16x8xf32> to vector<8x16x8xf32>
    %165 = vector.shape_cast %162 : vector<8x16x8xf32> to vector<1x8x16x8xf32>
    tpu.vector_store %arg12[%c0_99, %c0_100, %c0_101, %c0_102], %165 {strides = array<i32>} : memref<1x8x16x8xf32, #tpu.memory_space<vmem>>, vector<1x8x16x8xf32>,
    return
  }
  func.func @transform_0(%arg0: i32, %arg1: i32) -> (i32, i32, i32, i32) {
    %c0_i32 = arith.constant 0 : i32
    %c0_i32_0 = arith.constant 0 : i32
    %c0_i32_1 = arith.constant 0 : i32
    %c0_i32_2 = arith.constant 0 : i32
    return %arg0, %c0_i32, %c0_i32_0, %c0_i32_1 : i32, i32, i32, i32
  }
  func.func @transform_1(%arg0: i32, %arg1: i32) -> (i32, i32, i32) {
    %c0_i32 = arith.constant 0 : i32
    %c0_i32_0 = arith.constant 0 : i32
    %c0_i32_1 = arith.constant 0 : i32
    %c0_i32_2 = arith.constant 0 : i32
    return %c0_i32, %c0_i32_0, %c0_i32_1 : i32, i32, i32
  }
  func.func @transform_2(%arg0: i32, %arg1: i32) -> (i32, i32) {
    %c0_i32 = arith.constant 0 : i32
    %c0_i32_0 = arith.constant 0 : i32
    %c0_i32_1 = arith.constant 0 : i32
    return %c0_i32, %c0_i32_0 : i32, i32
  }
  func.func @transform_3(%arg0: i32, %arg1: i32) -> (i32, i32) {
    %c0_i32 = arith.constant 0 : i32
    %c0_i32_0 = arith.constant 0 : i32
    %c0_i32_1 = arith.constant 0 : i32
    return %c0_i32, %c0_i32_0 : i32, i32
  }
  func.func @transform_4(%arg0: i32, %arg1: i32) -> (i32, i32, i32) {
    %c0_i32 = arith.constant 0 : i32
    %c0_i32_0 = arith.constant 0 : i32
    %c0_i32_1 = arith.constant 0 : i32
    %c0_i32_2 = arith.constant 0 : i32
    return %c0_i32, %c0_i32_0, %c0_i32_1 : i32, i32, i32
  }
  func.func @transform_5(%arg0: i32, %arg1: i32) -> (i32, i32) {
    %c0_i32 = arith.constant 0 : i32
    %c0_i32_0 = arith.constant 0 : i32
    %c0_i32_1 = arith.constant 0 : i32
    return %c0_i32, %c0_i32_0 : i32, i32
  }
  func.func @transform_6(%arg0: i32, %arg1: i32) -> (i32, i32) {
    %c0_i32 = arith.constant 0 : i32
    %c0_i32_0 = arith.constant 0 : i32
    %c0_i32_1 = arith.constant 0 : i32
    return %c0_i32, %c0_i32_0 : i32, i32
  }
  func.func @transform_7(%arg0: i32, %arg1: i32) -> (i32, i32) {
    %c0_i32 = arith.constant 0 : i32
    %c0_i32_0 = arith.constant 0 : i32
    %c0_i32_1 = arith.constant 0 : i32
    return %c0_i32, %c0_i32_0 : i32, i32
  }
  func.func @transform_8(%arg0: i32, %arg1: i32) -> (i32, i32) {
    %c0_i32 = arith.constant 0 : i32
    %c0_i32_0 = arith.constant 0 : i32
    %c0_i32_1 = arith.constant 0 : i32
    return %c0_i32, %c0_i32_0 : i32, i32
  }
  func.func @transform_9(%arg0: i32, %arg1: i32) -> (i32, i32) {
    %c0_i32 = arith.constant 0 : i32
    %c0_i32_0 = arith.constant 0 : i32
    %c0_i32_1 = arith.constant 0 : i32
    return %c0_i32, %c0_i32_0 : i32, i32
  }
  func.func @transform_10(%arg0: i32, %arg1: i32) -> (i32, i32, i32, i32) {
    %c0_i32 = arith.constant 0 : i32
    %c0_i32_0 = arith.constant 0 : i32
    %c0_i32_1 = arith.constant 0 : i32
    return %arg0, %arg1, %c0_i32, %c0_i32_0 : i32, i32, i32, i32
  }
}

</mosaic_0001>

<llo_original>
// kernel: tpu_custom_call.1
$region0: #{tpu_custom_call.1}
  #allocation0 [shape = 'u32[]', space=smem, size = 0x4, offset = 0x4, fixed_abs, tag = 'smem constant byte address 0x4 - core index']
  #allocation1 [shape = 'u32[144,128]{1,0:T(1,128)}', space=vmem, size = 0x12000, scoped, tag = 'internal scratch']
  #allocation2 [shape = 'bf16[10,18,8]{2,1,0:T(8,128)(2,1)}', space=vmem, size = 0xf000, scoped, tag = 'scratch operand']
  %s0 = inlined_call_operand.vmem [shape: bf16[2,20,18,4], index: 0, kind: input, shape index: {}]
  %s1 = inlined_call_operand.vmem [shape: bf16[9,4,8], index: 1, kind: input, shape index: {}]
  %s2 = inlined_call_operand.vmem [shape: f32[1,8], index: 2, kind: input, shape index: {}]
  %s3 = inlined_call_operand.vmem [shape: f32[1,8], index: 3, kind: input, shape index: {}]
  %s4 = inlined_call_operand.vmem [shape: bf16[9,8,8], index: 4, kind: input, shape index: {}]
  %s5 = inlined_call_operand.vmem [shape: f32[1,8], index: 5, kind: input, shape index: {}]
  %s6 = inlined_call_operand.vmem [shape: f32[1,8], index: 6, kind: input, shape index: {}]
  %s7 = inlined_call_operand.vmem [shape: bf16[4,8], index: 7, kind: input, shape index: {}]
  %s8 = inlined_call_operand.vmem [shape: f32[1,8], index: 8, kind: input, shape index: {}]
  %s9 = inlined_call_operand.vmem [shape: f32[1,8], index: 9, kind: input, shape index: {}]
  %s10 = inlined_call_operand.vmem [shape: f32[2,16,16,8], index: 10, kind: output, shape index: {}]
  %s11 = sld [smem:[#allocation0]]
  $region73: #{tpu_custom_call.1} parent=0
    _
  %s13 = ssub.s32 1, %s11
  %s14 = scalar_select 0, %s13, %s11
  loop: start=0, step=1, limit=6
  $region2: #{tpu_custom_call.1} parent=0 // loop_pre_header
    _
  $region3: #{tpu_custom_call.1} parent=0 // loop_header
    %s16 = sphi 0, %s20
    %p17 = scmp.ge.s32.totalorder %s16, 6
    %s23 = sphi 0, %s35
    %s24 = sphi 0, %s31
    %s25 = sphi 0, %s23
    %s26 = sphi 0, %s24
    %s27 = sphi 0, %s25
    %s28 = sphi 0, %s26
    %s38 = sphi 0, %s40
    %s41 = sphi 0, %s38
    %s42 = sphi 0, %s41
    %s58 = sphi 0, %s42
    %s62 = sphi 0, %s62
    %s64 = sphi 0, %s62
    %s65 = sphi 0, %s64
    %s79 = sphi 0, %s65
    %s83 = sphi 0, %s83
    %s85 = sphi 0, %s83
    %s86 = sphi 0, %s85
    %s100 = sphi 0, %s86
    %s104 = sphi 0, %s104
    %s106 = sphi 0, %s104
    %s107 = sphi 0, %s106
    %s121 = sphi 0, %s107
    %s125 = sphi 0, %s125
    %s127 = sphi 0, %s125
    %s128 = sphi 0, %s127
    %s142 = sphi 0, %s128
    %s146 = sphi 0, %s146
    %s148 = sphi 0, %s146
    %s149 = sphi 0, %s148
    %s163 = sphi 0, %s149
    %s167 = sphi 0, %s167
    %s169 = sphi 0, %s167
    %s170 = sphi 0, %s169
    %s184 = sphi 0, %s170
    %s188 = sphi 0, %s188
    %s190 = sphi 0, %s188
    %s191 = sphi 0, %s190
    %s205 = sphi 0, %s191
    %s209 = sphi 0, %s209
    %s211 = sphi 0, %s209
    %s212 = sphi 0, %s211
    %s226 = sphi 0, %s212
    %s230 = sphi 0, %s230
    %s232 = sphi 0, %s230
    %s233 = sphi 0, %s232
    %s247 = sphi 0, %s233
    %s255 = sphi 0, %s257
    %s258 = sphi 0, %s255
    %s259 = sphi 0, %s258
    %s275 = sphi 0, %s259
  $region4: #{tpu_custom_call.1} parent=0 // loop_header_branch
    %19 = sbr.rel (%p17) target = $region8
  $region5: #{tpu_custom_call.1} parent=0 // loop_body
    %s21 = ssub.s32 %s16, 1
    %s22 = ssub.s32 %s16, 2
    %s29 = sadd.s32 1, %s24
    %p30 = scmp.ge.s32.totalorder %s29, 2
    %s31 = scalar_select %p30, 0, %s29
    %s32 = sadd.s32 1, %s23
    %s33 = scalar_select %p30, %s32, %s23
    %p34 = scmp.ge.s32.totalorder %s33, 2
    %s35 = scalar_select %p34, 0, %s33
    %s36 = ssub.s32 %s23, %s35
    %p37 = scmp.eq.s32.totalorder %s36, 0
    %s39 = sadd.s32 %s38, 1
    %s40 = scalar_select %p37, %s38, %s39
    %p43 = pneg %p37
    %p44 = scmp.eq.s32.totalorder %s16, 3
    %p45 = por %p43, %p44
    %p46 = scmp.ne.s32.totalorder %s38, %s41
    %p47 = scmp.eq.s32.totalorder %s16, 0
    %p48 = por %p46, %p47
    %p49 = scmp.ne.s32.totalorder %s38, %s41
    %p50 = scmp.eq.s32.totalorder %s21, 3
    %p51 = por %p49, %p50
    %p52 = scmp.ne.s32.totalorder %s41, %s42
    %p53 = scmp.eq.s32.totalorder %s21, 0
    %p54 = por %p52, %p53
    %p55 = scmp.ne.s32.totalorder %s41, %s42
    %p56 = scmp.eq.s32.totalorder %s22, 3
    %p57 = por %p55, %p56
    %p59 = scmp.ne.s32.totalorder %s42, %s58
    %p60 = scmp.eq.s32.totalorder %s22, 0
    %p61 = por %p59, %p60
    %s63 = sadd.s32 %s62, 1
    %p66 = scmp.eq.s32.totalorder %s16, 3
    %p67 = scmp.ne.s32.totalorder %s62, %s64
    %p68 = scmp.eq.s32.totalorder %s16, 0
    %p69 = por %p67, %p68
    %p70 = scmp.ne.s32.totalorder %s62, %s64
    %p71 = scmp.eq.s32.totalorder %s21, 3
    %p72 = por %p70, %p71
    %p73 = scmp.ne.s32.totalorder %s64, %s65
    %p74 = scmp.eq.s32.totalorder %s21, 0
    %p75 = por %p73, %p74
    %p76 = scmp.ne.s32.totalorder %s64, %s65
    %p77 = scmp.eq.s32.totalorder %s22, 3
    %p78 = por %p76, %p77
    %p80 = scmp.ne.s32.totalorder %s65, %s79
    %p81 = scmp.eq.s32.totalorder %s22, 0
    %p82 = por %p80, %p81
    %s84 = sadd.s32 %s83, 1
    %p87 = scmp.eq.s32.totalorder %s16, 3
    %p88 = scmp.ne.s32.totalorder %s83, %s85
    %p89 = scmp.eq.s32.totalorder %s16, 0
    %p90 = por %p88, %p89
    %p91 = scmp.ne.s32.totalorder %s83, %s85
    %p92 = scmp.eq.s32.totalorder %s21, 3
    %p93 = por %p91, %p92
    %p94 = scmp.ne.s32.totalorder %s85, %s86
    %p95 = scmp.eq.s32.totalorder %s21, 0
    %p96 = por %p94, %p95
    %p97 = scmp.ne.s32.totalorder %s85, %s86
    %p98 = scmp.eq.s32.totalorder %s22, 3
    %p99 = por %p97, %p98
    %p101 = scmp.ne.s32.totalorder %s86, %s100
    %p102 = scmp.eq.s32.totalorder %s22, 0
    %p103 = por %p101, %p102
    %s105 = sadd.s32 %s104, 1
    %p108 = scmp.eq.s32.totalorder %s16, 3
    %p109 = scmp.ne.s32.totalorder %s104, %s106
    %p110 = scmp.eq.s32.totalorder %s16, 0
    %p111 = por %p109, %p110
    %p112 = scmp.ne.s32.totalorder %s104, %s106
    %p113 = scmp.eq.s32.totalorder %s21, 3
    %p114 = por %p112, %p113
    %p115 = scmp.ne.s32.totalorder %s106, %s107
    %p116 = scmp.eq.s32.totalorder %s21, 0
    %p117 = por %p115, %p116
    %p118 = scmp.ne.s32.totalorder %s106, %s107
    %p119 = scmp.eq.s32.totalorder %s22, 3
    %p120 = por %p118, %p119
    %p122 = scmp.ne.s32.totalorder %s107, %s121
    %p123 = scmp.eq.s32.totalorder %s22, 0
    %p124 = por %p122, %p123
    %s126 = sadd.s32 %s125, 1
    %p129 = scmp.eq.s32.totalorder %s16, 3
    %p130 = scmp.ne.s32.totalorder %s125, %s127
    %p131 = scmp.eq.s32.totalorder %s16, 0
    %p132 = por %p130, %p131
    %p133 = scmp.ne.s32.totalorder %s125, %s127
    %p134 = scmp.eq.s32.totalorder %s21, 3
    %p135 = por %p133, %p134
    %p136 = scmp.ne.s32.totalorder %s127, %s128
    %p137 = scmp.eq.s32.totalorder %s21, 0
    %p138 = por %p136, %p137
    %p139 = scmp.ne.s32.totalorder %s127, %s128
    %p140 = scmp.eq.s32.totalorder %s22, 3
    %p141 = por %p139, %p140
    %p143 = scmp.ne.s32.totalorder %s128, %s142
    %p144 = scmp.eq.s32.totalorder %s22, 0
    %p145 = por %p143, %p144
    %s147 = sadd.s32 %s146, 1
    %p150 = scmp.eq.s32.totalorder %s16, 3
    %p151 = scmp.ne.s32.totalorder %s146, %s148
    %p152 = scmp.eq.s32.totalorder %s16, 0
    %p153 = por %p151, %p152
    %p154 = scmp.ne.s32.totalorder %s146, %s148
    %p155 = scmp.eq.s32.totalorder %s21, 3
    %p156 = por %p154, %p155
    %p157 = scmp.ne.s32.totalorder %s148, %s149
    %p158 = scmp.eq.s32.totalorder %s21, 0
    %p159 = por %p157, %p158
    %p160 = scmp.ne.s32.totalorder %s148, %s149
    %p161 = scmp.eq.s32.totalorder %s22, 3
    %p162 = por %p160, %p161
    %p164 = scmp.ne.s32.totalorder %s149, %s163
    %p165 = scmp.eq.s32.totalorder %s22, 0
    %p166 = por %p164, %p165
    %s168 = sadd.s32 %s167, 1
    %p171 = scmp.eq.s32.totalorder %s16, 3
    %p172 = scmp.ne.s32.totalorder %s167, %s169
    %p173 = scmp.eq.s32.totalorder %s16, 0
    %p174 = por %p172, %p173
    %p175 = scmp.ne.s32.totalorder %s167, %s169
    %p176 = scmp.eq.s32.totalorder %s21, 3
    %p177 = por %p175, %p176
    %p178 = scmp.ne.s32.totalorder %s169, %s170
    %p179 = scmp.eq.s32.totalorder %s21, 0
    %p180 = por %p178, %p179
    %p181 = scmp.ne.s32.totalorder %s169, %s170
    %p182 = scmp.eq.s32.totalorder %s22, 3
    %p183 = por %p181, %p182
    %p185 = scmp.ne.s32.totalorder %s170, %s184
    %p186 = scmp.eq.s32.totalorder %s22, 0
    %p187 = por %p185, %p186
    %s189 = sadd.s32 %s188, 1
    %p192 = scmp.eq.s32.totalorder %s16, 3
    %p193 = scmp.ne.s32.totalorder %s188, %s190
    %p194 = scmp.eq.s32.totalorder %s16, 0
    %p195 = por %p193, %p194
    %p196 = scmp.ne.s32.totalorder %s188, %s190
    %p197 = scmp.eq.s32.totalorder %s21, 3
    %p198 = por %p196, %p197
    %p199 = scmp.ne.s32.totalorder %s190, %s191
    %p200 = scmp.eq.s32.totalorder %s21, 0
    %p201 = por %p199, %p200
    %p202 = scmp.ne.s32.totalorder %s190, %s191
    %p203 = scmp.eq.s32.totalorder %s22, 3
    %p204 = por %p202, %p203
    %p206 = scmp.ne.s32.totalorder %s191, %s205
    %p207 = scmp.eq.s32.totalorder %s22, 0
    %p208 = por %p206, %p207
    %s210 = sadd.s32 %s209, 1
    %p213 = scmp.eq.s32.totalorder %s16, 3
    %p214 = scmp.ne.s32.totalorder %s209, %s211
    %p215 = scmp.eq.s32.totalorder %s16, 0
    %p216 = por %p214, %p215
    %p217 = scmp.ne.s32.totalorder %s209, %s211
    %p218 = scmp.eq.s32.totalorder %s21, 3
    %p219 = por %p217, %p218
    %p220 = scmp.ne.s32.totalorder %s211, %s212
    %p221 = scmp.eq.s32.totalorder %s21, 0
    %p222 = por %p220, %p221
    %p223 = scmp.ne.s32.totalorder %s211, %s212
    %p224 = scmp.eq.s32.totalorder %s22, 3
    %p225 = por %p223, %p224
    %p227 = scmp.ne.s32.totalorder %s212, %s226
    %p228 = scmp.eq.s32.totalorder %s22, 0
    %p229 = por %p227, %p228
    %s231 = sadd.s32 %s230, 1
    %p234 = scmp.eq.s32.totalorder %s16, 3
    %p235 = scmp.ne.s32.totalorder %s230, %s232
    %p236 = scmp.eq.s32.totalorder %s16, 0
    %p237 = por %p235, %p236
    %p238 = scmp.ne.s32.totalorder %s230, %s232
    %p239 = scmp.eq.s32.totalorder %s21, 3
    %p240 = por %p238, %p239
    %p241 = scmp.ne.s32.totalorder %s232, %s233
    %p242 = scmp.eq.s32.totalorder %s21, 0
    %p243 = por %p241, %p242
    %p244 = scmp.ne.s32.totalorder %s232, %s233
    %p245 = scmp.eq.s32.totalorder %s22, 3
    %p246 = por %p244, %p245
    %p248 = scmp.ne.s32.totalorder %s233, %s247
    %p249 = scmp.eq.s32.totalorder %s22, 0
    %p250 = por %p248, %p249
    %s251 = ssub.s32 %s23, %s35
    %s252 = ssub.s32 %s24, %s31
    %s253 = sor.u32 %s251, %s252
    %p254 = scmp.eq.s32.totalorder %s253, 0
    %s256 = sadd.s32 %s255, 1
    %s257 = scalar_select %p254, %s255, %s256
    %p260 = pneg %p254
    %p261 = scmp.eq.s32.totalorder %s16, 3
    %p262 = por %p260, %p261
    %p263 = scmp.ne.s32.totalorder %s255, %s258
    %p264 = scmp.eq.s32.totalorder %s16, 0
    %p265 = por %p263, %p264
    %p266 = scmp.ne.s32.totalorder %s255, %s258
    %p267 = scmp.eq.s32.totalorder %s21, 3
    %p268 = por %p266, %p267
    %p269 = scmp.ne.s32.totalorder %s258, %s259
    %p270 = scmp.eq.s32.totalorder %s21, 0
    %p271 = por %p269, %p270
    %p272 = scmp.ne.s32.totalorder %s258, %s259
    %p273 = scmp.eq.s32.totalorder %s22, 3
    %p274 = por %p272, %p273
    %p276 = scmp.ne.s32.totalorder %s259, %s275
    %p277 = scmp.eq.s32.totalorder %s22, 0
    %p278 = por %p276, %p277
    %p279 = scmp.le.s32.totalorder 1, %s16
    %p280 = scmp.lt.s32.totalorder %s16, 5
    %p281 = pnand %p279, %p280
    %p282 = pneg %p281
    // Predicated region
    $region9: #{tpu_custom_call.1} parent=5 // pred_check
      _
    $region10: #{tpu_custom_call.1} parent=5 // pred_check_branch
      %284 = sbr.rel (%p281) target = $region12
    $region11: #{tpu_custom_call.1} parent=5 // pred_region
      %s285 = ssub.s32 %s16, 1
      // Predicated region
      $region13: #{tpu_custom_call.1} parent=11 // pred_check
        %p286 = pneg %p75
      $region14: #{tpu_custom_call.1} parent=11 // pred_check_branch
        %288 = sbr.rel (%p286) target = $region16
      $region15: #{tpu_custom_call.1} parent=11 // pred_region
        _
      $region16: #{tpu_custom_call.1} parent=11 // pred_fallthru
        _
      // Predicated region
      $region17: #{tpu_custom_call.1} parent=11 // pred_check
        %p289 = pneg %p96
      $region18: #{tpu_custom_call.1} parent=11 // pred_check_branch
        %291 = sbr.rel (%p289) target = $region20
      $region19: #{tpu_custom_call.1} parent=11 // pred_region
        _
      $region20: #{tpu_custom_call.1} parent=11 // pred_fallthru
        _
      // Predicated region
      $region21: #{tpu_custom_call.1} parent=11 // pred_check
        %p292 = pneg %p117
      $region22: #{tpu_custom_call.1} parent=11 // pred_check_branch
        %294 = sbr.rel (%p292) target = $region24
      $region23: #{tpu_custom_call.1} parent=11 // pred_region
        _
      $region24: #{tpu_custom_call.1} parent=11 // pred_fallthru
        _
      // Predicated region
      $region25: #{tpu_custom_call.1} parent=11 // pred_check
        %p295 = pneg %p138
      $region26: #{tpu_custom_call.1} parent=11 // pred_check_branch
        %297 = sbr.rel (%p295) target = $region28
      $region27: #{tpu_custom_call.1} parent=11 // pred_region
        _
      $region28: #{tpu_custom_call.1} parent=11 // pred_fallthru
        _
      // Predicated region
      $region29: #{tpu_custom_call.1} parent=11 // pred_check
        %p298 = pneg %p159
      $region30: #{tpu_custom_call.1} parent=11 // pred_check_branch
        %300 = sbr.rel (%p298) target = $region32
      $region31: #{tpu_custom_call.1} parent=11 // pred_region
        _
      $region32: #{tpu_custom_call.1} parent=11 // pred_fallthru
        _
      // Predicated region
      $region33: #{tpu_custom_call.1} parent=11 // pred_check
        %p301 = pneg %p180
      $region34: #{tpu_custom_call.1} parent=11 // pred_check_branch
        %303 = sbr.rel (%p301) target = $region36
      $region35: #{tpu_custom_call.1} parent=11 // pred_region
        _
      $region36: #{tpu_custom_call.1} parent=11 // pred_fallthru
        _
      // Predicated region
      $region37: #{tpu_custom_call.1} parent=11 // pred_check
        %p304 = pneg %p201
      $region38: #{tpu_custom_call.1} parent=11 // pred_check_branch
        %306 = sbr.rel (%p304) target = $region40
      $region39: #{tpu_custom_call.1} parent=11 // pred_region
        _
      $region40: #{tpu_custom_call.1} parent=11 // pred_fallthru
        _
      // Predicated region
      $region41: #{tpu_custom_call.1} parent=11 // pred_check
        %p307 = pneg %p222
      $region42: #{tpu_custom_call.1} parent=11 // pred_check_branch
        %309 = sbr.rel (%p307) target = $region44
      $region43: #{tpu_custom_call.1} parent=11 // pred_region
        _
      $region44: #{tpu_custom_call.1} parent=11 // pred_fallthru
        _
      // Predicated region
      $region45: #{tpu_custom_call.1} parent=11 // pred_check
        %p310 = pneg %p243
      $region46: #{tpu_custom_call.1} parent=11 // pred_check_branch
        %312 = sbr.rel (%p310) target = $region48
      $region47: #{tpu_custom_call.1} parent=11 // pred_region
        _
      $region48: #{tpu_custom_call.1} parent=11 // pred_fallthru
        _
    $region12: #{tpu_custom_call.1} parent=5 // pred_fallthru
      _
    %p313 = scmp.lt.s32.totalorder %s16, 4
    // Predicated region
    $region49: #{tpu_custom_call.1} parent=5 // pred_check
      %p314 = pneg %p313
    $region50: #{tpu_custom_call.1} parent=5 // pred_check_branch
      %316 = sbr.rel (%p314) target = $region52
    $region51: #{tpu_custom_call.1} parent=5 // pred_region
      // Predicated region
      $region53: #{tpu_custom_call.1} parent=51 // pred_check
        %p317 = pneg %p48
      $region54: #{tpu_custom_call.1} parent=51 // pred_check_branch
        %319 = sbr.rel (%p317) target = $region56
      $region55: #{tpu_custom_call.1} parent=51 // pred_region
        %p320 = scmp.lt.s32.totalorder %s23, 1
        %s321 = scalar_select %p320, %s23, 1
        %s322 = smul.addr %s321, 60
        %s323 = smul.addr %s322, 4
        %s324 = scalar_lea.vmem %s0, %s323
      $region56: #{tpu_custom_call.1} parent=51 // pred_fallthru
        _
    $region52: #{tpu_custom_call.1} parent=5 // pred_fallthru
      _
    %p325 = scmp.le.s32.totalorder 1, %s16
    %p326 = scmp.lt.s32.totalorder %s16, 5
    %p327 = pnand %p325, %p326
    %p328 = pneg %p327
    // Predicated region
    $region57: #{tpu_custom_call.1} parent=5 // pred_check
      _
    $region58: #{tpu_custom_call.1} parent=5 // pred_check_branch
      %330 = sbr.rel (%p327) target = $region60
    $region59: #{tpu_custom_call.1} parent=5 // pred_region
      %s331 = ssub.s32 %s16, 1
      %p332 = scmp.lt.s32.totalorder %s25, 1
      %s333 = scalar_select %p332, %s25, 1
      %s334 = smul.addr %s333, 60
      %s335 = smul.addr %s334, 4
      %s336 = scalar_lea.vmem %s0, %s335
      %p337 = pneg %p54
      %p338 = pneg %p51
      %p339 = pneg %p75
      %p340 = pneg %p72
      %p341 = pneg %p96
      %p342 = pneg %p93
      %p343 = pneg %p117
      %p344 = pneg %p114
      %p345 = pneg %p138
      %p346 = pneg %p135
      %p347 = pneg %p159
      %p348 = pneg %p156
      %p349 = pneg %p180
      %p350 = pneg %p177
      %p351 = pneg %p201
      %p352 = pneg %p198
      %p353 = pneg %p222
      %p354 = pneg %p219
      %p355 = pneg %p243
      %p356 = pneg %p240
      %p357 = pneg %p271
      %p358 = pneg %p268
      %s359 = smul.u32 8, %s26
      %p360 = scmp.lt.s32.totalorder %s25, 1
      %s361 = scalar_select %p360, %s25, 1
      %p362 = scmp.lt.s32.totalorder %s359, 15
      %s363 = scalar_select %p362, %s359, 15
      %s364 = smul.addr %s363, 2
      %s365 = smul.addr %s361, 32
      %s366 = sadd.s32 %s364, %s365
      %s367 = smul.addr %s366, 8
      %s368 = scalar_lea.vmem %s10, %s367
      %p369 = scmp.lt.s32.totalorder %s25, 1
      %s370 = scalar_select %p369, %s25, 1
      %s371 = smul.addr %s370, 60
      %s372 = smul.addr %s371, 4
      %s373 = scalar_lea.vmem %s0, %s372
      %s374 = smul.u32 8, %s26
      %p375 = scmp.lt.s32.totalorder %s25, 1
      %s376 = scalar_select %p375, %s25, 1
      %p377 = scmp.lt.s32.totalorder %s374, 15
      %s378 = scalar_select %p377, %s374, 15
      %s379 = smul.addr %s378, 2
      %s380 = smul.addr %s376, 32
      %s381 = sadd.s32 %s379, %s380
      %s382 = smul.addr %s381, 8
      %s383 = scalar_lea.vmem %s10, %s382
      %s384 = smul.u32 8, %s26
      %s386 = smul.u32 %s26, 8
      %s387 = smul.u32 %s386, 3
      %s388 = smul.addr %s387, 4
      %s389 = scalar_lea.vmem %s373, %s388
      %v390 = vld [vmem:[%s389] sm:$0xf]
      %v391 = vld [vmem:[%s389 + $0x4] sm:$0xf]
      %v392 = vld [vmem:[%s389 + $0x8] sm:$0x1]
      %v393 = vld [vmem:[%s389 + $0xc] sm:$0xf]
      %v394 = vld [vmem:[%s389 + $0x10] sm:$0xf]
      %v395 = vld [vmem:[%s389 + $0x14] sm:$0x1]
      %v396 = vld [vmem:[%s389 + $0x18] sm:$0xf]
      %v397 = vld [vmem:[%s389 + $0x1c] sm:$0xf]
      %v398 = vld [vmem:[%s389 + $0x20] sm:$0x1]
      %v399 = vld [vmem:[%s389 + $0x24] sm:$0xf]
      %v400 = vld [vmem:[%s389 + $0x28] sm:$0xf]
      %v401 = vld [vmem:[%s389 + $0x2c] sm:$0x1]
      %v402 = vld [vmem:[%s389 + $0x30] sm:$0xf]
      %v403 = vld [vmem:[%s389 + $0x34] sm:$0xf]
      %v404 = vld [vmem:[%s389 + $0x38] sm:$0x1]
      %v405 = vld [vmem:[%s389 + $0x3c] sm:$0xf]
      %v406 = vld [vmem:[%s389 + $0x40] sm:$0xf]
      %v407 = vld [vmem:[%s389 + $0x44] sm:$0x1]
      %v408 = vld [vmem:[%s389 + $0x48] sm:$0xf]
      %v409 = vld [vmem:[%s389 + $0x4c] sm:$0xf]
      %v410 = vld [vmem:[%s389 + $0x50] sm:$0x1]
      %v411 = vld [vmem:[%s389 + $0x54] sm:$0xf]
      %v412 = vld [vmem:[%s389 + $0x58] sm:$0xf]
      %v413 = vld [vmem:[%s389 + $0x5c] sm:$0x1]
      %v414 = vld [vmem:[%s389 + $0x60] sm:$0xf]
      %v415 = vld [vmem:[%s389 + $0x64] sm:$0xf]
      %v416 = vld [vmem:[%s389 + $0x68] sm:$0x1]
      %v417 = vld [vmem:[%s389 + $0x6c] sm:$0xf]
      %v418 = vld [vmem:[%s389 + $0x70] sm:$0xf]
      %v419 = vld [vmem:[%s389 + $0x74] sm:$0x1]
      %v420 = vld [vmem:[%s389 + $0x78] sm:$0xf]
      %v421 = vld [vmem:[%s389 + $0x7c] sm:$0xf]
      %v422 = vld [vmem:[%s389 + $0x80] sm:$0x1]
      %v423 = vld [vmem:[%s389 + $0x84] sm:$0xf]
      %v424 = vld [vmem:[%s389 + $0x88] sm:$0xf]
      %v425 = vld [vmem:[%s389 + $0x8c] sm:$0x1]
      %v426 = vld [vmem:[%s1] sm:$0x3]
      %vm427 = vsmask.f32 3328
      %vm428 = vsmask.f32 7440
      %vm429 = vmor %vm427, %vm428
      %v431 = vshrl.u32 %v390, 16
      %v433 = vrot.slane %v431, 4
      %v434 = vshll.u32 %v390, 16
      %v436 = vrot.slane %v434, 5
      %v437 = vor.u32 %v433, %v436
      %v438 = vrot.slane %v437, 4
      %v440 = vshll.u32 %v391, 16
      %v442 = vrot.slane %v440, 5
      %v443 = vsel %vm429, %v438, %v442
      %v444 = vshrl.u32 %v391, 16
      %v446 = vrot.slane %v444, 4
      %v447 = vor.u32 %v446, %v442
      %v448 = vrot.slane %v447, 4
      %v450 = vshll.u32 %v392, 16
      %v452 = vrot.slane %v450, 5
      %v453 = vsel %vm429, %v448, %v452
      %v455 = vshrl.u32 %v393, 16
      %v457 = vrot.slane %v455, 4
      %v458 = vshll.u32 %v393, 16
      %v460 = vrot.slane %v458, 5
      %v461 = vor.u32 %v457, %v460
      %v462 = vrot.slane %v461, 4
      %v464 = vshll.u32 %v394, 16
      %v466 = vrot.slane %v464, 5
      %v467 = vsel %vm429, %v462, %v466
      %v468 = vshrl.u32 %v394, 16
      %v470 = vrot.slane %v468, 4
      %v471 = vor.u32 %v470, %v466
      %v472 = vrot.slane %v471, 4
      %v474 = vshll.u32 %v395, 16
      %v476 = vrot.slane %v474, 5
      %v477 = vsel %vm429, %v472, %v476
      %v479 = vshrl.u32 %v396, 16
      %v481 = vrot.slane %v479, 4
      %v482 = vshll.u32 %v396, 16
      %v484 = vrot.slane %v482, 5
      %v485 = vor.u32 %v481, %v484
      %v486 = vrot.slane %v485, 4
      %v488 = vshll.u32 %v397, 16
      %v490 = vrot.slane %v488, 5
      %v491 = vsel %vm429, %v486, %v490
      %v492 = vshrl.u32 %v397, 16
      %v494 = vrot.slane %v492, 4
      %v495 = vor.u32 %v494, %v490
      %v496 = vrot.slane %v495, 4
      %v498 = vshll.u32 %v398, 16
      %v500 = vrot.slane %v498, 5
      %v501 = vsel %vm429, %v496, %v500
      %v503 = vshrl.u32 %v399, 16
      %v505 = vrot.slane %v503, 4
      %v506 = vshll.u32 %v399, 16
      %v508 = vrot.slane %v506, 5
      %v509 = vor.u32 %v505, %v508
      %v510 = vrot.slane %v509, 4
      %v512 = vshll.u32 %v400, 16
      %v514 = vrot.slane %v512, 5
      %v515 = vsel %vm429, %v510, %v514
      %v516 = vshrl.u32 %v400, 16
      %v518 = vrot.slane %v516, 4
      %v519 = vor.u32 %v518, %v514
      %v520 = vrot.slane %v519, 4
      %v522 = vshll.u32 %v401, 16
      %v524 = vrot.slane %v522, 5
      %v525 = vsel %vm429, %v520, %v524
      %v527 = vshrl.u32 %v402, 16
      %v529 = vrot.slane %v527, 4
      %v530 = vshll.u32 %v402, 16
      %v532 = vrot.slane %v530, 5
      %v533 = vor.u32 %v529, %v532
      %v534 = vrot.slane %v533, 4
      %v536 = vshll.u32 %v403, 16
      %v538 = vrot.slane %v536, 5
      %v539 = vsel %vm429, %v534, %v538
      %v540 = vshrl.u32 %v403, 16
      %v542 = vrot.slane %v540, 4
      %v543 = vor.u32 %v542, %v538
      %v544 = vrot.slane %v543, 4
      %v546 = vshll.u32 %v404, 16
      %v548 = vrot.slane %v546, 5
      %v549 = vsel %vm429, %v544, %v548
      %v551 = vshrl.u32 %v405, 16
      %v553 = vrot.slane %v551, 4
      %v554 = vshll.u32 %v405, 16
      %v556 = vrot.slane %v554, 5
      %v557 = vor.u32 %v553, %v556
      %v558 = vrot.slane %v557, 4
      %v560 = vshll.u32 %v406, 16
      %v562 = vrot.slane %v560, 5
      %v563 = vsel %vm429, %v558, %v562
      %v564 = vshrl.u32 %v406, 16
      %v566 = vrot.slane %v564, 4
      %v567 = vor.u32 %v566, %v562
      %v568 = vrot.slane %v567, 4
      %v570 = vshll.u32 %v407, 16
      %v572 = vrot.slane %v570, 5
      %v573 = vsel %vm429, %v568, %v572
      %v575 = vshrl.u32 %v408, 16
      %v577 = vrot.slane %v575, 4
      %v578 = vshll.u32 %v408, 16
      %v580 = vrot.slane %v578, 5
      %v581 = vor.u32 %v577, %v580
      %v582 = vrot.slane %v581, 4
      %v584 = vshll.u32 %v409, 16
      %v586 = vrot.slane %v584, 5
      %v587 = vsel %vm429, %v582, %v586
      %v588 = vshrl.u32 %v409, 16
      %v590 = vrot.slane %v588, 4
      %v591 = vor.u32 %v590, %v586
      %v592 = vrot.slane %v591, 4
      %v594 = vshll.u32 %v410, 16
      %v596 = vrot.slane %v594, 5
      %v597 = vsel %vm429, %v592, %v596
      %v599 = vshrl.u32 %v411, 16
      %v601 = vrot.slane %v599, 4
      %v602 = vshll.u32 %v411, 16
      %v604 = vrot.slane %v602, 5
      %v605 = vor.u32 %v601, %v604
      %v606 = vrot.slane %v605, 4
      %v608 = vshll.u32 %v412, 16
      %v610 = vrot.slane %v608, 5
      %v611 = vsel %vm429, %v606, %v610
      %v612 = vshrl.u32 %v412, 16
      %v614 = vrot.slane %v612, 4
      %v615 = vor.u32 %v614, %v610
      %v616 = vrot.slane %v615, 4
      %v618 = vshll.u32 %v413, 16
      %v620 = vrot.slane %v618, 5
      %v621 = vsel %vm429, %v616, %v620
      %v623 = vshrl.u32 %v414, 16
      %v625 = vrot.slane %v623, 4
      %v626 = vshll.u32 %v414, 16
      %v628 = vrot.slane %v626, 5
      %v629 = vor.u32 %v625, %v628
      %v630 = vrot.slane %v629, 4
      %v632 = vshll.u32 %v415, 16
      %v634 = vrot.slane %v632, 5
      %v635 = vsel %vm429, %v630, %v634
      %v636 = vshrl.u32 %v415, 16
      %v638 = vrot.slane %v636, 4
      %v639 = vor.u32 %v638, %v634
      %v640 = vrot.slane %v639, 4
      %v642 = vshll.u32 %v416, 16
      %v644 = vrot.slane %v642, 5
      %v645 = vsel %vm429, %v640, %v644
      %v647 = vshrl.u32 %v417, 16
      %v649 = vrot.slane %v647, 4
      %v650 = vshll.u32 %v417, 16
      %v652 = vrot.slane %v650, 5
      %v653 = vor.u32 %v649, %v652
      %v654 = vrot.slane %v653, 4
      %v656 = vshll.u32 %v418, 16
      %v658 = vrot.slane %v656, 5
      %v659 = vsel %vm429, %v654, %v658
      %v660 = vshrl.u32 %v418, 16
      %v662 = vrot.slane %v660, 4
      %v663 = vor.u32 %v662, %v658
      %v664 = vrot.slane %v663, 4
      %v666 = vshll.u32 %v419, 16
      %v668 = vrot.slane %v666, 5
      %v669 = vsel %vm429, %v664, %v668
      %s670 = scalar_lea.vmem %s1, 2
      %v671 = vld [vmem:[%s670] sm:$0x3]
      %v672 = vunpack.c.l.b16 %v443
      %v673 = vunpack.c.l.b16 %v453
      %v674 = vunpack.c.l.b16 %v467
      %v675 = vunpack.c.l.b16 %v477
      %v676 = vunpack.c.l.b16 %v491
      %v677 = vunpack.c.l.b16 %v501
      %v678 = vunpack.c.l.b16 %v515
      %v679 = vunpack.c.l.b16 %v525
      %v680 = vunpack.c.l.b16 %v539
      %v681 = vunpack.c.l.b16 %v549
      %v682 = vunpack.c.l.b16 %v563
      %v683 = vunpack.c.l.b16 %v573
      %v684 = vunpack.c.l.b16 %v587
      %v685 = vunpack.c.l.b16 %v597
      %v686 = vunpack.c.l.b16 %v611
      %v687 = vunpack.c.l.b16 %v621
      %v688 = vunpack.c.l.b16 %v635
      %v689 = vunpack.c.l.b16 %v645
      %v690 = vunpack.c.l.b16 %v659
      %v691 = vunpack.c.l.b16 %v669
      %v692 = vpack.c.b16 %v673, %v672
      %v693 = vpack.c.b16 %v675, %v674
      %v694 = vpack.c.b16 %v677, %v676
      %v695 = vpack.c.b16 %v679, %v678
      %v696 = vpack.c.b16 %v681, %v680
      %v697 = vpack.c.b16 %v683, %v682
      %v698 = vpack.c.b16 %v685, %v684
      %v699 = vpack.c.b16 %v687, %v686
      %v700 = vpack.c.b16 %v689, %v688
      %v701 = vpack.c.b16 %v691, %v690
      %vm702 = vcmask 31744
      %v704 = vsel %vm702, %v692, 0
      %v707 = vsel %vm702, %v693, 0
      %v710 = vsel %vm702, %v694, 0
      %v713 = vsel %vm702, %v695, 0
      %v716 = vsel %vm702, %v696, 0
      %v719 = vsel %vm702, %v697, 0
      %v722 = vsel %vm702, %v698, 0
      %v725 = vsel %vm702, %v699, 0
      %v728 = vsel %vm702, %v700, 0
      %v731 = vsel %vm702, %v701, 0
      %vm733 = vcmask 1041408
      %v735 = vsel %vm733, %v671, 0
      %737 = vmatprep.subr.bf16.mxu0 0
      %738 = vmatpush1.bf16.msra.mxu0 %v735
      %739 = vmatprep.subr.bf16.mxu0 0
      %740 = vmatpush1.bf16.msra.mxu0 0
      %741 = vmatprep.subr.bf16.mxu0 0
      %742 = vmatpush1.bf16.msra.mxu0 0
      %743 = vmatprep.subr.bf16.mxu0 0
      %744 = vmatpush1.bf16.msra.mxu0 0
      %745 = vmatprep.subr.bf16.mxu0 0
      %746 = vmatpush1.bf16.msra.mxu0 0
      %747 = vmatprep.subr.bf16.mxu0 0
      %748 = vmatpush1.bf16.msra.mxu0 0
      %749 = vmatprep.subr.bf16.mxu0 0
      %750 = vmatpush1.bf16.msra.mxu0 0
      %751 = vmatprep.subr.bf16.mxu0 0
      %752 = vmatpush1.bf16.msra.mxu0 0
      %753 = vmatprep.subr.bf16.mxu0 0
      %754 = vmatpush1.bf16.msra.mxu0 0
      %755 = vmatprep.subr.bf16.mxu0 0
      %756 = vmatpush1.bf16.msra.mxu0 0
      %757 = vmatprep.subr.bf16.mxu0 0
      %758 = vmatpush1.bf16.msra.mxu0 0
      %759 = vmatprep.subr.bf16.mxu0 0
      %760 = vmatpush1.bf16.msra.mxu0 0
      %761 = vmatprep.subr.bf16.mxu0 0
      %762 = vmatpush1.bf16.msra.mxu0 0
      %763 = vmatprep.subr.bf16.mxu0 0
      %764 = vmatpush1.bf16.msra.mxu0 0
      %765 = vmatprep.subr.bf16.mxu0 0
      %766 = vmatpush1.bf16.msra.mxu0 0
      %767 = vmatprep.subr.bf16.mxu0 0
      %768 = vmatpush1.bf16.msra.mxu0 0
      %769 = vmatprep.mubr.bf16.mxu0 0
      %770 = vmatmul.mubr.bf16.gmra.mrb[0].mxu0 %v704
      %v771 = vpop.f32.mrb[0].mxu0
      %v772 = vadd.f32 0.0, %v771
      %v773 = vpop.f32.mrb[0].mxu0
      %v774 = vpop.f32.mrb[0].mxu0
      %v775 = vadd.f32 0.0, %v774
      %v776 = vpop.f32.mrb[0].mxu0
      %777 = vmatprep.mubr.bf16.mxu0 0
      %778 = vmatmul.mubr.bf16.gmra.mrb[0].mxu0 %v707
      %v779 = vpop.f32.mrb[0].mxu0
      %v780 = vadd.f32 0.0, %v779
      %v781 = vpop.f32.mrb[0].mxu0
      %v782 = vpop.f32.mrb[0].mxu0
      %v783 = vadd.f32 0.0, %v782
      %v784 = vpop.f32.mrb[0].mxu0
      %785 = vmatprep.mubr.bf16.mxu0 0
      %786 = vmatmul.mubr.bf16.gmra.mrb[0].mxu0 %v710
      %v787 = vpop.f32.mrb[0].mxu0
      %v788 = vadd.f32 0.0, %v787
      %v789 = vpop.f32.mrb[0].mxu0
      %v790 = vpop.f32.mrb[0].mxu0
      %v791 = vadd.f32 0.0, %v790
      %v792 = vpop.f32.mrb[0].mxu0
      %793 = vmatprep.mubr.bf16.mxu0 0
      %794 = vmatmul.mubr.bf16.gmra.mrb[0].mxu0 %v713
      %v795 = vpop.f32.mrb[0].mxu0
      %v796 = vadd.f32 0.0, %v795
      %v797 = vpop.f32.mrb[0].mxu0
      %v798 = vpop.f32.mrb[0].mxu0
      %v799 = vadd.f32 0.0, %v798
      %v800 = vpop.f32.mrb[0].mxu0
      %801 = vmatprep.mubr.bf16.mxu0 0
      %802 = vmatmul.mubr.bf16.gmra.mrb[0].mxu0 %v716
      %v803 = vpop.f32.mrb[0].mxu0
      %v804 = vadd.f32 0.0, %v803
      %v805 = vpop.f32.mrb[0].mxu0
      %v806 = vpop.f32.mrb[0].mxu0
      %v807 = vadd.f32 0.0, %v806
      %v808 = vpop.f32.mrb[0].mxu0
      %809 = vmatprep.mubr.bf16.mxu0 0
      %810 = vmatmul.mubr.bf16.gmra.mrb[0].mxu0 %v719
      %v811 = vpop.f32.mrb[0].mxu0
      %v812 = vadd.f32 0.0, %v811
      %v813 = vpop.f32.mrb[0].mxu0
      %v814 = vpop.f32.mrb[0].mxu0
      %v815 = vadd.f32 0.0, %v814
      %v816 = vpop.f32.mrb[0].mxu0
      %817 = vmatprep.mubr.bf16.mxu0 0
      %818 = vmatmul.mubr.bf16.gmra.mrb[0].mxu0 %v722
      %v819 = vpop.f32.mrb[0].mxu0
      %v820 = vadd.f32 0.0, %v819
      %v821 = vpop.f32.mrb[0].mxu0
      %v822 = vpop.f32.mrb[0].mxu0
      %v823 = vadd.f32 0.0, %v822
      %v824 = vpop.f32.mrb[0].mxu0
      %825 = vmatprep.mubr.bf16.mxu0 0
      %826 = vmatmul.mubr.bf16.gmra.mrb[0].mxu0 %v725
      %v827 = vpop.f32.mrb[0].mxu0
      %v828 = vadd.f32 0.0, %v827
      %v829 = vpop.f32.mrb[0].mxu0
      %v830 = vpop.f32.mrb[0].mxu0
      %v831 = vadd.f32 0.0, %v830
      %v832 = vpop.f32.mrb[0].mxu0
      %833 = vmatprep.mubr.bf16.mxu0 0
      %834 = vmatmul.mubr.bf16.gmra.mrb[0].mxu0 %v728
      %v835 = vpop.f32.mrb[0].mxu0
      %v836 = vadd.f32 0.0, %v835
      %v837 = vpop.f32.mrb[0].mxu0
      %v838 = vpop.f32.mrb[0].mxu0
      %v839 = vadd.f32 0.0, %v838
      %v840 = vpop.f32.mrb[0].mxu0
      %841 = vmatprep.mubr.bf16.mxu0 0
      %842 = vmatmul.mubr.bf16.gmra.mrb[0].mxu0 %v731
      %v843 = vpop.f32.mrb[0].mxu0
      %v844 = vadd.f32 0.0, %v843
      %v845 = vpop.f32.mrb[0].mxu0
      %v846 = vpop.f32.mrb[0].mxu0
      %v847 = vadd.f32 0.0, %v846
      %v848 = vpop.f32.mrb[0].mxu0
      %849 = vdwg.mxu0
      %v870 = vunpack.c.l.b16 %v390
      %v871 = vunpack.c.l.b16 %v391
      %v872 = vunpack.c.l.b16 %v393
      %v873 = vunpack.c.l.b16 %v394
      %v874 = vunpack.c.l.b16 %v396
      %v875 = vunpack.c.l.b16 %v397
      %v876 = vunpack.c.l.b16 %v399
      %v877 = vunpack.c.l.b16 %v400
      %v878 = vunpack.c.l.b16 %v402
      %v879 = vunpack.c.l.b16 %v403
      %v880 = vunpack.c.l.b16 %v405
      %v881 = vunpack.c.l.b16 %v406
      %v882 = vunpack.c.l.b16 %v408
      %v883 = vunpack.c.l.b16 %v409
      %v884 = vunpack.c.l.b16 %v411
      %v885 = vunpack.c.l.b16 %v412
      %v886 = vunpack.c.l.b16 %v414
      %v887 = vunpack.c.l.b16 %v415
      %v888 = vunpack.c.l.b16 %v417
      %v889 = vunpack.c.l.b16 %v418
      %v890 = vpack.c.b16 %v871, %v870
      %v891 = vpack.c.b16 %v873, %v872
      %v892 = vpack.c.b16 %v875, %v874
      %v893 = vpack.c.b16 %v877, %v876
      %v894 = vpack.c.b16 %v879, %v878
      %v895 = vpack.c.b16 %v881, %v880
      %v896 = vpack.c.b16 %v883, %v882
      %v897 = vpack.c.b16 %v885, %v884
      %v898 = vpack.c.b16 %v887, %v886
      %v899 = vpack.c.b16 %v889, %v888
      %v901 = vsel %vm702, %v890, 0
      %v904 = vsel %vm702, %v891, 0
      %v907 = vsel %vm702, %v892, 0
      %v910 = vsel %vm702, %v893, 0
      %v913 = vsel %vm702, %v894, 0
      %v916 = vsel %vm702, %v895, 0
      %v919 = vsel %vm702, %v896, 0
      %v922 = vsel %vm702, %v897, 0
      %v925 = vsel %vm702, %v898, 0
      %v928 = vsel %vm702, %v899, 0
      %v931 = vsel %vm733, %v426, 0
      %933 = vmatprep.subr.bf16.mxu0 0
      %934 = vmatpush1.bf16.msra.mxu0 %v931
      %935 = vmatprep.subr.bf16.mxu0 0
      %936 = vmatpush1.bf16.msra.mxu0 0
      %937 = vmatprep.subr.bf16.mxu0 0
      %938 = vmatpush1.bf16.msra.mxu0 0
      %939 = vmatprep.subr.bf16.mxu0 0
      %940 = vmatpush1.bf16.msra.mxu0 0
      %941 = vmatprep.subr.bf16.mxu0 0
      %942 = vmatpush1.bf16.msra.mxu0 0
      %943 = vmatprep.subr.bf16.mxu0 0
      %944 = vmatpush1.bf16.msra.mxu0 0
      %945 = vmatprep.subr.bf16.mxu0 0
      %946 = vmatpush1.bf16.msra.mxu0 0
      %947 = vmatprep.subr.bf16.mxu0 0
      %948 = vmatpush1.bf16.msra.mxu0 0
      %949 = vmatprep.subr.bf16.mxu0 0
      %950 = vmatpush1.bf16.msra.mxu0 0
      %951 = vmatprep.subr.bf16.mxu0 0
      %952 = vmatpush1.bf16.msra.mxu0 0
      %953 = vmatprep.subr.bf16.mxu0 0
      %954 = vmatpush1.bf16.msra.mxu0 0
      %955 = vmatprep.subr.bf16.mxu0 0
      %956 = vmatpush1.bf16.msra.mxu0 0
      %957 = vmatprep.subr.bf16.mxu0 0
      %958 = vmatpush1.bf16.msra.mxu0 0
      %959 = vmatprep.subr.bf16.mxu0 0
      %960 = vmatpush1.bf16.msra.mxu0 0
      %961 = vmatprep.subr.bf16.mxu0 0
      %962 = vmatpush1.bf16.msra.mxu0 0
      %963 = vmatprep.subr.bf16.mxu0 0
      %964 = vmatpush1.bf16.msra.mxu0 0
      %965 = vmatprep.mubr.bf16.mxu0 0
      %966 = vmatmul.mubr.bf16.gmra.mrb[0].mxu0 %v901
      %v967 = vpop.f32.mrb[0].mxu0
      %v968 = vadd.f32 %v772, %v967
      %v969 = vpop.f32.mrb[0].mxu0
      %v970 = vpop.f32.mrb[0].mxu0
      %v971 = vadd.f32 %v775, %v970
      %v972 = vpop.f32.mrb[0].mxu0
      %973 = vmatprep.mubr.bf16.mxu0 0
      %974 = vmatmul.mubr.bf16.gmra.mrb[0].mxu0 %v904
      %v975 = vpop.f32.mrb[0].mxu0
      %v976 = vadd.f32 %v780, %v975
      %v977 = vpop.f32.mrb[0].mxu0
      %v978 = vpop.f32.mrb[0].mxu0
      %v979 = vadd.f32 %v783, %v978
      %v980 = vpop.f32.mrb[0].mxu0
      %981 = vmatprep.mubr.bf16.mxu0 0
      %982 = vmatmul.mubr.bf16.gmra.mrb[0].mxu0 %v907
      %v983 = vpop.f32.mrb[0].mxu0
      %v984 = vadd.f32 %v788, %v983
      %v985 = vpop.f32.mrb[0].mxu0
      %v986 = vpop.f32.mrb[0].mxu0
      %v987 = vadd.f32 %v791, %v986
      %v988 = vpop.f32.mrb[0].mxu0
      %989 = vmatprep.mubr.bf16.mxu0 0
      %990 = vmatmul.mubr.bf16.gmra.mrb[0].mxu0 %v910
      %v991 = vpop.f32.mrb[0].mxu0
      %v992 = vadd.f32 %v796, %v991
      %v993 = vpop.f32.mrb[0].mxu0
      %v994 = vpop.f32.mrb[0].mxu0
      %v995 = vadd.f32 %v799, %v994
      %v996 = vpop.f32.mrb[0].mxu0
      %997 = vmatprep.mubr.bf16.mxu0 0
      %998 = vmatmul.mubr.bf16.gmra.mrb[0].mxu0 %v913
      %v999 = vpop.f32.mrb[0].mxu0
      %v1000 = vadd.f32 %v804, %v999
      %v1001 = vpop.f32.mrb[0].mxu0
      %v1002 = vpop.f32.mrb[0].mxu0
      %v1003 = vadd.f32 %v807, %v1002
      %v1004 = vpop.f32.mrb[0].mxu0
      %1005 = vmatprep.mubr.bf16.mxu0 0
      %1006 = vmatmul.mubr.bf16.gmra.mrb[0].mxu0 %v916
      %v1007 = vpop.f32.mrb[0].mxu0
      %v1008 = vadd.f32 %v812, %v1007
      %v1009 = vpop.f32.mrb[0].mxu0
      %v1010 = vpop.f32.mrb[0].mxu0
      %v1011 = vadd.f32 %v815, %v1010
      %v1012 = vpop.f32.mrb[0].mxu0
      %1013 = vmatprep.mubr.bf16.mxu0 0
      %1014 = vmatmul.mubr.bf16.gmra.mrb[0].mxu0 %v919
      %v1015 = vpop.f32.mrb[0].mxu0
      %v1016 = vadd.f32 %v820, %v1015
      %v1017 = vpop.f32.mrb[0].mxu0
      %v1018 = vpop.f32.mrb[0].mxu0
      %v1019 = vadd.f32 %v823, %v1018
      %v1020 = vpop.f32.mrb[0].mxu0
      %1021 = vmatprep.mubr.bf16.mxu0 0
      %1022 = vmatmul.mubr.bf16.gmra.mrb[0].mxu0 %v922
      %v1023 = vpop.f32.mrb[0].mxu0
      %v1024 = vadd.f32 %v828, %v1023
      %v1025 = vpop.f32.mrb[0].mxu0
      %v1026 = vpop.f32.mrb[0].mxu0
      %v1027 = vadd.f32 %v831, %v1026
      %v1028 = vpop.f32.mrb[0].mxu0
      %1029 = vmatprep.mubr.bf16.mxu0 0
      %1030 = vmatmul.mubr.bf16.gmra.mrb[0].mxu0 %v925
      %v1031 = vpop.f32.mrb[0].mxu0
      %v1032 = vadd.f32 %v836, %v1031
      %v1033 = vpop.f32.mrb[0].mxu0
      %v1034 = vpop.f32.mrb[0].mxu0
      %v1035 = vadd.f32 %v839, %v1034
      %v1036 = vpop.f32.mrb[0].mxu0
      %1037 = vmatprep.mubr.bf16.mxu0 0
      %1038 = vmatmul.mubr.bf16.gmra.mrb[0].mxu0 %v928
      %v1039 = vpop.f32.mrb[0].mxu0
      %v1040 = vadd.f32 %v844, %v1039
      %v1041 = vpop.f32.mrb[0].mxu0
      %v1042 = vpop.f32.mrb[0].mxu0
      %v1043 = vadd.f32 %v847, %v1042
      %v1044 = vpop.f32.mrb[0].mxu0
      %1045 = vdwg.mxu0
      %vm1056 = vcmask 1042432
      %vm1057 = vcmask 1046532
      %vm1058 = vmor %vm1056, %vm1057
      %v1059 = vrot.slane %v390, 5
      %v1060 = vrot.slane %v1059, 4
      %v1061 = vrot.slane %v391, 5
      %v1062 = vsel %vm1058, %v1060, %v1061
      %v1063 = vrot.slane %v1061, 4
      %v1064 = vrot.slane %v392, 5
      %v1065 = vsel %vm1058, %v1063, %v1064
      %v1066 = vrot.slane %v393, 5
      %v1067 = vrot.slane %v1066, 4
      %v1068 = vrot.slane %v394, 5
      %v1069 = vsel %vm1058, %v1067, %v1068
      %v1070 = vrot.slane %v1068, 4
      %v1071 = vrot.slane %v395, 5
      %v1072 = vsel %vm1058, %v1070, %v1071
      %v1073 = vrot.slane %v396, 5
      %v1074 = vrot.slane %v1073, 4
      %v1075 = vrot.slane %v397, 5
      %v1076 = vsel %vm1058, %v1074, %v1075
      %v1077 = vrot.slane %v1075, 4
      %v1078 = vrot.slane %v398, 5
      %v1079 = vsel %vm1058, %v1077, %v1078
      %v1080 = vrot.slane %v399, 5
      %v1081 = vrot.slane %v1080, 4
      %v1082 = vrot.slane %v400, 5
      %v1083 = vsel %vm1058, %v1081, %v1082
      %v1084 = vrot.slane %v1082, 4
      %v1085 = vrot.slane %v401, 5
      %v1086 = vsel %vm1058, %v1084, %v1085
      %v1087 = vrot.slane %v402, 5
      %v1088 = vrot.slane %v1087, 4
      %v1089 = vrot.slane %v403, 5
      %v1090 = vsel %vm1058, %v1088, %v1089
      %v1091 = vrot.slane %v1089, 4
      %v1092 = vrot.slane %v404, 5
      %v1093 = vsel %vm1058, %v1091, %v1092
      %v1094 = vrot.slane %v405, 5
      %v1095 = vrot.slane %v1094, 4
      %v1096 = vrot.slane %v406, 5
      %v1097 = vsel %vm1058, %v1095, %v1096
      %v1098 = vrot.slane %v1096, 4
      %v1099 = vrot.slane %v407, 5
      %v1100 = vsel %vm1058, %v1098, %v1099
      %v1101 = vrot.slane %v408, 5
      %v1102 = vrot.slane %v1101, 4
      %v1103 = vrot.slane %v409, 5
      %v1104 = vsel %vm1058, %v1102, %v1103
      %v1105 = vrot.slane %v1103, 4
      %v1106 = vrot.slane %v410, 5
      %v1107 = vsel %vm1058, %v1105, %v1106
      %v1108 = vrot.slane %v411, 5
      %v1109 = vrot.slane %v1108, 4
      %v1110 = vrot.slane %v412, 5
      %v1111 = vsel %vm1058, %v1109, %v1110
      %v1112 = vrot.slane %v1110, 4
      %v1113 = vrot.slane %v413, 5
      %v1114 = vsel %vm1058, %v1112, %v1113
      %v1115 = vrot.slane %v414, 5
      %v1116 = vrot.slane %v1115, 4
      %v1117 = vrot.slane %v415, 5
      %v1118 = vsel %vm1058, %v1116, %v1117
      %v1119 = vrot.slane %v1117, 4
      %v1120 = vrot.slane %v416, 5
      %v1121 = vsel %vm1058, %v1119, %v1120
      %v1122 = vrot.slane %v417, 5
      %v1123 = vrot.slane %v1122, 4
      %v1124 = vrot.slane %v418, 5
      %v1125 = vsel %vm1058, %v1123, %v1124
      %v1126 = vrot.slane %v1124, 4
      %v1127 = vrot.slane %v419, 5
      %v1128 = vsel %vm1058, %v1126, %v1127
      %s1129 = scalar_lea.vmem %s1, 4
      %v1130 = vld [vmem:[%s1129] sm:$0x3]
      %v1131 = vunpack.c.l.b16 %v1062
      %v1132 = vunpack.c.l.b16 %v1065
      %v1133 = vunpack.c.l.b16 %v1069
      %v1134 = vunpack.c.l.b16 %v1072
      %v1135 = vunpack.c.l.b16 %v1076
      %v1136 = vunpack.c.l.b16 %v1079
      %v1137 = vunpack.c.l.b16 %v1083
      %v1138 = vunpack.c.l.b16 %v1086
      %v1139 = vunpack.c.l.b16 %v1090
      %v1140 = vunpack.c.l.b16 %v1093
      %v1141 = vunpack.c.l.b16 %v1097
      %v1142 = vunpack.c.l.b16 %v1100
      %v1143 = vunpack.c.l.b16 %v1104
      %v1144 = vunpack.c.l.b16 %v1107
      %v1145 = vunpack.c.l.b16 %v1111
      %v1146 = vunpack.c.l.b16 %v1114
      %v1147 = vunpack.c.l.b16 %v1118
      %v1148 = vunpack.c.l.b16 %v1121
      %v1149 = vunpack.c.l.b16 %v1125
      %v1150 = vunpack.c.l.b16 %v1128
      %v1151 = vpack.c.b16 %v1132, %v1131
      %v1152 = vpack.c.b16 %v1134, %v1133
      %v1153 = vpack.c.b16 %v1136, %v1135
      %v1154 = vpack.c.b16 %v1138, %v1137
      %v1155 = vpack.c.b16 %v1140, %v1139
      %v1156 = vpack.c.b16 %v1142, %v1141
      %v1157 = vpack.c.b16 %v1144, %v1143
      %v1158 = vpack.c.b16 %v1146, %v1145
      %v1159 = vpack.c.b16 %v1148, %v1147
      %v1160 = vpack.c.b16 %v1150, %v1149
      %v1162 = vsel %vm702, %v1151, 0
      %v1165 = vsel %vm702, %v1152, 0
      %v1168 = vsel %vm702, %v1153, 0
      %v1171 = vsel %vm702, %v1154, 0
      %v1174 = vsel %vm702, %v1155, 0
      %v1177 = vsel %vm702, %v1156, 0
      %v1180 = vsel %vm702, %v1157, 0
      %v1183 = vsel %vm702, %v1158, 0
      %v1186 = vsel %vm702, %v1159, 0
      %v1189 = vsel %vm702, %v1160, 0
      %v1192 = vsel %vm733, %v1130, 0
      %1194 = vmatprep.subr.bf16.mxu0 0
      %1195 = vmatpush1.bf16.msra.mxu0 %v1192
      %1196 = vmatprep.subr.bf16.mxu0 0
      %1197 = vmatpush1.bf16.msra.mxu0 0
      %1198 = vmatprep.subr.bf16.mxu0 0
      %1199 = vmatpush1.bf16.msra.mxu0 0
      %1200 = vmatprep.subr.bf16.mxu0 0
      %1201 = vmatpush1.bf16.msra.mxu0 0
      %1202 = vmatprep.subr.bf16.mxu0 0
      %1203 = vmatpush1.bf16.msra.mxu0 0
      %1204 = vmatprep.subr.bf16.mxu0 0
      %1205 = vmatpush1.bf16.msra.mxu0 0
      %1206 = vmatprep.subr.bf16.mxu0 0
      %1207 = vmatpush1.bf16.msra.mxu0 0
      %1208 = vmatprep.subr.bf16.mxu0 0
      %1209 = vmatpush1.bf16.msra.mxu0 0
      %1210 = vmatprep.subr.bf16.mxu0 0
      %1211 = vmatpush1.bf16.msra.mxu0 0
      %1212 = vmatprep.subr.bf16.mxu0 0
      %1213 = vmatpush1.bf16.msra.mxu0 0
      %1214 = vmatprep.subr.bf16.mxu0 0
      %1215 = vmatpush1.bf16.msra.mxu0 0
      %1216 = vmatprep.subr.bf16.mxu0 0
      %1217 = vmatpush1.bf16.msra.mxu0 0
      %1218 = vmatprep.subr.bf16.mxu0 0
      %1219 = vmatpush1.bf16.msra.mxu0 0
      %1220 = vmatprep.subr.bf16.mxu0 0
      %1221 = vmatpush1.bf16.msra.mxu0 0
      %1222 = vmatprep.subr.bf16.mxu0 0
      %1223 = vmatpush1.bf16.msra.mxu0 0
      %1224 = vmatprep.subr.bf16.mxu0 0
      %1225 = vmatpush1.bf16.msra.mxu0 0
      %1226 = vmatprep.mubr.bf16.mxu0 0
      %1227 = vmatmul.mubr.bf16.gmra.mrb[0].mxu0 %v1162
      %v1228 = vpop.f32.mrb[0].mxu0
      %v1229 = vadd.f32 0.0, %v1228
      %v1230 = vpop.f32.mrb[0].mxu0
      %v1231 = vpop.f32.mrb[0].mxu0
      %v1232 = vadd.f32 0.0, %v1231
      %v1233 = vpop.f32.mrb[0].mxu0
      %1234 = vmatprep.mubr.bf16.mxu0 0
      %1235 = vmatmul.mubr.bf16.gmra.mrb[0].mxu0 %v1165
      %v1236 = vpop.f32.mrb[0].mxu0
      %v1237 = vadd.f32 0.0, %v1236
      %v1238 = vpop.f32.mrb[0].mxu0
      %v1239 = vpop.f32.mrb[0].mxu0
      %v1240 = vadd.f32 0.0, %v1239
      %v1241 = vpop.f32.mrb[0].mxu0
      %1242 = vmatprep.mubr.bf16.mxu0 0
      %1243 = vmatmul.mubr.bf16.gmra.mrb[0].mxu0 %v1168
      %v1244 = vpop.f32.mrb[0].mxu0
      %v1245 = vadd.f32 0.0, %v1244
      %v1246 = vpop.f32.mrb[0].mxu0
      %v1247 = vpop.f32.mrb[0].mxu0
      %v1248 = vadd.f32 0.0, %v1247
      %v1249 = vpop.f32.mrb[0].mxu0
      %1250 = vmatprep.mubr.bf16.mxu0 0
      %1251 = vmatmul.mubr.bf16.gmra.mrb[0].mxu0 %v1171
      %v1252 = vpop.f32.mrb[0].mxu0
      %v1253 = vadd.f32 0.0, %v1252
      %v1254 = vpop.f32.mrb[0].mxu0
      %v1255 = vpop.f32.mrb[0].mxu0
      %v1256 = vadd.f32 0.0, %v1255
      %v1257 = vpop.f32.mrb[0].mxu0
      %1258 = vmatprep.mubr.bf16.mxu0 0
      %1259 = vmatmul.mubr.bf16.gmra.mrb[0].mxu0 %v1174
      %v1260 = vpop.f32.mrb[0].mxu0
      %v1261 = vadd.f32 0.0, %v1260
      %v1262 = vpop.f32.mrb[0].mxu0
      %v1263 = vpop.f32.mrb[0].mxu0
      %v1264 = vadd.f32 0.0, %v1263
      %v1265 = vpop.f32.mrb[0].mxu0
      %1266 = vmatprep.mubr.bf16.mxu0 0
      %1267 = vmatmul.mubr.bf16.gmra.mrb[0].mxu0 %v1177
      %v1268 = vpop.f32.mrb[0].mxu0
      %v1269 = vadd.f32 0.0, %v1268
      %v1270 = vpop.f32.mrb[0].mxu0
      %v1271 = vpop.f32.mrb[0].mxu0
      %v1272 = vadd.f32 0.0, %v1271
      %v1273 = vpop.f32.mrb[0].mxu0
      %1274 = vmatprep.mubr.bf16.mxu0 0
      %1275 = vmatmul.mubr.bf16.gmra.mrb[0].mxu0 %v1180
      %v1276 = vpop.f32.mrb[0].mxu0
      %v1277 = vadd.f32 0.0, %v1276
      %v1278 = vpop.f32.mrb[0].mxu0
      %v1279 = vpop.f32.mrb[0].mxu0
      %v1280 = vadd.f32 0.0, %v1279
      %v1281 = vpop.f32.mrb[0].mxu0
      %1282 = vmatprep.mubr.bf16.mxu0 0
      %1283 = vmatmul.mubr.bf16.gmra.mrb[0].mxu0 %v1183
      %v1284 = vpop.f32.mrb[0].mxu0
      %v1285 = vadd.f32 0.0, %v1284
      %v1286 = vpop.f32.mrb[0].mxu0
      %v1287 = vpop.f32.mrb[0].mxu0
      %v1288 = vadd.f32 0.0, %v1287
      %v1289 = vpop.f32.mrb[0].mxu0
      %1290 = vmatprep.mubr.bf16.mxu0 0
      %1291 = vmatmul.mubr.bf16.gmra.mrb[0].mxu0 %v1186
      %v1292 = vpop.f32.mrb[0].mxu0
      %v1293 = vadd.f32 0.0, %v1292
      %v1294 = vpop.f32.mrb[0].mxu0
      %v1295 = vpop.f32.mrb[0].mxu0
      %v1296 = vadd.f32 0.0, %v1295
      %v1297 = vpop.f32.mrb[0].mxu0
      %1298 = vmatprep.mubr.bf16.mxu0 0
      %1299 = vmatmul.mubr.bf16.gmra.mrb[0].mxu0 %v1189
      %v1300 = vpop.f32.mrb[0].mxu0
      %v1301 = vadd.f32 0.0, %v1300
      %v1302 = vpop.f32.mrb[0].mxu0
      %v1303 = vpop.f32.mrb[0].mxu0
      %v1304 = vadd.f32 0.0, %v1303
      %v1305 = vpop.f32.mrb[0].mxu0
      %1306 = vdwg.mxu0
      %v1307 = vadd.f32 %v968, %v1229
      %v1308 = vadd.f32 %v971, %v1232
      %v1309 = vadd.f32 %v976, %v1237
      %v1310 = vadd.f32 %v979, %v1240
      %v1311 = vadd.f32 %v984, %v1245
      %v1312 = vadd.f32 %v987, %v1248
      %v1313 = vadd.f32 %v992, %v1253
      %v1314 = vadd.f32 %v995, %v1256
      %v1315 = vadd.f32 %v1000, %v1261
      %v1316 = vadd.f32 %v1003, %v1264
      %v1317 = vadd.f32 %v1008, %v1269
      %v1318 = vadd.f32 %v1011, %v1272
      %v1319 = vadd.f32 %v1016, %v1277
      %v1320 = vadd.f32 %v1019, %v1280
      %v1321 = vadd.f32 %v1024, %v1285
      %v1322 = vadd.f32 %v1027, %v1288
      %v1323 = vadd.f32 %v1032, %v1293
      %v1324 = vadd.f32 %v1035, %v1296
      %v1325 = vadd.f32 %v1040, %v1301
      %v1326 = vadd.f32 %v1043, %v1304
      %s1327 = scalar_lea.vmem %s1, 6
      %v1328 = vld [vmem:[%s1327] sm:$0x3]
      %v1331 = vunpack.c.l.b16 %v420
      %v1332 = vunpack.c.l.b16 %v421
      %v1333 = vpack.c.b16 %v1332, %v1331
      %v1335 = vsel %vm702, %v1333, 0
      %v1338 = vsel %vm733, %v1328, 0
      %1340 = vmatprep.subr.bf16.mxu0 0
      %1341 = vmatpush1.bf16.msra.mxu0 %v1338
      %1342 = vmatprep.subr.bf16.mxu0 0
      %1343 = vmatpush1.bf16.msra.mxu0 0
      %1344 = vmatprep.subr.bf16.mxu0 0
      %1345 = vmatpush1.bf16.msra.mxu0 0
      %1346 = vmatprep.subr.bf16.mxu0 0
      %1347 = vmatpush1.bf16.msra.mxu0 0
      %1348 = vmatprep.subr.bf16.mxu0 0
      %1349 = vmatpush1.bf16.msra.mxu0 0
      %1350 = vmatprep.subr.bf16.mxu0 0
      %1351 = vmatpush1.bf16.msra.mxu0 0
      %1352 = vmatprep.subr.bf16.mxu0 0
      %1353 = vmatpush1.bf16.msra.mxu0 0
      %1354 = vmatprep.subr.bf16.mxu0 0
      %1355 = vmatpush1.bf16.msra.mxu0 0
      %1356 = vmatprep.subr.bf16.mxu0 0
      %1357 = vmatpush1.bf16.msra.mxu0 0
      %1358 = vmatprep.subr.bf16.mxu0 0
      %1359 = vmatpush1.bf16.msra.mxu0 0
      %1360 = vmatprep.subr.bf16.mxu0 0
      %1361 = vmatpush1.bf16.msra.mxu0 0
      %1362 = vmatprep.subr.bf16.mxu0 0
      %1363 = vmatpush1.bf16.msra.mxu0 0
      %1364 = vmatprep.subr.bf16.mxu0 0
      %1365 = vmatpush1.bf16.msra.mxu0 0
      %1366 = vmatprep.subr.bf16.mxu0 0
      %1367 = vmatpush1.bf16.msra.mxu0 0
      %1368 = vmatprep.subr.bf16.mxu0 0
      %1369 = vmatpush1.bf16.msra.mxu0 0
      %1370 = vmatprep.subr.bf16.mxu0 0
      %1371 = vmatpush1.bf16.msra.mxu0 0
      %1372 = vmatprep.mubr.bf16.mxu0 0
      %1373 = vmatmul.mubr.bf16.gmra.mrb[0].mxu0 %v904
      %v1374 = vpop.f32.mrb[0].mxu0
      %v1375 = vadd.f32 0.0, %v1374
      %v1376 = vpop.f32.mrb[0].mxu0
      %v1377 = vpop.f32.mrb[0].mxu0
      %v1378 = vadd.f32 0.0, %v1377
      %v1379 = vpop.f32.mrb[0].mxu0
      %1380 = vmatprep.mubr.bf16.mxu0 0
      %1381 = vmatmul.mubr.bf16.gmra.mrb[0].mxu0 %v907
      %v1382 = vpop.f32.mrb[0].mxu0
      %v1383 = vadd.f32 0.0, %v1382
      %v1384 = vpop.f32.mrb[0].mxu0
      %v1385 = vpop.f32.mrb[0].mxu0
      %v1386 = vadd.f32 0.0, %v1385
      %v1387 = vpop.f32.mrb[0].mxu0
      %1388 = vmatprep.mubr.bf16.mxu0 0
      %1389 = vmatmul.mubr.bf16.gmra.mrb[0].mxu0 %v910
      %v1390 = vpop.f32.mrb[0].mxu0
      %v1391 = vadd.f32 0.0, %v1390
      %v1392 = vpop.f32.mrb[0].mxu0
      %v1393 = vpop.f32.mrb[0].mxu0
      %v1394 = vadd.f32 0.0, %v1393
      %v1395 = vpop.f32.mrb[0].mxu0
      %1396 = vmatprep.mubr.bf16.mxu0 0
      %1397 = vmatmul.mubr.bf16.gmra.mrb[0].mxu0 %v913
      %v1398 = vpop.f32.mrb[0].mxu0
      %v1399 = vadd.f32 0.0, %v1398
      %v1400 = vpop.f32.mrb[0].mxu0
      %v1401 = vpop.f32.mrb[0].mxu0
      %v1402 = vadd.f32 0.0, %v1401
      %v1403 = vpop.f32.mrb[0].mxu0
      %1404 = vmatprep.mubr.bf16.mxu0 0
      %1405 = vmatmul.mubr.bf16.gmra.mrb[0].mxu0 %v916
      %v1406 = vpop.f32.mrb[0].mxu0
      %v1407 = vadd.f32 0.0, %v1406
      %v1408 = vpop.f32.mrb[0].mxu0
      %v1409 = vpop.f32.mrb[0].mxu0
      %v1410 = vadd.f32 0.0, %v1409
      %v1411 = vpop.f32.mrb[0].mxu0
      %1412 = vmatprep.mubr.bf16.mxu0 0
      %1413 = vmatmul.mubr.bf16.gmra.mrb[0].mxu0 %v919
      %v1414 = vpop.f32.mrb[0].mxu0
      %v1415 = vadd.f32 0.0, %v1414
      %v1416 = vpop.f32.mrb[0].mxu0
      %v1417 = vpop.f32.mrb[0].mxu0
      %v1418 = vadd.f32 0.0, %v1417
      %v1419 = vpop.f32.mrb[0].mxu0
      %1420 = vmatprep.mubr.bf16.mxu0 0
      %1421 = vmatmul.mubr.bf16.gmra.mrb[0].mxu0 %v922
      %v1422 = vpop.f32.mrb[0].mxu0
      %v1423 = vadd.f32 0.0, %v1422
      %v1424 = vpop.f32.mrb[0].mxu0
      %v1425 = vpop.f32.mrb[0].mxu0
      %v1426 = vadd.f32 0.0, %v1425
      %v1427 = vpop.f32.mrb[0].mxu0
      %1428 = vmatprep.mubr.bf16.mxu0 0
      %1429 = vmatmul.mubr.bf16.gmra.mrb[0].mxu0 %v925
      %v1430 = vpop.f32.mrb[0].mxu0
      %v1431 = vadd.f32 0.0, %v1430
      %v1432 = vpop.f32.mrb[0].mxu0
      %v1433 = vpop.f32.mrb[0].mxu0
      %v1434 = vadd.f32 0.0, %v1433
      %v1435 = vpop.f32.mrb[0].mxu0
      %1436 = vmatprep.mubr.bf16.mxu0 0
      %1437 = vmatmul.mubr.bf16.gmra.mrb[0].mxu0 %v928
      %v1438 = vpop.f32.mrb[0].mxu0
      %v1439 = vadd.f32 0.0, %v1438
      %v1440 = vpop.f32.mrb[0].mxu0
      %v1441 = vpop.f32.mrb[0].mxu0
      %v1442 = vadd.f32 0.0, %v1441
      %v1443 = vpop.f32.mrb[0].mxu0
      %1444 = vmatprep.mubr.bf16.mxu0 0
      %1445 = vmatmul.mubr.bf16.gmra.mrb[0].mxu0 %v1335
      %v1446 = vpop.f32.mrb[0].mxu0
      %v1447 = vadd.f32 0.0, %v1446
      %v1448 = vpop.f32.mrb[0].mxu0
      %v1449 = vpop.f32.mrb[0].mxu0
      %v1450 = vadd.f32 0.0, %v1449
      %v1451 = vpop.f32.mrb[0].mxu0
      %1452 = vdwg.mxu0
      %v1453 = vadd.f32 %v1307, %v1375
      %v1454 = vadd.f32 %v1308, %v1378
      %v1455 = vadd.f32 %v1309, %v1383
      %v1456 = vadd.f32 %v1310, %v1386
      %v1457 = vadd.f32 %v1311, %v1391
      %v1458 = vadd.f32 %v1312, %v1394
      %v1459 = vadd.f32 %v1313, %v1399
      %v1460 = vadd.f32 %v1314, %v1402
      %v1461 = vadd.f32 %v1315, %v1407
      %v1462 = vadd.f32 %v1316, %v1410
      %v1463 = vadd.f32 %v1317, %v1415
      %v1464 = vadd.f32 %v1318, %v1418
      %v1465 = vadd.f32 %v1319, %v1423
      %v1466 = vadd.f32 %v1320, %v1426
      %v1467 = vadd.f32 %v1321, %v1431
      %v1468 = vadd.f32 %v1322, %v1434
      %v1469 = vadd.f32 %v1323, %v1439
      %v1470 = vadd.f32 %v1324, %v1442
      %v1471 = vadd.f32 %v1325, %v1447
      %v1472 = vadd.f32 %v1326, %v1450
      %v1474 = vshrl.u32 %v420, 16
      %v1476 = vrot.slane %v1474, 4
      %v1477 = vshll.u32 %v420, 16
      %v1479 = vrot.slane %v1477, 5
      %v1480 = vor.u32 %v1476, %v1479
      %v1481 = vrot.slane %v1480, 4
      %v1483 = vshll.u32 %v421, 16
      %v1485 = vrot.slane %v1483, 5
      %v1486 = vsel %vm429, %v1481, %v1485
      %v1487 = vshrl.u32 %v421, 16
      %v1489 = vrot.slane %v1487, 4
      %v1490 = vor.u32 %v1489, %v1485
      %v1491 = vrot.slane %v1490, 4
      %v1493 = vshll.u32 %v422, 16
      %v1495 = vrot.slane %v1493, 5
      %v1496 = vsel %vm429, %v1491, %v1495
      %s1497 = scalar_lea.vmem %s1, 8
      %v1498 = vld [vmem:[%s1497] sm:$0x3]
      %v1499 = vunpack.c.l.b16 %v1486
      %v1500 = vunpack.c.l.b16 %v1496
      %v1501 = vpack.c.b16 %v1500, %v1499
      %v1503 = vsel %vm702, %v1501, 0
      %v1506 = vsel %vm733, %v1498, 0
      %1508 = vmatprep.subr.bf16.mxu0 0
      %1509 = vmatpush1.bf16.msra.mxu0 %v1506
      %1510 = vmatprep.subr.bf16.mxu0 0
      %1511 = vmatpush1.bf16.msra.mxu0 0
      %1512 = vmatprep.subr.bf16.mxu0 0
      %1513 = vmatpush1.bf16.msra.mxu0 0
      %1514 = vmatprep.subr.bf16.mxu0 0
      %1515 = vmatpush1.bf16.msra.mxu0 0
      %1516 = vmatprep.subr.bf16.mxu0 0
      %1517 = vmatpush1.bf16.msra.mxu0 0
      %1518 = vmatprep.subr.bf16.mxu0 0
      %1519 = vmatpush1.bf16.msra.mxu0 0
      %1520 = vmatprep.subr.bf16.mxu0 0
      %1521 = vmatpush1.bf16.msra.mxu0 0
      %1522 = vmatprep.subr.bf16.mxu0 0
      %1523 = vmatpush1.bf16.msra.mxu0 0
      %1524 = vmatprep.subr.bf16.mxu0 0
      %1525 = vmatpush1.bf16.msra.mxu0 0
      %1526 = vmatprep.subr.bf16.mxu0 0
      %1527 = vmatpush1.bf16.msra.mxu0 0
      %1528 = vmatprep.subr.bf16.mxu0 0
      %1529 = vmatpush1.bf16.msra.mxu0 0
      %1530 = vmatprep.subr.bf16.mxu0 0
      %1531 = vmatpush1.bf16.msra.mxu0 0
      %1532 = vmatprep.subr.bf16.mxu0 0
      %1533 = vmatpush1.bf16.msra.mxu0 0
      %1534 = vmatprep.subr.bf16.mxu0 0
      %1535 = vmatpush1.bf16.msra.mxu0 0
      %1536 = vmatprep.subr.bf16.mxu0 0
      %1537 = vmatpush1.bf16.msra.mxu0 0
      %1538 = vmatprep.subr.bf16.mxu0 0
      %1539 = vmatpush1.bf16.msra.mxu0 0
      %1540 = vmatprep.mubr.bf16.mxu0 0
      %1541 = vmatmul.mubr.bf16.gmra.mrb[0].mxu0 %v707
      %v1542 = vpop.f32.mrb[0].mxu0
      %v1543 = vadd.f32 0.0, %v1542
      %v1544 = vpop.f32.mrb[0].mxu0
      %v1545 = vpop.f32.mrb[0].mxu0
      %v1546 = vadd.f32 0.0, %v1545
      %v1547 = vpop.f32.mrb[0].mxu0
      %1548 = vmatprep.mubr.bf16.mxu0 0
      %1549 = vmatmul.mubr.bf16.gmra.mrb[0].mxu0 %v710
      %v1550 = vpop.f32.mrb[0].mxu0
      %v1551 = vadd.f32 0.0, %v1550
      %v1552 = vpop.f32.mrb[0].mxu0
      %v1553 = vpop.f32.mrb[0].mxu0
      %v1554 = vadd.f32 0.0, %v1553
      %v1555 = vpop.f32.mrb[0].mxu0
      %1556 = vmatprep.mubr.bf16.mxu0 0
      %1557 = vmatmul.mubr.bf16.gmra.mrb[0].mxu0 %v713
      %v1558 = vpop.f32.mrb[0].mxu0
      %v1559 = vadd.f32 0.0, %v1558
      %v1560 = vpop.f32.mrb[0].mxu0
      %v1561 = vpop.f32.mrb[0].mxu0
      %v1562 = vadd.f32 0.0, %v1561
      %v1563 = vpop.f32.mrb[0].mxu0
      %1564 = vmatprep.mubr.bf16.mxu0 0
      %1565 = vmatmul.mubr.bf16.gmra.mrb[0].mxu0 %v716
      %v1566 = vpop.f32.mrb[0].mxu0
      %v1567 = vadd.f32 0.0, %v1566
      %v1568 = vpop.f32.mrb[0].mxu0
      %v1569 = vpop.f32.mrb[0].mxu0
      %v1570 = vadd.f32 0.0, %v1569
      %v1571 = vpop.f32.mrb[0].mxu0
      %1572 = vmatprep.mubr.bf16.mxu0 0
      %1573 = vmatmul.mubr.bf16.gmra.mrb[0].mxu0 %v719
      %v1574 = vpop.f32.mrb[0].mxu0
      %v1575 = vadd.f32 0.0, %v1574
      %v1576 = vpop.f32.mrb[0].mxu0
      %v1577 = vpop.f32.mrb[0].mxu0
      %v1578 = vadd.f32 0.0, %v1577
      %v1579 = vpop.f32.mrb[0].mxu0
      %1580 = vmatprep.mubr.bf16.mxu0 0
      %1581 = vmatmul.mubr.bf16.gmra.mrb[0].mxu0 %v722
      %v1582 = vpop.f32.mrb[0].mxu0
      %v1583 = vadd.f32 0.0, %v1582
      %v1584 = vpop.f32.mrb[0].mxu0
      %v1585 = vpop.f32.mrb[0].mxu0
      %v1586 = vadd.f32 0.0, %v1585
      %v1587 = vpop.f32.mrb[0].mxu0
      %1588 = vmatprep.mubr.bf16.mxu0 0
      %1589 = vmatmul.mubr.bf16.gmra.mrb[0].mxu0 %v725
      %v1590 = vpop.f32.mrb[0].mxu0
      %v1591 = vadd.f32 0.0, %v1590
      %v1592 = vpop.f32.mrb[0].mxu0
      %v1593 = vpop.f32.mrb[0].mxu0
      %v1594 = vadd.f32 0.0, %v1593
      %v1595 = vpop.f32.mrb[0].mxu0
      %1596 = vmatprep.mubr.bf16.mxu0 0
      %1597 = vmatmul.mubr.bf16.gmra.mrb[0].mxu0 %v728
      %v1598 = vpop.f32.mrb[0].mxu0
      %v1599 = vadd.f32 0.0, %v1598
      %v1600 = vpop.f32.mrb[0].mxu0
      %v1601 = vpop.f32.mrb[0].mxu0
      %v1602 = vadd.f32 0.0, %v1601
      %v1603 = vpop.f32.mrb[0].mxu0
      %1604 = vmatprep.mubr.bf16.mxu0 0
      %1605 = vmatmul.mubr.bf16.gmra.mrb[0].mxu0 %v731
      %v1606 = vpop.f32.mrb[0].mxu0
      %v1607 = vadd.f32 0.0, %v1606
      %v1608 = vpop.f32.mrb[0].mxu0
      %v1609 = vpop.f32.mrb[0].mxu0
      %v1610 = vadd.f32 0.0, %v1609
      %v1611 = vpop.f32.mrb[0].mxu0
      %1612 = vmatprep.mubr.bf16.mxu0 0
      %1613 = vmatmul.mubr.bf16.gmra.mrb[0].mxu0 %v1503
      %v1614 = vpop.f32.mrb[0].mxu0
      %v1615 = vadd.f32 0.0, %v1614
      %v1616 = vpop.f32.mrb[0].mxu0
      %v1617 = vpop.f32.mrb[0].mxu0
      %v1618 = vadd.f32 0.0, %v1617
      %v1619 = vpop.f32.mrb[0].mxu0
      %1620 = vdwg.mxu0
      %v1621 = vadd.f32 %v1453, %v1543
      %v1622 = vadd.f32 %v1454, %v1546
      %v1623 = vadd.f32 %v1455, %v1551
      %v1624 = vadd.f32 %v1456, %v1554
      %v1625 = vadd.f32 %v1457, %v1559
      %v1626 = vadd.f32 %v1458, %v1562
      %v1627 = vadd.f32 %v1459, %v1567
      %v1628 = vadd.f32 %v1460, %v1570
      %v1629 = vadd.f32 %v1461, %v1575
      %v1630 = vadd.f32 %v1462, %v1578
      %v1631 = vadd.f32 %v1463, %v1583
      %v1632 = vadd.f32 %v1464, %v1586
      %v1633 = vadd.f32 %v1465, %v1591
      %v1634 = vadd.f32 %v1466, %v1594
      %v1635 = vadd.f32 %v1467, %v1599
      %v1636 = vadd.f32 %v1468, %v1602
      %v1637 = vadd.f32 %v1469, %v1607
      %v1638 = vadd.f32 %v1470, %v1610
      %v1639 = vadd.f32 %v1471, %v1615
      %v1640 = vadd.f32 %v1472, %v1618
      %v1642 = vrot.slane %v420, 5
      %v1643 = vrot.slane %v1642, 4
      %v1644 = vrot.slane %v421, 5
      %v1645 = vsel %vm1058, %v1643, %v1644
      %v1646 = vrot.slane %v1644, 4
      %v1647 = vrot.slane %v422, 5
      %v1648 = vsel %vm1058, %v1646, %v1647
      %s1649 = scalar_lea.vmem %s1, 10
      %v1650 = vld [vmem:[%s1649] sm:$0x3]
      %v1651 = vunpack.c.l.b16 %v1645
      %v1652 = vunpack.c.l.b16 %v1648
      %v1653 = vpack.c.b16 %v1652, %v1651
      %v1655 = vsel %vm702, %v1653, 0
      %v1658 = vsel %vm733, %v1650, 0
      %1660 = vmatprep.subr.bf16.mxu0 0
      %1661 = vmatpush1.bf16.msra.mxu0 %v1658
      %1662 = vmatprep.subr.bf16.mxu0 0
      %1663 = vmatpush1.bf16.msra.mxu0 0
      %1664 = vmatprep.subr.bf16.mxu0 0
      %1665 = vmatpush1.bf16.msra.mxu0 0
      %1666 = vmatprep.subr.bf16.mxu0 0
      %1667 = vmatpush1.bf16.msra.mxu0 0
      %1668 = vmatprep.subr.bf16.mxu0 0
      %1669 = vmatpush1.bf16.msra.mxu0 0
      %1670 = vmatprep.subr.bf16.mxu0 0
      %1671 = vmatpush1.bf16.msra.mxu0 0
      %1672 = vmatprep.subr.bf16.mxu0 0
      %1673 = vmatpush1.bf16.msra.mxu0 0
      %1674 = vmatprep.subr.bf16.mxu0 0
      %1675 = vmatpush1.bf16.msra.mxu0 0
      %1676 = vmatprep.subr.bf16.mxu0 0
      %1677 = vmatpush1.bf16.msra.mxu0 0
      %1678 = vmatprep.subr.bf16.mxu0 0
      %1679 = vmatpush1.bf16.msra.mxu0 0
      %1680 = vmatprep.subr.bf16.mxu0 0
      %1681 = vmatpush1.bf16.msra.mxu0 0
      %1682 = vmatprep.subr.bf16.mxu0 0
      %1683 = vmatpush1.bf16.msra.mxu0 0
      %1684 = vmatprep.subr.bf16.mxu0 0
      %1685 = vmatpush1.bf16.msra.mxu0 0
      %1686 = vmatprep.subr.bf16.mxu0 0
      %1687 = vmatpush1.bf16.msra.mxu0 0
      %1688 = vmatprep.subr.bf16.mxu0 0
      %1689 = vmatpush1.bf16.msra.mxu0 0
      %1690 = vmatprep.subr.bf16.mxu0 0
      %1691 = vmatpush1.bf16.msra.mxu0 0
      %1692 = vmatprep.mubr.bf16.mxu0 0
      %1693 = vmatmul.mubr.bf16.gmra.mrb[0].mxu0 %v1165
      %v1694 = vpop.f32.mrb[0].mxu0
      %v1695 = vadd.f32 0.0, %v1694
      %v1696 = vpop.f32.mrb[0].mxu0
      %v1697 = vpop.f32.mrb[0].mxu0
      %v1698 = vadd.f32 0.0, %v1697
      %v1699 = vpop.f32.mrb[0].mxu0
      %1700 = vmatprep.mubr.bf16.mxu0 0
      %1701 = vmatmul.mubr.bf16.gmra.mrb[0].mxu0 %v1168
      %v1702 = vpop.f32.mrb[0].mxu0
      %v1703 = vadd.f32 0.0, %v1702
      %v1704 = vpop.f32.mrb[0].mxu0
      %v1705 = vpop.f32.mrb[0].mxu0
      %v1706 = vadd.f32 0.0, %v1705
      %v1707 = vpop.f32.mrb[0].mxu0
      %1708 = vmatprep.mubr.bf16.mxu0 0
      %1709 = vmatmul.mubr.bf16.gmra.mrb[0].mxu0 %v1171
      %v1710 = vpop.f32.mrb[0].mxu0
      %v1711 = vadd.f32 0.0, %v1710
      %v1712 = vpop.f32.mrb[0].mxu0
      %v1713 = vpop.f32.mrb[0].mxu0
      %v1714 = vadd.f32 0.0, %v1713
      %v1715 = vpop.f32.mrb[0].mxu0
      %1716 = vmatprep.mubr.bf16.mxu0 0
      %1717 = vmatmul.mubr.bf16.gmra.mrb[0].mxu0 %v1174
      %v1718 = vpop.f32.mrb[0].mxu0
      %v1719 = vadd.f32 0.0, %v1718
      %v1720 = vpop.f32.mrb[0].mxu0
      %v1721 = vpop.f32.mrb[0].mxu0
      %v1722 = vadd.f32 0.0, %v1721
      %v1723 = vpop.f32.mrb[0].mxu0
      %1724 = vmatprep.mubr.bf16.mxu0 0
      %1725 = vmatmul.mubr.bf16.gmra.mrb[0].mxu0 %v1177
      %v1726 = vpop.f32.mrb[0].mxu0
      %v1727 = vadd.f32 0.0, %v1726
      %v1728 = vpop.f32.mrb[0].mxu0
      %v1729 = vpop.f32.mrb[0].mxu0
      %v1730 = vadd.f32 0.0, %v1729
      %v1731 = vpop.f32.mrb[0].mxu0
      %1732 = vmatprep.mubr.bf16.mxu0 0
      %1733 = vmatmul.mubr.bf16.gmra.mrb[0].mxu0 %v1180
      %v1734 = vpop.f32.mrb[0].mxu0
      %v1735 = vadd.f32 0.0, %v1734
      %v1736 = vpop.f32.mrb[0].mxu0
      %v1737 = vpop.f32.mrb[0].mxu0
      %v1738 = vadd.f32 0.0, %v1737
      %v1739 = vpop.f32.mrb[0].mxu0
      %1740 = vmatprep.mubr.bf16.mxu0 0
      %1741 = vmatmul.mubr.bf16.gmra.mrb[0].mxu0 %v1183
      %v1742 = vpop.f32.mrb[0].mxu0
      %v1743 = vadd.f32 0.0, %v1742
      %v1744 = vpop.f32.mrb[0].mxu0
      %v1745 = vpop.f32.mrb[0].mxu0
      %v1746 = vadd.f32 0.0, %v1745
      %v1747 = vpop.f32.mrb[0].mxu0
      %1748 = vmatprep.mubr.bf16.mxu0 0
      %1749 = vmatmul.mubr.bf16.gmra.mrb[0].mxu0 %v1186
      %v1750 = vpop.f32.mrb[0].mxu0
      %v1751 = vadd.f32 0.0, %v1750
      %v1752 = vpop.f32.mrb[0].mxu0
      %v1753 = vpop.f32.mrb[0].mxu0
      %v1754 = vadd.f32 0.0, %v1753
      %v1755 = vpop.f32.mrb[0].mxu0
      %1756 = vmatprep.mubr.bf16.mxu0 0
      %1757 = vmatmul.mubr.bf16.gmra.mrb[0].mxu0 %v1189
      %v1758 = vpop.f32.mrb[0].mxu0
      %v1759 = vadd.f32 0.0, %v1758
      %v1760 = vpop.f32.mrb[0].mxu0
      %v1761 = vpop.f32.mrb[0].mxu0
      %v1762 = vadd.f32 0.0, %v1761
      %v1763 = vpop.f32.mrb[0].mxu0
      %1764 = vmatprep.mubr.bf16.mxu0 0
      %1765 = vmatmul.mubr.bf16.gmra.mrb[0].mxu0 %v1655
      %v1766 = vpop.f32.mrb[0].mxu0
      %v1767 = vadd.f32 0.0, %v1766
      %v1768 = vpop.f32.mrb[0].mxu0
      %v1769 = vpop.f32.mrb[0].mxu0
      %v1770 = vadd.f32 0.0, %v1769
      %v1771 = vpop.f32.mrb[0].mxu0
      %1772 = vdwg.mxu0
      %v1773 = vadd.f32 %v1621, %v1695
      %v1774 = vadd.f32 %v1622, %v1698
      %v1775 = vadd.f32 %v1623, %v1703
      %v1776 = vadd.f32 %v1624, %v1706
      %v1777 = vadd.f32 %v1625, %v1711
      %v1778 = vadd.f32 %v1626, %v1714
      %v1779 = vadd.f32 %v1627, %v1719
      %v1780 = vadd.f32 %v1628, %v1722
      %v1781 = vadd.f32 %v1629, %v1727
      %v1782 = vadd.f32 %v1630, %v1730
      %v1783 = vadd.f32 %v1631, %v1735
      %v1784 = vadd.f32 %v1632, %v1738
      %v1785 = vadd.f32 %v1633, %v1743
      %v1786 = vadd.f32 %v1634, %v1746
      %v1787 = vadd.f32 %v1635, %v1751
      %v1788 = vadd.f32 %v1636, %v1754
      %v1789 = vadd.f32 %v1637, %v1759
      %v1790 = vadd.f32 %v1638, %v1762
      %v1791 = vadd.f32 %v1639, %v1767
      %v1792 = vadd.f32 %v1640, %v1770
      %s1793 = scalar_lea.vmem %s1, 12
      %v1794 = vld [vmem:[%s1793] sm:$0x3]
      %v1797 = vunpack.c.l.b16 %v423
      %v1798 = vunpack.c.l.b16 %v424
      %v1799 = vpack.c.b16 %v1798, %v1797
      %v1801 = vsel %vm702, %v1799, 0
      %v1804 = vsel %vm733, %v1794, 0
      %1806 = vmatprep.subr.bf16.mxu0 0
      %1807 = vmatpush1.bf16.msra.mxu0 %v1804
      %1808 = vmatprep.subr.bf16.mxu0 0
      %1809 = vmatpush1.bf16.msra.mxu0 0
      %1810 = vmatprep.subr.bf16.mxu0 0
      %1811 = vmatpush1.bf16.msra.mxu0 0
      %1812 = vmatprep.subr.bf16.mxu0 0
      %1813 = vmatpush1.bf16.msra.mxu0 0
      %1814 = vmatprep.subr.bf16.mxu0 0
      %1815 = vmatpush1.bf16.msra.mxu0 0
      %1816 = vmatprep.subr.bf16.mxu0 0
      %1817 = vmatpush1.bf16.msra.mxu0 0
      %1818 = vmatprep.subr.bf16.mxu0 0
      %1819 = vmatpush1.bf16.msra.mxu0 0
      %1820 = vmatprep.subr.bf16.mxu0 0
      %1821 = vmatpush1.bf16.msra.mxu0 0
      %1822 = vmatprep.subr.bf16.mxu0 0
      %1823 = vmatpush1.bf16.msra.mxu0 0
      %1824 = vmatprep.subr.bf16.mxu0 0
      %1825 = vmatpush1.bf16.msra.mxu0 0
      %1826 = vmatprep.subr.bf16.mxu0 0
      %1827 = vmatpush1.bf16.msra.mxu0 0
      %1828 = vmatprep.subr.bf16.mxu0 0
      %1829 = vmatpush1.bf16.msra.mxu0 0
      %1830 = vmatprep.subr.bf16.mxu0 0
      %1831 = vmatpush1.bf16.msra.mxu0 0
      %1832 = vmatprep.subr.bf16.mxu0 0
      %1833 = vmatpush1.bf16.msra.mxu0 0
      %1834 = vmatprep.subr.bf16.mxu0 0
      %1835 = vmatpush1.bf16.msra.mxu0 0
      %1836 = vmatprep.subr.bf16.mxu0 0
      %1837 = vmatpush1.bf16.msra.mxu0 0
      %1838 = vmatprep.mubr.bf16.mxu0 0
      %1839 = vmatmul.mubr.bf16.gmra.mrb[0].mxu0 %v907
      %v1840 = vpop.f32.mrb[0].mxu0
      %v1841 = vadd.f32 0.0, %v1840
      %v1842 = vpop.f32.mrb[0].mxu0
      %v1843 = vpop.f32.mrb[0].mxu0
      %v1844 = vadd.f32 0.0, %v1843
      %v1845 = vpop.f32.mrb[0].mxu0
      %1846 = vmatprep.mubr.bf16.mxu0 0
      %1847 = vmatmul.mubr.bf16.gmra.mrb[0].mxu0 %v910
      %v1848 = vpop.f32.mrb[0].mxu0
      %v1849 = vadd.f32 0.0, %v1848
      %v1850 = vpop.f32.mrb[0].mxu0
      %v1851 = vpop.f32.mrb[0].mxu0
      %v1852 = vadd.f32 0.0, %v1851
      %v1853 = vpop.f32.mrb[0].mxu0
      %1854 = vmatprep.mubr.bf16.mxu0 0
      %1855 = vmatmul.mubr.bf16.gmra.mrb[0].mxu0 %v913
      %v1856 = vpop.f32.mrb[0].mxu0
      %v1857 = vadd.f32 0.0, %v1856
      %v1858 = vpop.f32.mrb[0].mxu0
      %v1859 = vpop.f32.mrb[0].mxu0
      %v1860 = vadd.f32 0.0, %v1859
      %v1861 = vpop.f32.mrb[0].mxu0
      %1862 = vmatprep.mubr.bf16.mxu0 0
      %1863 = vmatmul.mubr.bf16.gmra.mrb[0].mxu0 %v916
      %v1864 = vpop.f32.mrb[0].mxu0
      %v1865 = vadd.f32 0.0, %v1864
      %v1866 = vpop.f32.mrb[0].mxu0
      %v1867 = vpop.f32.mrb[0].mxu0
      %v1868 = vadd.f32 0.0, %v1867
      %v1869 = vpop.f32.mrb[0].mxu0
      %1870 = vmatprep.mubr.bf16.mxu0 0
      %1871 = vmatmul.mubr.bf16.gmra.mrb[0].mxu0 %v919
      %v1872 = vpop.f32.mrb[0].mxu0
      %v1873 = vadd.f32 0.0, %v1872
      %v1874 = vpop.f32.mrb[0].mxu0
      %v1875 = vpop.f32.mrb[0].mxu0
      %v1876 = vadd.f32 0.0, %v1875
      %v1877 = vpop.f32.mrb[0].mxu0
      %1878 = vmatprep.mubr.bf16.mxu0 0
      %1879 = vmatmul.mubr.bf16.gmra.mrb[0].mxu0 %v922
      %v1880 = vpop.f32.mrb[0].mxu0
      %v1881 = vadd.f32 0.0, %v1880
      %v1882 = vpop.f32.mrb[0].mxu0
      %v1883 = vpop.f32.mrb[0].mxu0
      %v1884 = vadd.f32 0.0, %v1883
      %v1885 = vpop.f32.mrb[0].mxu0
      %1886 = vmatprep.mubr.bf16.mxu0 0
      %1887 = vmatmul.mubr.bf16.gmra.mrb[0].mxu0 %v925
      %v1888 = vpop.f32.mrb[0].mxu0
      %v1889 = vadd.f32 0.0, %v1888
      %v1890 = vpop.f32.mrb[0].mxu0
      %v1891 = vpop.f32.mrb[0].mxu0
      %v1892 = vadd.f32 0.0, %v1891
      %v1893 = vpop.f32.mrb[0].mxu0
      %1894 = vmatprep.mubr.bf16.mxu0 0
      %1895 = vmatmul.mubr.bf16.gmra.mrb[0].mxu0 %v928
      %v1896 = vpop.f32.mrb[0].mxu0
      %v1897 = vadd.f32 0.0, %v1896
      %v1898 = vpop.f32.mrb[0].mxu0
      %v1899 = vpop.f32.mrb[0].mxu0
      %v1900 = vadd.f32 0.0, %v1899
      %v1901 = vpop.f32.mrb[0].mxu0
      %1902 = vmatprep.mubr.bf16.mxu0 0
      %1903 = vmatmul.mubr.bf16.gmra.mrb[0].mxu0 %v1335
      %v1904 = vpop.f32.mrb[0].mxu0
      %v1905 = vadd.f32 0.0, %v1904
      %v1906 = vpop.f32.mrb[0].mxu0
      %v1907 = vpop.f32.mrb[0].mxu0
      %v1908 = vadd.f32 0.0, %v1907
      %v1909 = vpop.f32.mrb[0].mxu0
      %1910 = vmatprep.mubr.bf16.mxu0 0
      %1911 = vmatmul.mubr.bf16.gmra.mrb[0].mxu0 %v1801
      %v1912 = vpop.f32.mrb[0].mxu0
      %v1913 = vadd.f32 0.0, %v1912
      %v1914 = vpop.f32.mrb[0].mxu0
      %v1915 = vpop.f32.mrb[0].mxu0
      %v1916 = vadd.f32 0.0, %v1915
      %v1917 = vpop.f32.mrb[0].mxu0
      %1918 = vdwg.mxu0
      %v1919 = vadd.f32 %v1773, %v1841
      %v1920 = vadd.f32 %v1774, %v1844
      %v1921 = vadd.f32 %v1775, %v1849
      %v1922 = vadd.f32 %v1776, %v1852
      %v1923 = vadd.f32 %v1777, %v1857
      %v1924 = vadd.f32 %v1778, %v1860
      %v1925 = vadd.f32 %v1779, %v1865
      %v1926 = vadd.f32 %v1780, %v1868
      %v1927 = vadd.f32 %v1781, %v1873
      %v1928 = vadd.f32 %v1782, %v1876
      %v1929 = vadd.f32 %v1783, %v1881
      %v1930 = vadd.f32 %v1784, %v1884
      %v1931 = vadd.f32 %v1785, %v1889
      %v1932 = vadd.f32 %v1786, %v1892
      %v1933 = vadd.f32 %v1787, %v1897
      %v1934 = vadd.f32 %v1788, %v1900
      %v1935 = vadd.f32 %v1789, %v1905
      %v1936 = vadd.f32 %v1790, %v1908
      %v1937 = vadd.f32 %v1791, %v1913
      %v1938 = vadd.f32 %v1792, %v1916
      %v1940 = vshrl.u32 %v423, 16
      %v1942 = vrot.slane %v1940, 4
      %v1943 = vshll.u32 %v423, 16
      %v1945 = vrot.slane %v1943, 5
      %v1946 = vor.u32 %v1942, %v1945
      %v1947 = vrot.slane %v1946, 4
      %v1949 = vshll.u32 %v424, 16
      %v1951 = vrot.slane %v1949, 5
      %v1952 = vsel %vm429, %v1947, %v1951
      %v1953 = vshrl.u32 %v424, 16
      %v1955 = vrot.slane %v1953, 4
      %v1956 = vor.u32 %v1955, %v1951
      %v1957 = vrot.slane %v1956, 4
      %v1959 = vshll.u32 %v425, 16
      %v1961 = vrot.slane %v1959, 5
      %v1962 = vsel %vm429, %v1957, %v1961
      %s1963 = scalar_lea.vmem %s1, 14
      %v1964 = vld [vmem:[%s1963] sm:$0x3]
      %v1965 = vunpack.c.l.b16 %v1952
      %v1966 = vunpack.c.l.b16 %v1962
      %v1967 = vpack.c.b16 %v1966, %v1965
      %v1969 = vsel %vm702, %v1967, 0
      %v1972 = vsel %vm733, %v1964, 0
      %1974 = vmatprep.subr.bf16.mxu0 0
      %1975 = vmatpush1.bf16.msra.mxu0 %v1972
      %1976 = vmatprep.subr.bf16.mxu0 0
      %1977 = vmatpush1.bf16.msra.mxu0 0
      %1978 = vmatprep.subr.bf16.mxu0 0
      %1979 = vmatpush1.bf16.msra.mxu0 0
      %1980 = vmatprep.subr.bf16.mxu0 0
      %1981 = vmatpush1.bf16.msra.mxu0 0
      %1982 = vmatprep.subr.bf16.mxu0 0
      %1983 = vmatpush1.bf16.msra.mxu0 0
      %1984 = vmatprep.subr.bf16.mxu0 0
      %1985 = vmatpush1.bf16.msra.mxu0 0
      %1986 = vmatprep.subr.bf16.mxu0 0
      %1987 = vmatpush1.bf16.msra.mxu0 0
      %1988 = vmatprep.subr.bf16.mxu0 0
      %1989 = vmatpush1.bf16.msra.mxu0 0
      %1990 = vmatprep.subr.bf16.mxu0 0
      %1991 = vmatpush1.bf16.msra.mxu0 0
      %1992 = vmatprep.subr.bf16.mxu0 0
      %1993 = vmatpush1.bf16.msra.mxu0 0
      %1994 = vmatprep.subr.bf16.mxu0 0
      %1995 = vmatpush1.bf16.msra.mxu0 0
      %1996 = vmatprep.subr.bf16.mxu0 0
      %1997 = vmatpush1.bf16.msra.mxu0 0
      %1998 = vmatprep.subr.bf16.mxu0 0
      %1999 = vmatpush1.bf16.msra.mxu0 0
      %2000 = vmatprep.subr.bf16.mxu0 0
      %2001 = vmatpush1.bf16.msra.mxu0 0
      %2002 = vmatprep.subr.bf16.mxu0 0
      %2003 = vmatpush1.bf16.msra.mxu0 0
      %2004 = vmatprep.subr.bf16.mxu0 0
      %2005 = vmatpush1.bf16.msra.mxu0 0
      %2006 = vmatprep.mubr.bf16.mxu0 0
      %2007 = vmatmul.mubr.bf16.gmra.mrb[0].mxu0 %v710
      %v2008 = vpop.f32.mrb[0].mxu0
      %v2009 = vadd.f32 0.0, %v2008
      %v2010 = vpop.f32.mrb[0].mxu0
      %v2011 = vpop.f32.mrb[0].mxu0
      %v2012 = vadd.f32 0.0, %v2011
      %v2013 = vpop.f32.mrb[0].mxu0
      %2014 = vmatprep.mubr.bf16.mxu0 0
      %2015 = vmatmul.mubr.bf16.gmra.mrb[0].mxu0 %v713
      %v2016 = vpop.f32.mrb[0].mxu0
      %v2017 = vadd.f32 0.0, %v2016
      %v2018 = vpop.f32.mrb[0].mxu0
      %v2019 = vpop.f32.mrb[0].mxu0
      %v2020 = vadd.f32 0.0, %v2019
      %v2021 = vpop.f32.mrb[0].mxu0
      %2022 = vmatprep.mubr.bf16.mxu0 0
      %2023 = vmatmul.mubr.bf16.gmra.mrb[0].mxu0 %v716
      %v2024 = vpop.f32.mrb[0].mxu0
      %v2025 = vadd.f32 0.0, %v2024
      %v2026 = vpop.f32.mrb[0].mxu0
      %v2027 = vpop.f32.mrb[0].mxu0
      %v2028 = vadd.f32 0.0, %v2027
      %v2029 = vpop.f32.mrb[0].mxu0
      %2030 = vmatprep.mubr.bf16.mxu0 0
      %2031 = vmatmul.mubr.bf16.gmra.mrb[0].mxu0 %v719
      %v2032 = vpop.f32.mrb[0].mxu0
      %v2033 = vadd.f32 0.0, %v2032
      %v2034 = vpop.f32.mrb[0].mxu0
      %v2035 = vpop.f32.mrb[0].mxu0
      %v2036 = vadd.f32 0.0, %v2035
      %v2037 = vpop.f32.mrb[0].mxu0
      %2038 = vmatprep.mubr.bf16.mxu0 0
      %2039 = vmatmul.mubr.bf16.gmra.mrb[0].mxu0 %v722
      %v2040 = vpop.f32.mrb[0].mxu0
      %v2041 = vadd.f32 0.0, %v2040
      %v2042 = vpop.f32.mrb[0].mxu0
      %v2043 = vpop.f32.mrb[0].mxu0
      %v2044 = vadd.f32 0.0, %v2043
      %v2045 = vpop.f32.mrb[0].mxu0
      %2046 = vmatprep.mubr.bf16.mxu0 0
      %2047 = vmatmul.mubr.bf16.gmra.mrb[0].mxu0 %v725
      %v2048 = vpop.f32.mrb[0].mxu0
      %v2049 = vadd.f32 0.0, %v2048
      %v2050 = vpop.f32.mrb[0].mxu0
      %v2051 = vpop.f32.mrb[0].mxu0
      %v2052 = vadd.f32 0.0, %v2051
      %v2053 = vpop.f32.mrb[0].mxu0
      %2054 = vmatprep.mubr.bf16.mxu0 0
      %2055 = vmatmul.mubr.bf16.gmra.mrb[0].mxu0 %v728
      %v2056 = vpop.f32.mrb[0].mxu0
      %v2057 = vadd.f32 0.0, %v2056
      %v2058 = vpop.f32.mrb[0].mxu0
      %v2059 = vpop.f32.mrb[0].mxu0
      %v2060 = vadd.f32 0.0, %v2059
      %v2061 = vpop.f32.mrb[0].mxu0
      %2062 = vmatprep.mubr.bf16.mxu0 0
      %2063 = vmatmul.mubr.bf16.gmra.mrb[0].mxu0 %v731
      %v2064 = vpop.f32.mrb[0].mxu0
      %v2065 = vadd.f32 0.0, %v2064
      %v2066 = vpop.f32.mrb[0].mxu0
      %v2067 = vpop.f32.mrb[0].mxu0
      %v2068 = vadd.f32 0.0, %v2067
      %v2069 = vpop.f32.mrb[0].mxu0
      %2070 = vmatprep.mubr.bf16.mxu0 0
      %2071 = vmatmul.mubr.bf16.gmra.mrb[0].mxu0 %v1503
      %v2072 = vpop.f32.mrb[0].mxu0
      %v2073 = vadd.f32 0.0, %v2072
      %v2074 = vpop.f32.mrb[0].mxu0
      %v2075 = vpop.f32.mrb[0].mxu0
      %v2076 = vadd.f32 0.0, %v2075
      %v2077 = vpop.f32.mrb[0].mxu0
      %2078 = vmatprep.mubr.bf16.mxu0 0
      %2079 = vmatmul.mubr.bf16.gmra.mrb[0].mxu0 %v1969
      %v2080 = vpop.f32.mrb[0].mxu0
      %v2081 = vadd.f32 0.0, %v2080
      %v2082 = vpop.f32.mrb[0].mxu0
      %v2083 = vpop.f32.mrb[0].mxu0
      %v2084 = vadd.f32 0.0, %v2083
      %v2085 = vpop.f32.mrb[0].mxu0
      %2086 = vdwg.mxu0
      %v2087 = vadd.f32 %v1919, %v2009
      %v2088 = vadd.f32 %v1920, %v2012
      %v2089 = vadd.f32 %v1921, %v2017
      %v2090 = vadd.f32 %v1922, %v2020
      %v2091 = vadd.f32 %v1923, %v2025
      %v2092 = vadd.f32 %v1924, %v2028
      %v2093 = vadd.f32 %v1925, %v2033
      %v2094 = vadd.f32 %v1926, %v2036
      %v2095 = vadd.f32 %v1927, %v2041
      %v2096 = vadd.f32 %v1928, %v2044
      %v2097 = vadd.f32 %v1929, %v2049
      %v2098 = vadd.f32 %v1930, %v2052
      %v2099 = vadd.f32 %v1931, %v2057
      %v2100 = vadd.f32 %v1932, %v2060
      %v2101 = vadd.f32 %v1933, %v2065
      %v2102 = vadd.f32 %v1934, %v2068
      %v2103 = vadd.f32 %v1935, %v2073
      %v2104 = vadd.f32 %v1936, %v2076
      %v2105 = vadd.f32 %v1937, %v2081
      %v2106 = vadd.f32 %v1938, %v2084
      %v2108 = vrot.slane %v423, 5
      %v2109 = vrot.slane %v2108, 4
      %v2110 = vrot.slane %v424, 5
      %v2111 = vsel %vm1058, %v2109, %v2110
      %v2112 = vrot.slane %v2110, 4
      %v2113 = vrot.slane %v425, 5
      %v2114 = vsel %vm1058, %v2112, %v2113
      %s2115 = scalar_lea.vmem %s1, 16
      %v2116 = vld [vmem:[%s2115] sm:$0x3]
      %v2117 = vunpack.c.l.b16 %v2111
      %v2118 = vunpack.c.l.b16 %v2114
      %v2119 = vpack.c.b16 %v2118, %v2117
      %v2121 = vsel %vm702, %v2119, 0
      %v2124 = vsel %vm733, %v2116, 0
      %2126 = vmatprep.subr.bf16.mxu0 0
      %2127 = vmatpush1.bf16.msra.mxu0 %v2124
      %2128 = vmatprep.subr.bf16.mxu0 0
      %2129 = vmatpush1.bf16.msra.mxu0 0
      %2130 = vmatprep.subr.bf16.mxu0 0
      %2131 = vmatpush1.bf16.msra.mxu0 0
      %2132 = vmatprep.subr.bf16.mxu0 0
      %2133 = vmatpush1.bf16.msra.mxu0 0
      %2134 = vmatprep.subr.bf16.mxu0 0
      %2135 = vmatpush1.bf16.msra.mxu0 0
      %2136 = vmatprep.subr.bf16.mxu0 0
      %2137 = vmatpush1.bf16.msra.mxu0 0
      %2138 = vmatprep.subr.bf16.mxu0 0
      %2139 = vmatpush1.bf16.msra.mxu0 0
      %2140 = vmatprep.subr.bf16.mxu0 0
      %2141 = vmatpush1.bf16.msra.mxu0 0
      %2142 = vmatprep.subr.bf16.mxu0 0
      %2143 = vmatpush1.bf16.msra.mxu0 0
      %2144 = vmatprep.subr.bf16.mxu0 0
      %2145 = vmatpush1.bf16.msra.mxu0 0
      %2146 = vmatprep.subr.bf16.mxu0 0
      %2147 = vmatpush1.bf16.msra.mxu0 0
      %2148 = vmatprep.subr.bf16.mxu0 0
      %2149 = vmatpush1.bf16.msra.mxu0 0
      %2150 = vmatprep.subr.bf16.mxu0 0
      %2151 = vmatpush1.bf16.msra.mxu0 0
      %2152 = vmatprep.subr.bf16.mxu0 0
      %2153 = vmatpush1.bf16.msra.mxu0 0
      %2154 = vmatprep.subr.bf16.mxu0 0
      %2155 = vmatpush1.bf16.msra.mxu0 0
      %2156 = vmatprep.subr.bf16.mxu0 0
      %2157 = vmatpush1.bf16.msra.mxu0 0
      %2158 = vmatprep.mubr.bf16.mxu0 0
      %2159 = vmatmul.mubr.bf16.gmra.mrb[0].mxu0 %v1168
      %v2160 = vpop.f32.mrb[0].mxu0
      %v2161 = vadd.f32 0.0, %v2160
      %v2162 = vpop.f32.mrb[0].mxu0
      %v2163 = vpop.f32.mrb[0].mxu0
      %v2164 = vadd.f32 0.0, %v2163
      %v2165 = vpop.f32.mrb[0].mxu0
      %2166 = vmatprep.mubr.bf16.mxu0 0
      %2167 = vmatmul.mubr.bf16.gmra.mrb[0].mxu0 %v1171
      %v2168 = vpop.f32.mrb[0].mxu0
      %v2169 = vadd.f32 0.0, %v2168
      %v2170 = vpop.f32.mrb[0].mxu0
      %v2171 = vpop.f32.mrb[0].mxu0
      %v2172 = vadd.f32 0.0, %v2171
      %v2173 = vpop.f32.mrb[0].mxu0
      %2174 = vmatprep.mubr.bf16.mxu0 0
      %2175 = vmatmul.mubr.bf16.gmra.mrb[0].mxu0 %v1174
      %v2176 = vpop.f32.mrb[0].mxu0
      %v2177 = vadd.f32 0.0, %v2176
      %v2178 = vpop.f32.mrb[0].mxu0
      %v2179 = vpop.f32.mrb[0].mxu0
      %v2180 = vadd.f32 0.0, %v2179
      %v2181 = vpop.f32.mrb[0].mxu0
      %2182 = vmatprep.mubr.bf16.mxu0 0
      %2183 = vmatmul.mubr.bf16.gmra.mrb[0].mxu0 %v1177
      %v2184 = vpop.f32.mrb[0].mxu0
      %v2185 = vadd.f32 0.0, %v2184
      %v2186 = vpop.f32.mrb[0].mxu0
      %v2187 = vpop.f32.mrb[0].mxu0
      %v2188 = vadd.f32 0.0, %v2187
      %v2189 = vpop.f32.mrb[0].mxu0
      %2190 = vmatprep.mubr.bf16.mxu0 0
      %2191 = vmatmul.mubr.bf16.gmra.mrb[0].mxu0 %v1180
      %v2192 = vpop.f32.mrb[0].mxu0
      %v2193 = vadd.f32 0.0, %v2192
      %v2194 = vpop.f32.mrb[0].mxu0
      %v2195 = vpop.f32.mrb[0].mxu0
      %v2196 = vadd.f32 0.0, %v2195
      %v2197 = vpop.f32.mrb[0].mxu0
      %2198 = vmatprep.mubr.bf16.mxu0 0
      %2199 = vmatmul.mubr.bf16.gmra.mrb[0].mxu0 %v1183
      %v2200 = vpop.f32.mrb[0].mxu0
      %v2201 = vadd.f32 0.0, %v2200
      %v2202 = vpop.f32.mrb[0].mxu0
      %v2203 = vpop.f32.mrb[0].mxu0
      %v2204 = vadd.f32 0.0, %v2203
      %v2205 = vpop.f32.mrb[0].mxu0
      %2206 = vmatprep.mubr.bf16.mxu0 0
      %2207 = vmatmul.mubr.bf16.gmra.mrb[0].mxu0 %v1186
      %v2208 = vpop.f32.mrb[0].mxu0
      %v2209 = vadd.f32 0.0, %v2208
      %v2210 = vpop.f32.mrb[0].mxu0
      %v2211 = vpop.f32.mrb[0].mxu0
      %v2212 = vadd.f32 0.0, %v2211
      %v2213 = vpop.f32.mrb[0].mxu0
      %2214 = vmatprep.mubr.bf16.mxu0 0
      %2215 = vmatmul.mubr.bf16.gmra.mrb[0].mxu0 %v1189
      %v2216 = vpop.f32.mrb[0].mxu0
      %v2217 = vadd.f32 0.0, %v2216
      %v2218 = vpop.f32.mrb[0].mxu0
      %v2219 = vpop.f32.mrb[0].mxu0
      %v2220 = vadd.f32 0.0, %v2219
      %v2221 = vpop.f32.mrb[0].mxu0
      %2222 = vmatprep.mubr.bf16.mxu0 0
      %2223 = vmatmul.mubr.bf16.gmra.mrb[0].mxu0 %v1655
      %v2224 = vpop.f32.mrb[0].mxu0
      %v2225 = vadd.f32 0.0, %v2224
      %v2226 = vpop.f32.mrb[0].mxu0
      %v2227 = vpop.f32.mrb[0].mxu0
      %v2228 = vadd.f32 0.0, %v2227
      %v2229 = vpop.f32.mrb[0].mxu0
      %2230 = vmatprep.mubr.bf16.mxu0 0
      %2231 = vmatmul.mubr.bf16.gmra.mrb[0].mxu0 %v2121
      %v2232 = vpop.f32.mrb[0].mxu0
      %v2233 = vadd.f32 0.0, %v2232
      %v2234 = vpop.f32.mrb[0].mxu0
      %v2235 = vpop.f32.mrb[0].mxu0
      %v2236 = vadd.f32 0.0, %v2235
      %v2237 = vpop.f32.mrb[0].mxu0
      %2238 = vdwg.mxu0
      %v2239 = vadd.f32 %v2087, %v2161
      %v2240 = vadd.f32 %v2088, %v2164
      %v2241 = vadd.f32 %v2089, %v2169
      %v2242 = vadd.f32 %v2090, %v2172
      %v2243 = vadd.f32 %v2091, %v2177
      %v2244 = vadd.f32 %v2092, %v2180
      %v2245 = vadd.f32 %v2093, %v2185
      %v2246 = vadd.f32 %v2094, %v2188
      %v2247 = vadd.f32 %v2095, %v2193
      %v2248 = vadd.f32 %v2096, %v2196
      %v2249 = vadd.f32 %v2097, %v2201
      %v2250 = vadd.f32 %v2098, %v2204
      %v2251 = vadd.f32 %v2099, %v2209
      %v2252 = vadd.f32 %v2100, %v2212
      %v2253 = vadd.f32 %v2101, %v2217
      %v2254 = vadd.f32 %v2102, %v2220
      %v2255 = vadd.f32 %v2103, %v2225
      %v2256 = vadd.f32 %v2104, %v2228
      %v2257 = vadd.f32 %v2105, %v2233
      %v2258 = vadd.f32 %v2106, %v2236
      %v2259 = vld [vmem:[%s2] sm:$0x1]
      %v2261 = vlaneseq
      %v2262 = vshrl.u32 %v2261, 7
      %v2263 = vsub.s32 0, %v2262
      %v2264 = vrot.slane %v2259, %v2263
      %v2266 = vmul.f32 %v2239, %v2264
      %v2267 = vmul.f32 %v2240, %v2264
      %v2268 = vmul.f32 %v2241, %v2264
      %v2269 = vmul.f32 %v2242, %v2264
      %v2270 = vmul.f32 %v2243, %v2264
      %v2271 = vmul.f32 %v2244, %v2264
      %v2272 = vmul.f32 %v2245, %v2264
      %v2273 = vmul.f32 %v2246, %v2264
      %v2274 = vmul.f32 %v2247, %v2264
      %v2275 = vmul.f32 %v2248, %v2264
      %v2276 = vmul.f32 %v2249, %v2264
      %v2277 = vmul.f32 %v2250, %v2264
      %v2278 = vmul.f32 %v2251, %v2264
      %v2279 = vmul.f32 %v2252, %v2264
      %v2280 = vmul.f32 %v2253, %v2264
      %v2281 = vmul.f32 %v2254, %v2264
      %v2282 = vmul.f32 %v2255, %v2264
      %v2283 = vmul.f32 %v2256, %v2264
      %v2284 = vmul.f32 %v2257, %v2264
      %v2285 = vmul.f32 %v2258, %v2264
      %v2286 = vld [vmem:[%s3] sm:$0x1]
      %v2288 = vlaneseq
      %v2289 = vshrl.u32 %v2288, 7
      %v2290 = vsub.s32 0, %v2289
      %v2291 = vrot.slane %v2286, %v2290
      %v2293 = vadd.f32 %v2266, %v2291
      %v2294 = vadd.f32 %v2267, %v2291
      %v2295 = vadd.f32 %v2268, %v2291
      %v2296 = vadd.f32 %v2269, %v2291
      %v2297 = vadd.f32 %v2270, %v2291
      %v2298 = vadd.f32 %v2271, %v2291
      %v2299 = vadd.f32 %v2272, %v2291
      %v2300 = vadd.f32 %v2273, %v2291
      %v2301 = vadd.f32 %v2274, %v2291
      %v2302 = vadd.f32 %v2275, %v2291
      %v2303 = vadd.f32 %v2276, %v2291
      %v2304 = vadd.f32 %v2277, %v2291
      %v2305 = vadd.f32 %v2278, %v2291
      %v2306 = vadd.f32 %v2279, %v2291
      %v2307 = vadd.f32 %v2280, %v2291
      %v2308 = vadd.f32 %v2281, %v2291
      %v2309 = vadd.f32 %v2282, %v2291
      %v2310 = vadd.f32 %v2283, %v2291
      %v2311 = vadd.f32 %v2284, %v2291
      %v2312 = vadd.f32 %v2285, %v2291
      %v2313 = vmax.f32 %v2293, 0.0
      %v2314 = vmax.f32 %v2294, 0.0
      %v2315 = vmax.f32 %v2295, 0.0
      %v2316 = vmax.f32 %v2296, 0.0
      %v2317 = vmax.f32 %v2297, 0.0
      %v2318 = vmax.f32 %v2298, 0.0
      %v2319 = vmax.f32 %v2299, 0.0
      %v2320 = vmax.f32 %v2300, 0.0
      %v2321 = vmax.f32 %v2301, 0.0
      %v2322 = vmax.f32 %v2302, 0.0
      %v2323 = vmax.f32 %v2303, 0.0
      %v2324 = vmax.f32 %v2304, 0.0
      %v2325 = vmax.f32 %v2305, 0.0
      %v2326 = vmax.f32 %v2306, 0.0
      %v2327 = vmax.f32 %v2307, 0.0
      %v2328 = vmax.f32 %v2308, 0.0
      %v2329 = vmax.f32 %v2309, 0.0
      %v2330 = vmax.f32 %v2310, 0.0
      %v2331 = vmax.f32 %v2311, 0.0
      %v2332 = vmax.f32 %v2312, 0.0
      %s2333 = ssub.s32 %s386, 1
      %v2334 = vstv %s2333
      %v2335 = vadd.s32 %v2334, 1
      %v2336 = vadd.s32 %v2334, 2
      %v2337 = vadd.s32 %v2334, 3
      %v2338 = vadd.s32 %v2334, 4
      %v2339 = vadd.s32 %v2334, 5
      %v2340 = vadd.s32 %v2334, 6
      %v2341 = vadd.s32 %v2334, 7
      %v2342 = vadd.s32 %v2334, 8
      %v2343 = vadd.s32 %v2334, 9
      %vm2344 = vcmp.ge.s32.totalorder %v2334, 0
      %vm2345 = vcmp.ge.s32.totalorder %v2335, 0
      %vm2346 = vcmp.ge.s32.totalorder %v2336, 0
      %vm2347 = vcmp.ge.s32.totalorder %v2337, 0
      %vm2348 = vcmp.ge.s32.totalorder %v2338, 0
      %vm2349 = vcmp.ge.s32.totalorder %v2339, 0
      %vm2350 = vcmp.ge.s32.totalorder %v2340, 0
      %vm2351 = vcmp.ge.s32.totalorder %v2341, 0
      %vm2352 = vcmp.ge.s32.totalorder %v2342, 0
      %vm2353 = vcmp.ge.s32.totalorder %v2343, 0
      %vm2354 = vcmp.lt.s32.totalorder %v2334, 16
      %vm2355 = vcmp.lt.s32.totalorder %v2335, 16
      %vm2356 = vcmp.lt.s32.totalorder %v2336, 16
      %vm2357 = vcmp.lt.s32.totalorder %v2337, 16
      %vm2358 = vcmp.lt.s32.totalorder %v2338, 16
      %vm2359 = vcmp.lt.s32.totalorder %v2339, 16
      %vm2360 = vcmp.lt.s32.totalorder %v2340, 16
      %vm2361 = vcmp.lt.s32.totalorder %v2341, 16
      %vm2362 = vcmp.lt.s32.totalorder %v2342, 16
      %vm2363 = vcmp.lt.s32.totalorder %v2343, 16
      %vm2364 = vmand %vm2344, %vm2354
      %vm2365 = vmand %vm2345, %vm2355
      %vm2366 = vmand %vm2346, %vm2356
      %vm2367 = vmand %vm2347, %vm2357
      %vm2368 = vmand %vm2348, %vm2358
      %vm2369 = vmand %vm2349, %vm2359
      %vm2370 = vmand %vm2350, %vm2360
      %vm2371 = vmand %vm2351, %vm2361
      %vm2372 = vmand %vm2352, %vm2362
      %vm2373 = vmand %vm2353, %vm2363
      %v2374 = vsel %vm2364, %v2313, 0.0
      %v2375 = vsel %vm2364, %v2314, 0.0
      %v2376 = vsel %vm2365, %v2315, 0.0
      %v2377 = vsel %vm2365, %v2316, 0.0
      %v2378 = vsel %vm2366, %v2317, 0.0
      %v2379 = vsel %vm2366, %v2318, 0.0
      %v2380 = vsel %vm2367, %v2319, 0.0
      %v2381 = vsel %vm2367, %v2320, 0.0
      %v2382 = vsel %vm2368, %v2321, 0.0
      %v2383 = vsel %vm2368, %v2322, 0.0
      %v2384 = vsel %vm2369, %v2323, 0.0
      %v2385 = vsel %vm2369, %v2324, 0.0
      %v2386 = vsel %vm2370, %v2325, 0.0
      %v2387 = vsel %vm2370, %v2326, 0.0
      %v2388 = vsel %vm2371, %v2327, 0.0
      %v2389 = vsel %vm2371, %v2328, 0.0
      %v2390 = vsel %vm2372, %v2329, 0.0
      %v2391 = vsel %vm2372, %v2330, 0.0
      %v2392 = vsel %vm2373, %v2331, 0.0
      %v2393 = vsel %vm2373, %v2332, 0.0
      %v2394 = vpack.c.bf16 %v2375, %v2374
      %v2395 = vpack.c.bf16 %v2377, %v2376
      %v2396 = vpack.c.bf16 %v2379, %v2378
      %v2397 = vpack.c.bf16 %v2381, %v2380
      %v2398 = vpack.c.bf16 %v2383, %v2382
      %v2399 = vpack.c.bf16 %v2385, %v2384
      %v2400 = vpack.c.bf16 %v2387, %v2386
      %v2401 = vpack.c.bf16 %v2389, %v2388
      %v2402 = vpack.c.bf16 %v2391, %v2390
      %v2403 = vpack.c.bf16 %v2393, %v2392
      %vm2404 = vcmask 57344
      %vm2405 = vsmask.f32 256
      %vm2406 = vmand %vm2404, %vm2405
      %v2407 = vld [vmem:[#allocation2] sm:$0x1]
      %v2408 = vsel %vm2406, 0, %v2407
      %2409 = vst [vmem:[#allocation2] sm:$0x1] %v2408
      %v2410 = vld [vmem:[#allocation2 + $0xc] sm:$0x1]
      %v2411 = vsel %vm2406, 0, %v2410
      %2412 = vst [vmem:[#allocation2 + $0xc] sm:$0x1] %v2411
      %v2413 = vld [vmem:[#allocation2 + $0x18] sm:$0x1]
      %v2414 = vsel %vm2406, 0, %v2413
      %2415 = vst [vmem:[#allocation2 + $0x18] sm:$0x1] %v2414
      %v2416 = vld [vmem:[#allocation2 + $0x24] sm:$0x1]
      %v2417 = vsel %vm2406, 0, %v2416
      %2418 = vst [vmem:[#allocation2 + $0x24] sm:$0x1] %v2417
      %v2419 = vld [vmem:[#allocation2 + $0x30] sm:$0x1]
      %v2420 = vsel %vm2406, 0, %v2419
      %2421 = vst [vmem:[#allocation2 + $0x30] sm:$0x1] %v2420
      %v2422 = vld [vmem:[#allocation2 + $0x3c] sm:$0x1]
      %v2423 = vsel %vm2406, 0, %v2422
      %2424 = vst [vmem:[#allocation2 + $0x3c] sm:$0x1] %v2423
      %v2425 = vld [vmem:[#allocation2 + $0x48] sm:$0x1]
      %v2426 = vsel %vm2406, 0, %v2425
      %2427 = vst [vmem:[#allocation2 + $0x48] sm:$0x1] %v2426
      %v2428 = vld [vmem:[#allocation2 + $0x54] sm:$0x1]
      %v2429 = vsel %vm2406, 0, %v2428
      %2430 = vst [vmem:[#allocation2 + $0x54] sm:$0x1] %v2429
      %v2431 = vld [vmem:[#allocation2 + $0x60] sm:$0x1]
      %v2432 = vsel %vm2406, 0, %v2431
      %2433 = vst [vmem:[#allocation2 + $0x60] sm:$0x1] %v2432
      %v2434 = vld [vmem:[#allocation2 + $0x6c] sm:$0x1]
      %v2435 = vsel %vm2406, 0, %v2434
      %2436 = vst [vmem:[#allocation2 + $0x6c] sm:$0x1] %v2435
      %vm2437 = vsmask.f32 7938
      %vm2438 = vmand %vm2404, %vm2437
      %v2439 = vld [vmem:[#allocation2 + $0x8] sm:$0x1]
      %v2440 = vsel %vm2438, 0, %v2439
      %2441 = vst [vmem:[#allocation2 + $0x8] sm:$0x1] %v2440
      %v2442 = vld [vmem:[#allocation2 + $0x14] sm:$0x1]
      %v2443 = vsel %vm2438, 0, %v2442
      %2444 = vst [vmem:[#allocation2 + $0x14] sm:$0x1] %v2443
      %v2445 = vld [vmem:[#allocation2 + $0x20] sm:$0x1]
      %v2446 = vsel %vm2438, 0, %v2445
      %2447 = vst [vmem:[#allocation2 + $0x20] sm:$0x1] %v2446
      %v2448 = vld [vmem:[#allocation2 + $0x2c] sm:$0x1]
      %v2449 = vsel %vm2438, 0, %v2448
      %2450 = vst [vmem:[#allocation2 + $0x2c] sm:$0x1] %v2449
      %v2451 = vld [vmem:[#allocation2 + $0x38] sm:$0x1]
      %v2452 = vsel %vm2438, 0, %v2451
      %2453 = vst [vmem:[#allocation2 + $0x38] sm:$0x1] %v2452
      %v2454 = vld [vmem:[#allocation2 + $0x44] sm:$0x1]
      %v2455 = vsel %vm2438, 0, %v2454
      %2456 = vst [vmem:[#allocation2 + $0x44] sm:$0x1] %v2455
      %v2457 = vld [vmem:[#allocation2 + $0x50] sm:$0x1]
      %v2458 = vsel %vm2438, 0, %v2457
      %2459 = vst [vmem:[#allocation2 + $0x50] sm:$0x1] %v2458
      %v2460 = vld [vmem:[#allocation2 + $0x5c] sm:$0x1]
      %v2461 = vsel %vm2438, 0, %v2460
      %2462 = vst [vmem:[#allocation2 + $0x5c] sm:$0x1] %v2461
      %v2463 = vld [vmem:[#allocation2 + $0x68] sm:$0x1]
      %v2464 = vsel %vm2438, 0, %v2463
      %2465 = vst [vmem:[#allocation2 + $0x68] sm:$0x1] %v2464
      %v2466 = vld [vmem:[#allocation2 + $0x74] sm:$0x1]
      %v2467 = vsel %vm2438, 0, %v2466
      %2468 = vst [vmem:[#allocation2 + $0x74] sm:$0x1] %v2467
      %v2479 = vunpack.c.l.b16 %v2394
      %v2480 = vunpack.c.h.b16 %v2394
      %v2481 = vunpack.c.l.b16 %v2395
      %v2482 = vunpack.c.h.b16 %v2395
      %v2483 = vunpack.c.l.b16 %v2396
      %v2484 = vunpack.c.h.b16 %v2396
      %v2485 = vunpack.c.l.b16 %v2397
      %v2486 = vunpack.c.h.b16 %v2397
      %v2487 = vunpack.c.l.b16 %v2398
      %v2488 = vunpack.c.h.b16 %v2398
      %v2489 = vunpack.c.l.b16 %v2399
      %v2490 = vunpack.c.h.b16 %v2399
      %v2491 = vunpack.c.l.b16 %v2400
      %v2492 = vunpack.c.h.b16 %v2400
      %v2493 = vunpack.c.l.b16 %v2401
      %v2494 = vunpack.c.h.b16 %v2401
      %v2495 = vunpack.c.l.b16 %v2402
      %v2496 = vunpack.c.h.b16 %v2402
      %v2497 = vunpack.c.l.b16 %v2403
      %v2498 = vunpack.c.h.b16 %v2403
      %v2499 = vpack.c.b16 %v2479, %v2479
      %v2500 = vpack.c.b16 %v2480, %v2480
      %v2501 = vpack.c.b16 %v2481, %v2481
      %v2502 = vpack.c.b16 %v2482, %v2482
      %v2503 = vpack.c.b16 %v2483, %v2483
      %v2504 = vpack.c.b16 %v2484, %v2484
      %v2505 = vpack.c.b16 %v2485, %v2485
      %v2506 = vpack.c.b16 %v2486, %v2486
      %v2507 = vpack.c.b16 %v2487, %v2487
      %v2508 = vpack.c.b16 %v2488, %v2488
      %v2509 = vpack.c.b16 %v2489, %v2489
      %v2510 = vpack.c.b16 %v2490, %v2490
      %v2511 = vpack.c.b16 %v2491, %v2491
      %v2512 = vpack.c.b16 %v2492, %v2492
      %v2513 = vpack.c.b16 %v2493, %v2493
      %v2514 = vpack.c.b16 %v2494, %v2494
      %v2515 = vpack.c.b16 %v2495, %v2495
      %v2516 = vpack.c.b16 %v2496, %v2496
      %v2517 = vpack.c.b16 %v2497, %v2497
      %v2518 = vpack.c.b16 %v2498, %v2498
      %vm2519 = vsmask.f32 4368
      %vm2520 = vmor %vm2405, %vm2519
      %v2522 = vshrl.u32 %v2499, 16
      %v2524 = vrot.slane %v2522, 7
      %v2525 = vshll.u32 %v2499, 16
      %v2527 = vor.u32 %v2524, %v2525
      %v2528 = vrot.slane %v2524, 4
      %v2530 = vshrl.u32 %v2500, 16
      %v2532 = vrot.slane %v2530, 7
      %v2533 = vshll.u32 %v2500, 16
      %v2535 = vor.u32 %v2532, %v2533
      %v2536 = vsel %vm2520, %v2528, %v2535
      %v2537 = vrot.slane %v2532, 4
      %v2539 = vshrl.u32 %v2501, 16
      %v2541 = vrot.slane %v2539, 7
      %v2542 = vshll.u32 %v2501, 16
      %v2544 = vor.u32 %v2541, %v2542
      %v2545 = vrot.slane %v2541, 4
      %v2547 = vshrl.u32 %v2502, 16
      %v2549 = vrot.slane %v2547, 7
      %v2550 = vshll.u32 %v2502, 16
      %v2552 = vor.u32 %v2549, %v2550
      %v2553 = vsel %vm2520, %v2545, %v2552
      %v2554 = vrot.slane %v2549, 4
      %v2556 = vshrl.u32 %v2503, 16
      %v2558 = vrot.slane %v2556, 7
      %v2559 = vshll.u32 %v2503, 16
      %v2561 = vor.u32 %v2558, %v2559
      %v2562 = vrot.slane %v2558, 4
      %v2564 = vshrl.u32 %v2504, 16
      %v2566 = vrot.slane %v2564, 7
      %v2567 = vshll.u32 %v2504, 16
      %v2569 = vor.u32 %v2566, %v2567
      %v2570 = vsel %vm2520, %v2562, %v2569
      %v2571 = vrot.slane %v2566, 4
      %v2573 = vshrl.u32 %v2505, 16
      %v2575 = vrot.slane %v2573, 7
      %v2576 = vshll.u32 %v2505, 16
      %v2578 = vor.u32 %v2575, %v2576
      %v2579 = vrot.slane %v2575, 4
      %v2581 = vshrl.u32 %v2506, 16
      %v2583 = vrot.slane %v2581, 7
      %v2584 = vshll.u32 %v2506, 16
      %v2586 = vor.u32 %v2583, %v2584
      %v2587 = vsel %vm2520, %v2579, %v2586
      %v2588 = vrot.slane %v2583, 4
      %v2590 = vshrl.u32 %v2507, 16
      %v2592 = vrot.slane %v2590, 7
      %v2593 = vshll.u32 %v2507, 16
      %v2595 = vor.u32 %v2592, %v2593
      %v2596 = vrot.slane %v2592, 4
      %v2598 = vshrl.u32 %v2508, 16
      %v2600 = vrot.slane %v2598, 7
      %v2601 = vshll.u32 %v2508, 16
      %v2603 = vor.u32 %v2600, %v2601
      %v2604 = vsel %vm2520, %v2596, %v2603
      %v2605 = vrot.slane %v2600, 4
      %v2607 = vshrl.u32 %v2509, 16
      %v2609 = vrot.slane %v2607, 7
      %v2610 = vshll.u32 %v2509, 16
      %v2612 = vor.u32 %v2609, %v2610
      %v2613 = vrot.slane %v2609, 4
      %v2615 = vshrl.u32 %v2510, 16
      %v2617 = vrot.slane %v2615, 7
      %v2618 = vshll.u32 %v2510, 16
      %v2620 = vor.u32 %v2617, %v2618
      %v2621 = vsel %vm2520, %v2613, %v2620
      %v2622 = vrot.slane %v2617, 4
      %v2624 = vshrl.u32 %v2511, 16
      %v2626 = vrot.slane %v2624, 7
      %v2627 = vshll.u32 %v2511, 16
      %v2629 = vor.u32 %v2626, %v2627
      %v2630 = vrot.slane %v2626, 4
      %v2632 = vshrl.u32 %v2512, 16
      %v2634 = vrot.slane %v2632, 7
      %v2635 = vshll.u32 %v2512, 16
      %v2637 = vor.u32 %v2634, %v2635
      %v2638 = vsel %vm2520, %v2630, %v2637
      %v2639 = vrot.slane %v2634, 4
      %v2641 = vshrl.u32 %v2513, 16
      %v2643 = vrot.slane %v2641, 7
      %v2644 = vshll.u32 %v2513, 16
      %v2646 = vor.u32 %v2643, %v2644
      %v2647 = vrot.slane %v2643, 4
      %v2649 = vshrl.u32 %v2514, 16
      %v2651 = vrot.slane %v2649, 7
      %v2652 = vshll.u32 %v2514, 16
      %v2654 = vor.u32 %v2651, %v2652
      %v2655 = vsel %vm2520, %v2647, %v2654
      %v2656 = vrot.slane %v2651, 4
      %v2658 = vshrl.u32 %v2515, 16
      %v2660 = vrot.slane %v2658, 7
      %v2661 = vshll.u32 %v2515, 16
      %v2663 = vor.u32 %v2660, %v2661
      %v2664 = vrot.slane %v2660, 4
      %v2666 = vshrl.u32 %v2516, 16
      %v2668 = vrot.slane %v2666, 7
      %v2669 = vshll.u32 %v2516, 16
      %v2671 = vor.u32 %v2668, %v2669
      %v2672 = vsel %vm2520, %v2664, %v2671
      %v2673 = vrot.slane %v2668, 4
      %v2675 = vshrl.u32 %v2517, 16
      %v2677 = vrot.slane %v2675, 7
      %v2678 = vshll.u32 %v2517, 16
      %v2680 = vor.u32 %v2677, %v2678
      %v2681 = vrot.slane %v2677, 4
      %v2683 = vshrl.u32 %v2518, 16
      %v2685 = vrot.slane %v2683, 7
      %v2686 = vshll.u32 %v2518, 16
      %v2688 = vor.u32 %v2685, %v2686
      %v2689 = vsel %vm2520, %v2681, %v2688
      %v2690 = vrot.slane %v2685, 4
      %vm2721 = vcmask 60416
      %vm2722 = vmand %vm2721, %vm2437
      %v2723 = vld [vmem:[#allocation2] sm:$0xf]
      %v2724 = vsel %vm2722, %v2527, %v2723
      %2725 = vst [vmem:[#allocation2] sm:$0xf] %v2724
      %vm2726 = vcmask 60416
      %2727 = vst.msk [vmem:[#allocation2 + $0x4] sm:$0xf] %vm2726, %v2536
      %v2728 = vld [vmem:[#allocation2 + $0x8] sm:$0x1]
      %v2729 = vsel %vm2406, %v2537, %v2728
      %2730 = vst [vmem:[#allocation2 + $0x8] sm:$0x1] %v2729
      %v2731 = vld [vmem:[#allocation2 + $0xc] sm:$0xf]
      %v2732 = vsel %vm2722, %v2544, %v2731
      %2733 = vst [vmem:[#allocation2 + $0xc] sm:$0xf] %v2732
      %2734 = vst.msk [vmem:[#allocation2 + $0x10] sm:$0xf] %vm2726, %v2553
      %v2735 = vld [vmem:[#allocation2 + $0x14] sm:$0x1]
      %v2736 = vsel %vm2406, %v2554, %v2735
      %2737 = vst [vmem:[#allocation2 + $0x14] sm:$0x1] %v2736
      %v2738 = vld [vmem:[#allocation2 + $0x18] sm:$0xf]
      %v2739 = vsel %vm2722, %v2561, %v2738
      %2740 = vst [vmem:[#allocation2 + $0x18] sm:$0xf] %v2739
      %2741 = vst.msk [vmem:[#allocation2 + $0x1c] sm:$0xf] %vm2726, %v2570
      %v2742 = vld [vmem:[#allocation2 + $0x20] sm:$0x1]
      %v2743 = vsel %vm2406, %v2571, %v2742
      %2744 = vst [vmem:[#allocation2 + $0x20] sm:$0x1] %v2743
      %v2745 = vld [vmem:[#allocation2 + $0x24] sm:$0xf]
      %v2746 = vsel %vm2722, %v2578, %v2745
      %2747 = vst [vmem:[#allocation2 + $0x24] sm:$0xf] %v2746
      %2748 = vst.msk [vmem:[#allocation2 + $0x28] sm:$0xf] %vm2726, %v2587
      %v2749 = vld [vmem:[#allocation2 + $0x2c] sm:$0x1]
      %v2750 = vsel %vm2406, %v2588, %v2749
      %2751 = vst [vmem:[#allocation2 + $0x2c] sm:$0x1] %v2750
      %v2752 = vld [vmem:[#allocation2 + $0x30] sm:$0xf]
      %v2753 = vsel %vm2722, %v2595, %v2752
      %2754 = vst [vmem:[#allocation2 + $0x30] sm:$0xf] %v2753
      %2755 = vst.msk [vmem:[#allocation2 + $0x34] sm:$0xf] %vm2726, %v2604
      %v2756 = vld [vmem:[#allocation2 + $0x38] sm:$0x1]
      %v2757 = vsel %vm2406, %v2605, %v2756
      %2758 = vst [vmem:[#allocation2 + $0x38] sm:$0x1] %v2757
      %v2759 = vld [vmem:[#allocation2 + $0x3c] sm:$0xf]
      %v2760 = vsel %vm2722, %v2612, %v2759
      %2761 = vst [vmem:[#allocation2 + $0x3c] sm:$0xf] %v2760
      %2762 = vst.msk [vmem:[#allocation2 + $0x40] sm:$0xf] %vm2726, %v2621
      %v2763 = vld [vmem:[#allocation2 + $0x44] sm:$0x1]
      %v2764 = vsel %vm2406, %v2622, %v2763
      %2765 = vst [vmem:[#allocation2 + $0x44] sm:$0x1] %v2764
      %v2766 = vld [vmem:[#allocation2 + $0x48] sm:$0xf]
      %v2767 = vsel %vm2722, %v2629, %v2766
      %2768 = vst [vmem:[#allocation2 + $0x48] sm:$0xf] %v2767
      %2769 = vst.msk [vmem:[#allocation2 + $0x4c] sm:$0xf] %vm2726, %v2638
      %v2770 = vld [vmem:[#allocation2 + $0x50] sm:$0x1]
      %v2771 = vsel %vm2406, %v2639, %v2770
      %2772 = vst [vmem:[#allocation2 + $0x50] sm:$0x1] %v2771
      %v2773 = vld [vmem:[#allocation2 + $0x54] sm:$0xf]
      %v2774 = vsel %vm2722, %v2646, %v2773
      %2775 = vst [vmem:[#allocation2 + $0x54] sm:$0xf] %v2774
      %2776 = vst.msk [vmem:[#allocation2 + $0x58] sm:$0xf] %vm2726, %v2655
      %v2777 = vld [vmem:[#allocation2 + $0x5c] sm:$0x1]
      %v2778 = vsel %vm2406, %v2656, %v2777
      %2779 = vst [vmem:[#allocation2 + $0x5c] sm:$0x1] %v2778
      %v2780 = vld [vmem:[#allocation2 + $0x60] sm:$0xf]
      %v2781 = vsel %vm2722, %v2663, %v2780
      %2782 = vst [vmem:[#allocation2 + $0x60] sm:$0xf] %v2781
      %2783 = vst.msk [vmem:[#allocation2 + $0x64] sm:$0xf] %vm2726, %v2672
      %v2784 = vld [vmem:[#allocation2 + $0x68] sm:$0x1]
      %v2785 = vsel %vm2406, %v2673, %v2784
      %2786 = vst [vmem:[#allocation2 + $0x68] sm:$0x1] %v2785
      %v2787 = vld [vmem:[#allocation2 + $0x6c] sm:$0xf]
      %v2788 = vsel %vm2722, %v2680, %v2787
      %2789 = vst [vmem:[#allocation2 + $0x6c] sm:$0xf] %v2788
      %2790 = vst.msk [vmem:[#allocation2 + $0x70] sm:$0xf] %vm2726, %v2689
      %v2791 = vld [vmem:[#allocation2 + $0x74] sm:$0x1]
      %v2792 = vsel %vm2406, %v2690, %v2791
      %2793 = vst [vmem:[#allocation2 + $0x74] sm:$0x1] %v2792
      %v2794 = vld [vmem:[#allocation2] sm:$0xf]
      %v2795 = vld [vmem:[#allocation2 + $0x4] sm:$0xf]
      %v2796 = vld [vmem:[#allocation2 + $0x8] sm:$0x1]
      %v2797 = vld [vmem:[#allocation2 + $0xc] sm:$0xf]
      %v2798 = vld [vmem:[#allocation2 + $0x10] sm:$0xf]
      %v2799 = vld [vmem:[#allocation2 + $0x14] sm:$0x1]
      %v2800 = vld [vmem:[#allocation2 + $0x18] sm:$0xf]
      %v2801 = vld [vmem:[#allocation2 + $0x1c] sm:$0xf]
      %v2802 = vld [vmem:[#allocation2 + $0x20] sm:$0x1]
      %v2803 = vld [vmem:[#allocation2 + $0x24] sm:$0xf]
      %v2804 = vld [vmem:[#allocation2 + $0x28] sm:$0xf]
      %v2805 = vld [vmem:[#allocation2 + $0x2c] sm:$0x1]
      %v2806 = vld [vmem:[#allocation2 + $0x30] sm:$0xf]
      %v2807 = vld [vmem:[#allocation2 + $0x34] sm:$0xf]
      %v2808 = vld [vmem:[#allocation2 + $0x38] sm:$0x1]
      %v2809 = vld [vmem:[#allocation2 + $0x3c] sm:$0xf]
      %v2810 = vld [vmem:[#allocation2 + $0x40] sm:$0xf]
      %v2811 = vld [vmem:[#allocation2 + $0x44] sm:$0x1]
      %v2812 = vld [vmem:[#allocation2 + $0x48] sm:$0xf]
      %v2813 = vld [vmem:[#allocation2 + $0x4c] sm:$0xf]
      %v2814 = vld [vmem:[#allocation2 + $0x50] sm:$0x1]
      %v2815 = vld [vmem:[#allocation2 + $0x54] sm:$0xf]
      %v2816 = vld [vmem:[#allocation2 + $0x58] sm:$0xf]
      %v2817 = vld [vmem:[#allocation2 + $0x5c] sm:$0x1]
      %v2818 = vld [vmem:[#allocation2 + $0x60] sm:$0xf]
      %v2819 = vld [vmem:[#allocation2 + $0x64] sm:$0xf]
      %v2820 = vld [vmem:[#allocation2 + $0x68] sm:$0x1]
      %v2821 = vld [vmem:[#allocation2 + $0x6c] sm:$0xf]
      %v2822 = vld [vmem:[#allocation2 + $0x70] sm:$0xf]
      %v2823 = vld [vmem:[#allocation2 + $0x74] sm:$0x1]
      %v2824 = vld [vmem:[%s4] sm:$0xf]
      %v2826 = vshrl.u32 %v2794, 16
      %v2828 = vrot.slane %v2826, 4
      %v2829 = vshll.u32 %v2794, 16
      %v2831 = vrot.slane %v2829, 5
      %v2832 = vor.u32 %v2828, %v2831
      %v2833 = vrot.slane %v2832, 4
      %v2835 = vshll.u32 %v2795, 16
      %v2837 = vrot.slane %v2835, 5
      %v2838 = vsel %vm429, %v2833, %v2837
      %v2839 = vshrl.u32 %v2795, 16
      %v2841 = vrot.slane %v2839, 4
      %v2842 = vor.u32 %v2841, %v2837
      %v2843 = vrot.slane %v2842, 4
      %v2845 = vshll.u32 %v2796, 16
      %v2847 = vrot.slane %v2845, 5
      %v2848 = vsel %vm429, %v2843, %v2847
      %v2850 = vshrl.u32 %v2797, 16
      %v2852 = vrot.slane %v2850, 4
      %v2853 = vshll.u32 %v2797, 16
      %v2855 = vrot.slane %v2853, 5
      %v2856 = vor.u32 %v2852, %v2855
      %v2857 = vrot.slane %v2856, 4
      %v2859 = vshll.u32 %v2798, 16
      %v2861 = vrot.slane %v2859, 5
      %v2862 = vsel %vm429, %v2857, %v2861
      %v2863 = vshrl.u32 %v2798, 16
      %v2865 = vrot.slane %v2863, 4
      %v2866 = vor.u32 %v2865, %v2861
      %v2867 = vrot.slane %v2866, 4
      %v2869 = vshll.u32 %v2799, 16
      %v2871 = vrot.slane %v2869, 5
      %v2872 = vsel %vm429, %v2867, %v2871
      %v2874 = vshrl.u32 %v2800, 16
      %v2876 = vrot.slane %v2874, 4
      %v2877 = vshll.u32 %v2800, 16
      %v2879 = vrot.slane %v2877, 5
      %v2880 = vor.u32 %v2876, %v2879
      %v2881 = vrot.slane %v2880, 4
      %v2883 = vshll.u32 %v2801, 16
      %v2885 = vrot.slane %v2883, 5
      %v2886 = vsel %vm429, %v2881, %v2885
      %v2887 = vshrl.u32 %v2801, 16
      %v2889 = vrot.slane %v2887, 4
      %v2890 = vor.u32 %v2889, %v2885
      %v2891 = vrot.slane %v2890, 4
      %v2893 = vshll.u32 %v2802, 16
      %v2895 = vrot.slane %v2893, 5
      %v2896 = vsel %vm429, %v2891, %v2895
      %v2898 = vshrl.u32 %v2803, 16
      %v2900 = vrot.slane %v2898, 4
      %v2901 = vshll.u32 %v2803, 16
      %v2903 = vrot.slane %v2901, 5
      %v2904 = vor.u32 %v2900, %v2903
      %v2905 = vrot.slane %v2904, 4
      %v2907 = vshll.u32 %v2804, 16
      %v2909 = vrot.slane %v2907, 5
      %v2910 = vsel %vm429, %v2905, %v2909
      %v2911 = vshrl.u32 %v2804, 16
      %v2913 = vrot.slane %v2911, 4
      %v2914 = vor.u32 %v2913, %v2909
      %v2915 = vrot.slane %v2914, 4
      %v2917 = vshll.u32 %v2805, 16
      %v2919 = vrot.slane %v2917, 5
      %v2920 = vsel %vm429, %v2915, %v2919
      %v2922 = vshrl.u32 %v2806, 16
      %v2924 = vrot.slane %v2922, 4
      %v2925 = vshll.u32 %v2806, 16
      %v2927 = vrot.slane %v2925, 5
      %v2928 = vor.u32 %v2924, %v2927
      %v2929 = vrot.slane %v2928, 4
      %v2931 = vshll.u32 %v2807, 16
      %v2933 = vrot.slane %v2931, 5
      %v2934 = vsel %vm429, %v2929, %v2933
      %v2935 = vshrl.u32 %v2807, 16
      %v2937 = vrot.slane %v2935, 4
      %v2938 = vor.u32 %v2937, %v2933
      %v2939 = vrot.slane %v2938, 4
      %v2941 = vshll.u32 %v2808, 16
      %v2943 = vrot.slane %v2941, 5
      %v2944 = vsel %vm429, %v2939, %v2943
      %v2946 = vshrl.u32 %v2809, 16
      %v2948 = vrot.slane %v2946, 4
      %v2949 = vshll.u32 %v2809, 16
      %v2951 = vrot.slane %v2949, 5
      %v2952 = vor.u32 %v2948, %v2951
      %v2953 = vrot.slane %v2952, 4
      %v2955 = vshll.u32 %v2810, 16
      %v2957 = vrot.slane %v2955, 5
      %v2958 = vsel %vm429, %v2953, %v2957
      %v2959 = vshrl.u32 %v2810, 16
      %v2961 = vrot.slane %v2959, 4
      %v2962 = vor.u32 %v2961, %v2957
      %v2963 = vrot.slane %v2962, 4
      %v2965 = vshll.u32 %v2811, 16
      %v2967 = vrot.slane %v2965, 5
      %v2968 = vsel %vm429, %v2963, %v2967
      %v2970 = vshrl.u32 %v2812, 16
      %v2972 = vrot.slane %v2970, 4
      %v2973 = vshll.u32 %v2812, 16
      %v2975 = vrot.slane %v2973, 5
      %v2976 = vor.u32 %v2972, %v2975
      %v2977 = vrot.slane %v2976, 4
      %v2979 = vshll.u32 %v2813, 16
      %v2981 = vrot.slane %v2979, 5
      %v2982 = vsel %vm429, %v2977, %v2981
      %v2983 = vshrl.u32 %v2813, 16
      %v2985 = vrot.slane %v2983, 4
      %v2986 = vor.u32 %v2985, %v2981
      %v2987 = vrot.slane %v2986, 4
      %v2989 = vshll.u32 %v2814, 16
      %v2991 = vrot.slane %v2989, 5
      %v2992 = vsel %vm429, %v2987, %v2991
      %v2994 = vshrl.u32 %v2815, 16
      %v2996 = vrot.slane %v2994, 4
      %v2997 = vshll.u32 %v2815, 16
      %v2999 = vrot.slane %v2997, 5
      %v3000 = vor.u32 %v2996, %v2999
      %v3001 = vrot.slane %v3000, 4
      %v3003 = vshll.u32 %v2816, 16
      %v3005 = vrot.slane %v3003, 5
      %v3006 = vsel %vm429, %v3001, %v3005
      %v3007 = vshrl.u32 %v2816, 16
      %v3009 = vrot.slane %v3007, 4
      %v3010 = vor.u32 %v3009, %v3005
      %v3011 = vrot.slane %v3010, 4
      %v3013 = vshll.u32 %v2817, 16
      %v3015 = vrot.slane %v3013, 5
      %v3016 = vsel %vm429, %v3011, %v3015
      %s3017 = scalar_lea.vmem %s4, 4
      %v3018 = vld [vmem:[%s3017] sm:$0xf]
      %v3019 = vunpack.c.l.b16 %v2838
      %v3020 = vunpack.c.l.b16 %v2848
      %v3021 = vunpack.c.l.b16 %v2862
      %v3022 = vunpack.c.l.b16 %v2872
      %v3023 = vunpack.c.l.b16 %v2886
      %v3024 = vunpack.c.l.b16 %v2896
      %v3025 = vunpack.c.l.b16 %v2910
      %v3026 = vunpack.c.l.b16 %v2920
      %v3027 = vunpack.c.l.b16 %v2934
      %v3028 = vunpack.c.l.b16 %v2944
      %v3029 = vunpack.c.l.b16 %v2958
      %v3030 = vunpack.c.l.b16 %v2968
      %v3031 = vunpack.c.l.b16 %v2982
      %v3032 = vunpack.c.l.b16 %v2992
      %v3033 = vunpack.c.l.b16 %v3006
      %v3034 = vunpack.c.l.b16 %v3016
      %v3035 = vpack.c.b16 %v3020, %v3019
      %v3036 = vpack.c.b16 %v3022, %v3021
      %v3037 = vpack.c.b16 %v3024, %v3023
      %v3038 = vpack.c.b16 %v3026, %v3025
      %v3039 = vpack.c.b16 %v3028, %v3027
      %v3040 = vpack.c.b16 %v3030, %v3029
      %v3041 = vpack.c.b16 %v3032, %v3031
      %v3042 = vpack.c.b16 %v3034, %v3033
      %vm3043 = vcmask 64512
      %v3045 = vsel %vm3043, %v3035, 0
      %v3048 = vsel %vm3043, %v3036, 0
      %v3051 = vsel %vm3043, %v3037, 0
      %v3054 = vsel %vm3043, %v3038, 0
      %v3057 = vsel %vm3043, %v3039, 0
      %v3060 = vsel %vm3043, %v3040, 0
      %v3063 = vsel %vm3043, %v3041, 0
      %v3066 = vsel %vm3043, %v3042, 0
      %vm3068 = vcmask 1043456
      %v3070 = vsel %vm3068, %v3018, 0
      %3072 = vmatprep.subr.bf16.mxu0 0
      %3073 = vmatpush1.bf16.msra.mxu0 %v3070
      %3074 = vmatprep.subr.bf16.mxu0 0
      %3075 = vmatpush1.bf16.msra.mxu0 0
      %3076 = vmatprep.subr.bf16.mxu0 0
      %3077 = vmatpush1.bf16.msra.mxu0 0
      %3078 = vmatprep.subr.bf16.mxu0 0
      %3079 = vmatpush1.bf16.msra.mxu0 0
      %3080 = vmatprep.subr.bf16.mxu0 0
      %3081 = vmatpush1.bf16.msra.mxu0 0
      %3082 = vmatprep.subr.bf16.mxu0 0
      %3083 = vmatpush1.bf16.msra.mxu0 0
      %3084 = vmatprep.subr.bf16.mxu0 0
      %3085 = vmatpush1.bf16.msra.mxu0 0
      %3086 = vmatprep.subr.bf16.mxu0 0
      %3087 = vmatpush1.bf16.msra.mxu0 0
      %3088 = vmatprep.subr.bf16.mxu0 0
      %3089 = vmatpush1.bf16.msra.mxu0 0
      %3090 = vmatprep.subr.bf16.mxu0 0
      %3091 = vmatpush1.bf16.msra.mxu0 0
      %3092 = vmatprep.subr.bf16.mxu0 0
      %3093 = vmatpush1.bf16.msra.mxu0 0
      %3094 = vmatprep.subr.bf16.mxu0 0
      %3095 = vmatpush1.bf16.msra.mxu0 0
      %3096 = vmatprep.subr.bf16.mxu0 0
      %3097 = vmatpush1.bf16.msra.mxu0 0
      %3098 = vmatprep.subr.bf16.mxu0 0
      %3099 = vmatpush1.bf16.msra.mxu0 0
      %3100 = vmatprep.subr.bf16.mxu0 0
      %3101 = vmatpush1.bf16.msra.mxu0 0
      %3102 = vmatprep.subr.bf16.mxu0 0
      %3103 = vmatpush1.bf16.msra.mxu0 0
      %3104 = vmatprep.mubr.bf16.mxu0 0
      %3105 = vmatmul.mubr.bf16.gmra.mrb[0].mxu0 %v3045
      %v3106 = vpop.f32.mrb[0].mxu0
      %v3107 = vadd.f32 0.0, %v3106
      %v3108 = vpop.f32.mrb[0].mxu0
      %v3109 = vpop.f32.mrb[0].mxu0
      %v3110 = vadd.f32 0.0, %v3109
      %v3111 = vpop.f32.mrb[0].mxu0
      %3112 = vmatprep.mubr.bf16.mxu0 0
      %3113 = vmatmul.mubr.bf16.gmra.mrb[0].mxu0 %v3048
      %v3114 = vpop.f32.mrb[0].mxu0
      %v3115 = vadd.f32 0.0, %v3114
      %v3116 = vpop.f32.mrb[0].mxu0
      %v3117 = vpop.f32.mrb[0].mxu0
      %v3118 = vadd.f32 0.0, %v3117
      %v3119 = vpop.f32.mrb[0].mxu0
      %3120 = vmatprep.mubr.bf16.mxu0 0
      %3121 = vmatmul.mubr.bf16.gmra.mrb[0].mxu0 %v3051
      %v3122 = vpop.f32.mrb[0].mxu0
      %v3123 = vadd.f32 0.0, %v3122
      %v3124 = vpop.f32.mrb[0].mxu0
      %v3125 = vpop.f32.mrb[0].mxu0
      %v3126 = vadd.f32 0.0, %v3125
      %v3127 = vpop.f32.mrb[0].mxu0
      %3128 = vmatprep.mubr.bf16.mxu0 0
      %3129 = vmatmul.mubr.bf16.gmra.mrb[0].mxu0 %v3054
      %v3130 = vpop.f32.mrb[0].mxu0
      %v3131 = vadd.f32 0.0, %v3130
      %v3132 = vpop.f32.mrb[0].mxu0
      %v3133 = vpop.f32.mrb[0].mxu0
      %v3134 = vadd.f32 0.0, %v3133
      %v3135 = vpop.f32.mrb[0].mxu0
      %3136 = vmatprep.mubr.bf16.mxu0 0
      %3137 = vmatmul.mubr.bf16.gmra.mrb[0].mxu0 %v3057
      %v3138 = vpop.f32.mrb[0].mxu0
      %v3139 = vadd.f32 0.0, %v3138
      %v3140 = vpop.f32.mrb[0].mxu0
      %v3141 = vpop.f32.mrb[0].mxu0
      %v3142 = vadd.f32 0.0, %v3141
      %v3143 = vpop.f32.mrb[0].mxu0
      %3144 = vmatprep.mubr.bf16.mxu0 0
      %3145 = vmatmul.mubr.bf16.gmra.mrb[0].mxu0 %v3060
      %v3146 = vpop.f32.mrb[0].mxu0
      %v3147 = vadd.f32 0.0, %v3146
      %v3148 = vpop.f32.mrb[0].mxu0
      %v3149 = vpop.f32.mrb[0].mxu0
      %v3150 = vadd.f32 0.0, %v3149
      %v3151 = vpop.f32.mrb[0].mxu0
      %3152 = vmatprep.mubr.bf16.mxu0 0
      %3153 = vmatmul.mubr.bf16.gmra.mrb[0].mxu0 %v3063
      %v3154 = vpop.f32.mrb[0].mxu0
      %v3155 = vadd.f32 0.0, %v3154
      %v3156 = vpop.f32.mrb[0].mxu0
      %v3157 = vpop.f32.mrb[0].mxu0
      %v3158 = vadd.f32 0.0, %v3157
      %v3159 = vpop.f32.mrb[0].mxu0
      %3160 = vmatprep.mubr.bf16.mxu0 0
      %3161 = vmatmul.mubr.bf16.gmra.mrb[0].mxu0 %v3066
      %v3162 = vpop.f32.mrb[0].mxu0
      %v3163 = vadd.f32 0.0, %v3162
      %v3164 = vpop.f32.mrb[0].mxu0
      %v3165 = vpop.f32.mrb[0].mxu0
      %v3166 = vadd.f32 0.0, %v3165
      %v3167 = vpop.f32.mrb[0].mxu0
      %3168 = vdwg.mxu0
      %v3185 = vunpack.c.l.b16 %v2794
      %v3186 = vunpack.c.l.b16 %v2795
      %v3187 = vunpack.c.l.b16 %v2797
      %v3188 = vunpack.c.l.b16 %v2798
      %v3189 = vunpack.c.l.b16 %v2800
      %v3190 = vunpack.c.l.b16 %v2801
      %v3191 = vunpack.c.l.b16 %v2803
      %v3192 = vunpack.c.l.b16 %v2804
      %v3193 = vunpack.c.l.b16 %v2806
      %v3194 = vunpack.c.l.b16 %v2807
      %v3195 = vunpack.c.l.b16 %v2809
      %v3196 = vunpack.c.l.b16 %v2810
      %v3197 = vunpack.c.l.b16 %v2812
      %v3198 = vunpack.c.l.b16 %v2813
      %v3199 = vunpack.c.l.b16 %v2815
      %v3200 = vunpack.c.l.b16 %v2816
      %v3201 = vpack.c.b16 %v3186, %v3185
      %v3202 = vpack.c.b16 %v3188, %v3187
      %v3203 = vpack.c.b16 %v3190, %v3189
      %v3204 = vpack.c.b16 %v3192, %v3191
      %v3205 = vpack.c.b16 %v3194, %v3193
      %v3206 = vpack.c.b16 %v3196, %v3195
      %v3207 = vpack.c.b16 %v3198, %v3197
      %v3208 = vpack.c.b16 %v3200, %v3199
      %v3210 = vsel %vm3043, %v3201, 0
      %v3213 = vsel %vm3043, %v3202, 0
      %v3216 = vsel %vm3043, %v3203, 0
      %v3219 = vsel %vm3043, %v3204, 0
      %v3222 = vsel %vm3043, %v3205, 0
      %v3225 = vsel %vm3043, %v3206, 0
      %v3228 = vsel %vm3043, %v3207, 0
      %v3231 = vsel %vm3043, %v3208, 0
      %v3234 = vsel %vm3068, %v2824, 0
      %3236 = vmatprep.subr.bf16.mxu0 0
      %3237 = vmatpush1.bf16.msra.mxu0 %v3234
      %3238 = vmatprep.subr.bf16.mxu0 0
      %3239 = vmatpush1.bf16.msra.mxu0 0
      %3240 = vmatprep.subr.bf16.mxu0 0
      %3241 = vmatpush1.bf16.msra.mxu0 0
      %3242 = vmatprep.subr.bf16.mxu0 0
      %3243 = vmatpush1.bf16.msra.mxu0 0
      %3244 = vmatprep.subr.bf16.mxu0 0
      %3245 = vmatpush1.bf16.msra.mxu0 0
      %3246 = vmatprep.subr.bf16.mxu0 0
      %3247 = vmatpush1.bf16.msra.mxu0 0
      %3248 = vmatprep.subr.bf16.mxu0 0
      %3249 = vmatpush1.bf16.msra.mxu0 0
      %3250 = vmatprep.subr.bf16.mxu0 0
      %3251 = vmatpush1.bf16.msra.mxu0 0
      %3252 = vmatprep.subr.bf16.mxu0 0
      %3253 = vmatpush1.bf16.msra.mxu0 0
      %3254 = vmatprep.subr.bf16.mxu0 0
      %3255 = vmatpush1.bf16.msra.mxu0 0
      %3256 = vmatprep.subr.bf16.mxu0 0
      %3257 = vmatpush1.bf16.msra.mxu0 0
      %3258 = vmatprep.subr.bf16.mxu0 0
      %3259 = vmatpush1.bf16.msra.mxu0 0
      %3260 = vmatprep.subr.bf16.mxu0 0
      %3261 = vmatpush1.bf16.msra.mxu0 0
      %3262 = vmatprep.subr.bf16.mxu0 0
      %3263 = vmatpush1.bf16.msra.mxu0 0
      %3264 = vmatprep.subr.bf16.mxu0 0
      %3265 = vmatpush1.bf16.msra.mxu0 0
      %3266 = vmatprep.subr.bf16.mxu0 0
      %3267 = vmatpush1.bf16.msra.mxu0 0
      %3268 = vmatprep.mubr.bf16.mxu0 0
      %3269 = vmatmul.mubr.bf16.gmra.mrb[0].mxu0 %v3210
      %v3270 = vpop.f32.mrb[0].mxu0
      %v3271 = vadd.f32 %v3107, %v3270
      %v3272 = vpop.f32.mrb[0].mxu0
      %v3273 = vpop.f32.mrb[0].mxu0
      %v3274 = vadd.f32 %v3110, %v3273
      %v3275 = vpop.f32.mrb[0].mxu0
      %3276 = vmatprep.mubr.bf16.mxu0 0
      %3277 = vmatmul.mubr.bf16.gmra.mrb[0].mxu0 %v3213
      %v3278 = vpop.f32.mrb[0].mxu0
      %v3279 = vadd.f32 %v3115, %v3278
      %v3280 = vpop.f32.mrb[0].mxu0
      %v3281 = vpop.f32.mrb[0].mxu0
      %v3282 = vadd.f32 %v3118, %v3281
      %v3283 = vpop.f32.mrb[0].mxu0
      %3284 = vmatprep.mubr.bf16.mxu0 0
      %3285 = vmatmul.mubr.bf16.gmra.mrb[0].mxu0 %v3216
      %v3286 = vpop.f32.mrb[0].mxu0
      %v3287 = vadd.f32 %v3123, %v3286
      %v3288 = vpop.f32.mrb[0].mxu0
      %v3289 = vpop.f32.mrb[0].mxu0
      %v3290 = vadd.f32 %v3126, %v3289
      %v3291 = vpop.f32.mrb[0].mxu0
      %3292 = vmatprep.mubr.bf16.mxu0 0
      %3293 = vmatmul.mubr.bf16.gmra.mrb[0].mxu0 %v3219
      %v3294 = vpop.f32.mrb[0].mxu0
      %v3295 = vadd.f32 %v3131, %v3294
      %v3296 = vpop.f32.mrb[0].mxu0
      %v3297 = vpop.f32.mrb[0].mxu0
      %v3298 = vadd.f32 %v3134, %v3297
      %v3299 = vpop.f32.mrb[0].mxu0
      %3300 = vmatprep.mubr.bf16.mxu0 0
      %3301 = vmatmul.mubr.bf16.gmra.mrb[0].mxu0 %v3222
      %v3302 = vpop.f32.mrb[0].mxu0
      %v3303 = vadd.f32 %v3139, %v3302
      %v3304 = vpop.f32.mrb[0].mxu0
      %v3305 = vpop.f32.mrb[0].mxu0
      %v3306 = vadd.f32 %v3142, %v3305
      %v3307 = vpop.f32.mrb[0].mxu0
      %3308 = vmatprep.mubr.bf16.mxu0 0
      %3309 = vmatmul.mubr.bf16.gmra.mrb[0].mxu0 %v3225
      %v3310 = vpop.f32.mrb[0].mxu0
      %v3311 = vadd.f32 %v3147, %v3310
      %v3312 = vpop.f32.mrb[0].mxu0
      %v3313 = vpop.f32.mrb[0].mxu0
      %v3314 = vadd.f32 %v3150, %v3313
      %v3315 = vpop.f32.mrb[0].mxu0
      %3316 = vmatprep.mubr.bf16.mxu0 0
      %3317 = vmatmul.mubr.bf16.gmra.mrb[0].mxu0 %v3228
      %v3318 = vpop.f32.mrb[0].mxu0
      %v3319 = vadd.f32 %v3155, %v3318
      %v3320 = vpop.f32.mrb[0].mxu0
      %v3321 = vpop.f32.mrb[0].mxu0
      %v3322 = vadd.f32 %v3158, %v3321
      %v3323 = vpop.f32.mrb[0].mxu0
      %3324 = vmatprep.mubr.bf16.mxu0 0
      %3325 = vmatmul.mubr.bf16.gmra.mrb[0].mxu0 %v3231
      %v3326 = vpop.f32.mrb[0].mxu0
      %v3327 = vadd.f32 %v3163, %v3326
      %v3328 = vpop.f32.mrb[0].mxu0
      %v3329 = vpop.f32.mrb[0].mxu0
      %v3330 = vadd.f32 %v3166, %v3329
      %v3331 = vpop.f32.mrb[0].mxu0
      %3332 = vdwg.mxu0
      %v3341 = vrot.slane %v2794, 5
      %v3342 = vrot.slane %v3341, 4
      %v3343 = vrot.slane %v2795, 5
      %v3344 = vsel %vm1058, %v3342, %v3343
      %v3345 = vrot.slane %v3343, 4
      %v3346 = vrot.slane %v2796, 5
      %v3347 = vsel %vm1058, %v3345, %v3346
      %v3348 = vrot.slane %v2797, 5
      %v3349 = vrot.slane %v3348, 4
      %v3350 = vrot.slane %v2798, 5
      %v3351 = vsel %vm1058, %v3349, %v3350
      %v3352 = vrot.slane %v3350, 4
      %v3353 = vrot.slane %v2799, 5
      %v3354 = vsel %vm1058, %v3352, %v3353
      %v3355 = vrot.slane %v2800, 5
      %v3356 = vrot.slane %v3355, 4
      %v3357 = vrot.slane %v2801, 5
      %v3358 = vsel %vm1058, %v3356, %v3357
      %v3359 = vrot.slane %v3357, 4
      %v3360 = vrot.slane %v2802, 5
      %v3361 = vsel %vm1058, %v3359, %v3360
      %v3362 = vrot.slane %v2803, 5
      %v3363 = vrot.slane %v3362, 4
      %v3364 = vrot.slane %v2804, 5
      %v3365 = vsel %vm1058, %v3363, %v3364
      %v3366 = vrot.slane %v3364, 4
      %v3367 = vrot.slane %v2805, 5
      %v3368 = vsel %vm1058, %v3366, %v3367
      %v3369 = vrot.slane %v2806, 5
      %v3370 = vrot.slane %v3369, 4
      %v3371 = vrot.slane %v2807, 5
      %v3372 = vsel %vm1058, %v3370, %v3371
      %v3373 = vrot.slane %v3371, 4
      %v3374 = vrot.slane %v2808, 5
      %v3375 = vsel %vm1058, %v3373, %v3374
      %v3376 = vrot.slane %v2809, 5
      %v3377 = vrot.slane %v3376, 4
      %v3378 = vrot.slane %v2810, 5
      %v3379 = vsel %vm1058, %v3377, %v3378
      %v3380 = vrot.slane %v3378, 4
      %v3381 = vrot.slane %v2811, 5
      %v3382 = vsel %vm1058, %v3380, %v3381
      %v3383 = vrot.slane %v2812, 5
      %v3384 = vrot.slane %v3383, 4
      %v3385 = vrot.slane %v2813, 5
      %v3386 = vsel %vm1058, %v3384, %v3385
      %v3387 = vrot.slane %v3385, 4
      %v3388 = vrot.slane %v2814, 5
      %v3389 = vsel %vm1058, %v3387, %v3388
      %v3390 = vrot.slane %v2815, 5
      %v3391 = vrot.slane %v3390, 4
      %v3392 = vrot.slane %v2816, 5
      %v3393 = vsel %vm1058, %v3391, %v3392
      %v3394 = vrot.slane %v3392, 4
      %v3395 = vrot.slane %v2817, 5
      %v3396 = vsel %vm1058, %v3394, %v3395
      %s3397 = scalar_lea.vmem %s4, 8
      %v3398 = vld [vmem:[%s3397] sm:$0xf]
      %v3399 = vunpack.c.l.b16 %v3344
      %v3400 = vunpack.c.l.b16 %v3347
      %v3401 = vunpack.c.l.b16 %v3351
      %v3402 = vunpack.c.l.b16 %v3354
      %v3403 = vunpack.c.l.b16 %v3358
      %v3404 = vunpack.c.l.b16 %v3361
      %v3405 = vunpack.c.l.b16 %v3365
      %v3406 = vunpack.c.l.b16 %v3368
      %v3407 = vunpack.c.l.b16 %v3372
      %v3408 = vunpack.c.l.b16 %v3375
      %v3409 = vunpack.c.l.b16 %v3379
      %v3410 = vunpack.c.l.b16 %v3382
      %v3411 = vunpack.c.l.b16 %v3386
      %v3412 = vunpack.c.l.b16 %v3389
      %v3413 = vunpack.c.l.b16 %v3393
      %v3414 = vunpack.c.l.b16 %v3396
      %v3415 = vpack.c.b16 %v3400, %v3399
      %v3416 = vpack.c.b16 %v3402, %v3401
      %v3417 = vpack.c.b16 %v3404, %v3403
      %v3418 = vpack.c.b16 %v3406, %v3405
      %v3419 = vpack.c.b16 %v3408, %v3407
      %v3420 = vpack.c.b16 %v3410, %v3409
      %v3421 = vpack.c.b16 %v3412, %v3411
      %v3422 = vpack.c.b16 %v3414, %v3413
      %v3424 = vsel %vm3043, %v3415, 0
      %v3427 = vsel %vm3043, %v3416, 0
      %v3430 = vsel %vm3043, %v3417, 0
      %v3433 = vsel %vm3043, %v3418, 0
      %v3436 = vsel %vm3043, %v3419, 0
      %v3439 = vsel %vm3043, %v3420, 0
      %v3442 = vsel %vm3043, %v3421, 0
      %v3445 = vsel %vm3043, %v3422, 0
      %v3448 = vsel %vm3068, %v3398, 0
      %3450 = vmatprep.subr.bf16.mxu0 0
      %3451 = vmatpush1.bf16.msra.mxu0 %v3448
      %3452 = vmatprep.subr.bf16.mxu0 0
      %3453 = vmatpush1.bf16.msra.mxu0 0
      %3454 = vmatprep.subr.bf16.mxu0 0
      %3455 = vmatpush1.bf16.msra.mxu0 0
      %3456 = vmatprep.subr.bf16.mxu0 0
      %3457 = vmatpush1.bf16.msra.mxu0 0
      %3458 = vmatprep.subr.bf16.mxu0 0
      %3459 = vmatpush1.bf16.msra.mxu0 0
      %3460 = vmatprep.subr.bf16.mxu0 0
      %3461 = vmatpush1.bf16.msra.mxu0 0
      %3462 = vmatprep.subr.bf16.mxu0 0
      %3463 = vmatpush1.bf16.msra.mxu0 0
      %3464 = vmatprep.subr.bf16.mxu0 0
      %3465 = vmatpush1.bf16.msra.mxu0 0
      %3466 = vmatprep.subr.bf16.mxu0 0
      %3467 = vmatpush1.bf16.msra.mxu0 0
      %3468 = vmatprep.subr.bf16.mxu0 0
      %3469 = vmatpush1.bf16.msra.mxu0 0
      %3470 = vmatprep.subr.bf16.mxu0 0
      %3471 = vmatpush1.bf16.msra.mxu0 0
      %3472 = vmatprep.subr.bf16.mxu0 0
      %3473 = vmatpush1.bf16.msra.mxu0 0
      %3474 = vmatprep.subr.bf16.mxu0 0
      %3475 = vmatpush1.bf16.msra.mxu0 0
      %3476 = vmatprep.subr.bf16.mxu0 0
      %3477 = vmatpush1.bf16.msra.mxu0 0
      %3478 = vmatprep.subr.bf16.mxu0 0
      %3479 = vmatpush1.bf16.msra.mxu0 0
      %3480 = vmatprep.subr.bf16.mxu0 0
      %3481 = vmatpush1.bf16.msra.mxu0 0
      %3482 = vmatprep.mubr.bf16.mxu0 0
      %3483 = vmatmul.mubr.bf16.gmra.mrb[0].mxu0 %v3424
      %v3484 = vpop.f32.mrb[0].mxu0
      %v3485 = vadd.f32 0.0, %v3484
      %v3486 = vpop.f32.mrb[0].mxu0
      %v3487 = vpop.f32.mrb[0].mxu0
      %v3488 = vadd.f32 0.0, %v3487
      %v3489 = vpop.f32.mrb[0].mxu0
      %3490 = vmatprep.mubr.bf16.mxu0 0
      %3491 = vmatmul.mubr.bf16.gmra.mrb[0].mxu0 %v3427
      %v3492 = vpop.f32.mrb[0].mxu0
      %v3493 = vadd.f32 0.0, %v3492
      %v3494 = vpop.f32.mrb[0].mxu0
      %v3495 = vpop.f32.mrb[0].mxu0
      %v3496 = vadd.f32 0.0, %v3495
      %v3497 = vpop.f32.mrb[0].mxu0
      %3498 = vmatprep.mubr.bf16.mxu0 0
      %3499 = vmatmul.mubr.bf16.gmra.mrb[0].mxu0 %v3430
      %v3500 = vpop.f32.mrb[0].mxu0
      %v3501 = vadd.f32 0.0, %v3500
      %v3502 = vpop.f32.mrb[0].mxu0
      %v3503 = vpop.f32.mrb[0].mxu0
      %v3504 = vadd.f32 0.0, %v3503
      %v3505 = vpop.f32.mrb[0].mxu0
      %3506 = vmatprep.mubr.bf16.mxu0 0
      %3507 = vmatmul.mubr.bf16.gmra.mrb[0].mxu0 %v3433
      %v3508 = vpop.f32.mrb[0].mxu0
      %v3509 = vadd.f32 0.0, %v3508
      %v3510 = vpop.f32.mrb[0].mxu0
      %v3511 = vpop.f32.mrb[0].mxu0
      %v3512 = vadd.f32 0.0, %v3511
      %v3513 = vpop.f32.mrb[0].mxu0
      %3514 = vmatprep.mubr.bf16.mxu0 0
      %3515 = vmatmul.mubr.bf16.gmra.mrb[0].mxu0 %v3436
      %v3516 = vpop.f32.mrb[0].mxu0
      %v3517 = vadd.f32 0.0, %v3516
      %v3518 = vpop.f32.mrb[0].mxu0
      %v3519 = vpop.f32.mrb[0].mxu0
      %v3520 = vadd.f32 0.0, %v3519
      %v3521 = vpop.f32.mrb[0].mxu0
      %3522 = vmatprep.mubr.bf16.mxu0 0
      %3523 = vmatmul.mubr.bf16.gmra.mrb[0].mxu0 %v3439
      %v3524 = vpop.f32.mrb[0].mxu0
      %v3525 = vadd.f32 0.0, %v3524
      %v3526 = vpop.f32.mrb[0].mxu0
      %v3527 = vpop.f32.mrb[0].mxu0
      %v3528 = vadd.f32 0.0, %v3527
      %v3529 = vpop.f32.mrb[0].mxu0
      %3530 = vmatprep.mubr.bf16.mxu0 0
      %3531 = vmatmul.mubr.bf16.gmra.mrb[0].mxu0 %v3442
      %v3532 = vpop.f32.mrb[0].mxu0
      %v3533 = vadd.f32 0.0, %v3532
      %v3534 = vpop.f32.mrb[0].mxu0
      %v3535 = vpop.f32.mrb[0].mxu0
      %v3536 = vadd.f32 0.0, %v3535
      %v3537 = vpop.f32.mrb[0].mxu0
      %3538 = vmatprep.mubr.bf16.mxu0 0
      %3539 = vmatmul.mubr.bf16.gmra.mrb[0].mxu0 %v3445
      %v3540 = vpop.f32.mrb[0].mxu0
      %v3541 = vadd.f32 0.0, %v3540
      %v3542 = vpop.f32.mrb[0].mxu0
      %v3543 = vpop.f32.mrb[0].mxu0
      %v3544 = vadd.f32 0.0, %v3543
      %v3545 = vpop.f32.mrb[0].mxu0
      %3546 = vdwg.mxu0
      %v3547 = vadd.f32 %v3271, %v3485
      %v3548 = vadd.f32 %v3274, %v3488
      %v3549 = vadd.f32 %v3279, %v3493
      %v3550 = vadd.f32 %v3282, %v3496
      %v3551 = vadd.f32 %v3287, %v3501
      %v3552 = vadd.f32 %v3290, %v3504
      %v3553 = vadd.f32 %v3295, %v3509
      %v3554 = vadd.f32 %v3298, %v3512
      %v3555 = vadd.f32 %v3303, %v3517
      %v3556 = vadd.f32 %v3306, %v3520
      %v3557 = vadd.f32 %v3311, %v3525
      %v3558 = vadd.f32 %v3314, %v3528
      %v3559 = vadd.f32 %v3319, %v3533
      %v3560 = vadd.f32 %v3322, %v3536
      %v3561 = vadd.f32 %v3327, %v3541
      %v3562 = vadd.f32 %v3330, %v3544
      %s3563 = scalar_lea.vmem %s4, 12
      %v3564 = vld [vmem:[%s3563] sm:$0xf]
      %v3567 = vunpack.c.l.b16 %v2818
      %v3568 = vunpack.c.l.b16 %v2819
      %v3569 = vpack.c.b16 %v3568, %v3567
      %v3571 = vsel %vm3043, %v3569, 0
      %v3574 = vsel %vm3068, %v3564, 0
      %3576 = vmatprep.subr.bf16.mxu0 0
      %3577 = vmatpush1.bf16.msra.mxu0 %v3574
      %3578 = vmatprep.subr.bf16.mxu0 0
      %3579 = vmatpush1.bf16.msra.mxu0 0
      %3580 = vmatprep.subr.bf16.mxu0 0
      %3581 = vmatpush1.bf16.msra.mxu0 0
      %3582 = vmatprep.subr.bf16.mxu0 0
      %3583 = vmatpush1.bf16.msra.mxu0 0
      %3584 = vmatprep.subr.bf16.mxu0 0
      %3585 = vmatpush1.bf16.msra.mxu0 0
      %3586 = vmatprep.subr.bf16.mxu0 0
      %3587 = vmatpush1.bf16.msra.mxu0 0
      %3588 = vmatprep.subr.bf16.mxu0 0
      %3589 = vmatpush1.bf16.msra.mxu0 0
      %3590 = vmatprep.subr.bf16.mxu0 0
      %3591 = vmatpush1.bf16.msra.mxu0 0
      %3592 = vmatprep.subr.bf16.mxu0 0
      %3593 = vmatpush1.bf16.msra.mxu0 0
      %3594 = vmatprep.subr.bf16.mxu0 0
      %3595 = vmatpush1.bf16.msra.mxu0 0
      %3596 = vmatprep.subr.bf16.mxu0 0
      %3597 = vmatpush1.bf16.msra.mxu0 0
      %3598 = vmatprep.subr.bf16.mxu0 0
      %3599 = vmatpush1.bf16.msra.mxu0 0
      %3600 = vmatprep.subr.bf16.mxu0 0
      %3601 = vmatpush1.bf16.msra.mxu0 0
      %3602 = vmatprep.subr.bf16.mxu0 0
      %3603 = vmatpush1.bf16.msra.mxu0 0
      %3604 = vmatprep.subr.bf16.mxu0 0
      %3605 = vmatpush1.bf16.msra.mxu0 0
      %3606 = vmatprep.subr.bf16.mxu0 0
      %3607 = vmatpush1.bf16.msra.mxu0 0
      %3608 = vmatprep.mubr.bf16.mxu0 0
      %3609 = vmatmul.mubr.bf16.gmra.mrb[0].mxu0 %v3213
      %v3610 = vpop.f32.mrb[0].mxu0
      %v3611 = vadd.f32 0.0, %v3610
      %v3612 = vpop.f32.mrb[0].mxu0
      %v3613 = vpop.f32.mrb[0].mxu0
      %v3614 = vadd.f32 0.0, %v3613
      %v3615 = vpop.f32.mrb[0].mxu0
      %3616 = vmatprep.mubr.bf16.mxu0 0
      %3617 = vmatmul.mubr.bf16.gmra.mrb[0].mxu0 %v3216
      %v3618 = vpop.f32.mrb[0].mxu0
      %v3619 = vadd.f32 0.0, %v3618
      %v3620 = vpop.f32.mrb[0].mxu0
      %v3621 = vpop.f32.mrb[0].mxu0
      %v3622 = vadd.f32 0.0, %v3621
      %v3623 = vpop.f32.mrb[0].mxu0
      %3624 = vmatprep.mubr.bf16.mxu0 0
      %3625 = vmatmul.mubr.bf16.gmra.mrb[0].mxu0 %v3219
      %v3626 = vpop.f32.mrb[0].mxu0
      %v3627 = vadd.f32 0.0, %v3626
      %v3628 = vpop.f32.mrb[0].mxu0
      %v3629 = vpop.f32.mrb[0].mxu0
      %v3630 = vadd.f32 0.0, %v3629
      %v3631 = vpop.f32.mrb[0].mxu0
      %3632 = vmatprep.mubr.bf16.mxu0 0
      %3633 = vmatmul.mubr.bf16.gmra.mrb[0].mxu0 %v3222
      %v3634 = vpop.f32.mrb[0].mxu0
      %v3635 = vadd.f32 0.0, %v3634
      %v3636 = vpop.f32.mrb[0].mxu0
      %v3637 = vpop.f32.mrb[0].mxu0
      %v3638 = vadd.f32 0.0, %v3637
      %v3639 = vpop.f32.mrb[0].mxu0
      %3640 = vmatprep.mubr.bf16.mxu0 0
      %3641 = vmatmul.mubr.bf16.gmra.mrb[0].mxu0 %v3225
      %v3642 = vpop.f32.mrb[0].mxu0
      %v3643 = vadd.f32 0.0, %v3642
      %v3644 = vpop.f32.mrb[0].mxu0
      %v3645 = vpop.f32.mrb[0].mxu0
      %v3646 = vadd.f32 0.0, %v3645
      %v3647 = vpop.f32.mrb[0].mxu0
      %3648 = vmatprep.mubr.bf16.mxu0 0
      %3649 = vmatmul.mubr.bf16.gmra.mrb[0].mxu0 %v3228
      %v3650 = vpop.f32.mrb[0].mxu0
      %v3651 = vadd.f32 0.0, %v3650
      %v3652 = vpop.f32.mrb[0].mxu0
      %v3653 = vpop.f32.mrb[0].mxu0
      %v3654 = vadd.f32 0.0, %v3653
      %v3655 = vpop.f32.mrb[0].mxu0
      %3656 = vmatprep.mubr.bf16.mxu0 0
      %3657 = vmatmul.mubr.bf16.gmra.mrb[0].mxu0 %v3231
      %v3658 = vpop.f32.mrb[0].mxu0
      %v3659 = vadd.f32 0.0, %v3658
      %v3660 = vpop.f32.mrb[0].mxu0
      %v3661 = vpop.f32.mrb[0].mxu0
      %v3662 = vadd.f32 0.0, %v3661
      %v3663 = vpop.f32.mrb[0].mxu0
      %3664 = vmatprep.mubr.bf16.mxu0 0
      %3665 = vmatmul.mubr.bf16.gmra.mrb[0].mxu0 %v3571
      %v3666 = vpop.f32.mrb[0].mxu0
      %v3667 = vadd.f32 0.0, %v3666
      %v3668 = vpop.f32.mrb[0].mxu0
      %v3669 = vpop.f32.mrb[0].mxu0
      %v3670 = vadd.f32 0.0, %v3669
      %v3671 = vpop.f32.mrb[0].mxu0
      %3672 = vdwg.mxu0
      %v3673 = vadd.f32 %v3547, %v3611
      %v3674 = vadd.f32 %v3548, %v3614
      %v3675 = vadd.f32 %v3549, %v3619
      %v3676 = vadd.f32 %v3550, %v3622
      %v3677 = vadd.f32 %v3551, %v3627
      %v3678 = vadd.f32 %v3552, %v3630
      %v3679 = vadd.f32 %v3553, %v3635
      %v3680 = vadd.f32 %v3554, %v3638
      %v3681 = vadd.f32 %v3555, %v3643
      %v3682 = vadd.f32 %v3556, %v3646
      %v3683 = vadd.f32 %v3557, %v3651
      %v3684 = vadd.f32 %v3558, %v3654
      %v3685 = vadd.f32 %v3559, %v3659
      %v3686 = vadd.f32 %v3560, %v3662
      %v3687 = vadd.f32 %v3561, %v3667
      %v3688 = vadd.f32 %v3562, %v3670
      %v3690 = vshrl.u32 %v2818, 16
      %v3692 = vrot.slane %v3690, 4
      %v3693 = vshll.u32 %v2818, 16
      %v3695 = vrot.slane %v3693, 5
      %v3696 = vor.u32 %v3692, %v3695
      %v3697 = vrot.slane %v3696, 4
      %v3699 = vshll.u32 %v2819, 16
      %v3701 = vrot.slane %v3699, 5
      %v3702 = vsel %vm429, %v3697, %v3701
      %v3703 = vshrl.u32 %v2819, 16
      %v3705 = vrot.slane %v3703, 4
      %v3706 = vor.u32 %v3705, %v3701
      %v3707 = vrot.slane %v3706, 4
      %v3709 = vshll.u32 %v2820, 16
      %v3711 = vrot.slane %v3709, 5
      %v3712 = vsel %vm429, %v3707, %v3711
      %s3713 = scalar_lea.vmem %s4, 16
      %v3714 = vld [vmem:[%s3713] sm:$0xf]
      %v3715 = vunpack.c.l.b16 %v3702
      %v3716 = vunpack.c.l.b16 %v3712
      %v3717 = vpack.c.b16 %v3716, %v3715
      %v3719 = vsel %vm3043, %v3717, 0
      %v3722 = vsel %vm3068, %v3714, 0
      %3724 = vmatprep.subr.bf16.mxu0 0
      %3725 = vmatpush1.bf16.msra.mxu0 %v3722
      %3726 = vmatprep.subr.bf16.mxu0 0
      %3727 = vmatpush1.bf16.msra.mxu0 0
      %3728 = vmatprep.subr.bf16.mxu0 0
      %3729 = vmatpush1.bf16.msra.mxu0 0
      %3730 = vmatprep.subr.bf16.mxu0 0
      %3731 = vmatpush1.bf16.msra.mxu0 0
      %3732 = vmatprep.subr.bf16.mxu0 0
      %3733 = vmatpush1.bf16.msra.mxu0 0
      %3734 = vmatprep.subr.bf16.mxu0 0
      %3735 = vmatpush1.bf16.msra.mxu0 0
      %3736 = vmatprep.subr.bf16.mxu0 0
      %3737 = vmatpush1.bf16.msra.mxu0 0
      %3738 = vmatprep.subr.bf16.mxu0 0
      %3739 = vmatpush1.bf16.msra.mxu0 0
      %3740 = vmatprep.subr.bf16.mxu0 0
      %3741 = vmatpush1.bf16.msra.mxu0 0
      %3742 = vmatprep.subr.bf16.mxu0 0
      %3743 = vmatpush1.bf16.msra.mxu0 0
      %3744 = vmatprep.subr.bf16.mxu0 0
      %3745 = vmatpush1.bf16.msra.mxu0 0
      %3746 = vmatprep.subr.bf16.mxu0 0
      %3747 = vmatpush1.bf16.msra.mxu0 0
      %3748 = vmatprep.subr.bf16.mxu0 0
      %3749 = vmatpush1.bf16.msra.mxu0 0
      %3750 = vmatprep.subr.bf16.mxu0 0
      %3751 = vmatpush1.bf16.msra.mxu0 0
      %3752 = vmatprep.subr.bf16.mxu0 0
      %3753 = vmatpush1.bf16.msra.mxu0 0
      %3754 = vmatprep.subr.bf16.mxu0 0
      %3755 = vmatpush1.bf16.msra.mxu0 0
      %3756 = vmatprep.mubr.bf16.mxu0 0
      %3757 = vmatmul.mubr.bf16.gmra.mrb[0].mxu0 %v3048
      %v3758 = vpop.f32.mrb[0].mxu0
      %v3759 = vadd.f32 0.0, %v3758
      %v3760 = vpop.f32.mrb[0].mxu0
      %v3761 = vpop.f32.mrb[0].mxu0
      %v3762 = vadd.f32 0.0, %v3761
      %v3763 = vpop.f32.mrb[0].mxu0
      %3764 = vmatprep.mubr.bf16.mxu0 0
      %3765 = vmatmul.mubr.bf16.gmra.mrb[0].mxu0 %v3051
      %v3766 = vpop.f32.mrb[0].mxu0
      %v3767 = vadd.f32 0.0, %v3766
      %v3768 = vpop.f32.mrb[0].mxu0
      %v3769 = vpop.f32.mrb[0].mxu0
      %v3770 = vadd.f32 0.0, %v3769
      %v3771 = vpop.f32.mrb[0].mxu0
      %3772 = vmatprep.mubr.bf16.mxu0 0
      %3773 = vmatmul.mubr.bf16.gmra.mrb[0].mxu0 %v3054
      %v3774 = vpop.f32.mrb[0].mxu0
      %v3775 = vadd.f32 0.0, %v3774
      %v3776 = vpop.f32.mrb[0].mxu0
      %v3777 = vpop.f32.mrb[0].mxu0
      %v3778 = vadd.f32 0.0, %v3777
      %v3779 = vpop.f32.mrb[0].mxu0
      %3780 = vmatprep.mubr.bf16.mxu0 0
      %3781 = vmatmul.mubr.bf16.gmra.mrb[0].mxu0 %v3057
      %v3782 = vpop.f32.mrb[0].mxu0
      %v3783 = vadd.f32 0.0, %v3782
      %v3784 = vpop.f32.mrb[0].mxu0
      %v3785 = vpop.f32.mrb[0].mxu0
      %v3786 = vadd.f32 0.0, %v3785
      %v3787 = vpop.f32.mrb[0].mxu0
      %3788 = vmatprep.mubr.bf16.mxu0 0
      %3789 = vmatmul.mubr.bf16.gmra.mrb[0].mxu0 %v3060
      %v3790 = vpop.f32.mrb[0].mxu0
      %v3791 = vadd.f32 0.0, %v3790
      %v3792 = vpop.f32.mrb[0].mxu0
      %v3793 = vpop.f32.mrb[0].mxu0
      %v3794 = vadd.f32 0.0, %v3793
      %v3795 = vpop.f32.mrb[0].mxu0
      %3796 = vmatprep.mubr.bf16.mxu0 0
      %3797 = vmatmul.mubr.bf16.gmra.mrb[0].mxu0 %v3063
      %v3798 = vpop.f32.mrb[0].mxu0
      %v3799 = vadd.f32 0.0, %v3798
      %v3800 = vpop.f32.mrb[0].mxu0
      %v3801 = vpop.f32.mrb[0].mxu0
      %v3802 = vadd.f32 0.0, %v3801
      %v3803 = vpop.f32.mrb[0].mxu0
      %3804 = vmatprep.mubr.bf16.mxu0 0
      %3805 = vmatmul.mubr.bf16.gmra.mrb[0].mxu0 %v3066
      %v3806 = vpop.f32.mrb[0].mxu0
      %v3807 = vadd.f32 0.0, %v3806
      %v3808 = vpop.f32.mrb[0].mxu0
      %v3809 = vpop.f32.mrb[0].mxu0
      %v3810 = vadd.f32 0.0, %v3809
      %v3811 = vpop.f32.mrb[0].mxu0
      %3812 = vmatprep.mubr.bf16.mxu0 0
      %3813 = vmatmul.mubr.bf16.gmra.mrb[0].mxu0 %v3719
      %v3814 = vpop.f32.mrb[0].mxu0
      %v3815 = vadd.f32 0.0, %v3814
      %v3816 = vpop.f32.mrb[0].mxu0
      %v3817 = vpop.f32.mrb[0].mxu0
      %v3818 = vadd.f32 0.0, %v3817
      %v3819 = vpop.f32.mrb[0].mxu0
      %3820 = vdwg.mxu0
      %v3821 = vadd.f32 %v3673, %v3759
      %v3822 = vadd.f32 %v3674, %v3762
      %v3823 = vadd.f32 %v3675, %v3767
      %v3824 = vadd.f32 %v3676, %v3770
      %v3825 = vadd.f32 %v3677, %v3775
      %v3826 = vadd.f32 %v3678, %v3778
      %v3827 = vadd.f32 %v3679, %v3783
      %v3828 = vadd.f32 %v3680, %v3786
      %v3829 = vadd.f32 %v3681, %v3791
      %v3830 = vadd.f32 %v3682, %v3794
      %v3831 = vadd.f32 %v3683, %v3799
      %v3832 = vadd.f32 %v3684, %v3802
      %v3833 = vadd.f32 %v3685, %v3807
      %v3834 = vadd.f32 %v3686, %v3810
      %v3835 = vadd.f32 %v3687, %v3815
      %v3836 = vadd.f32 %v3688, %v3818
      %v3838 = vrot.slane %v2818, 5
      %v3839 = vrot.slane %v3838, 4
      %v3840 = vrot.slane %v2819, 5
      %v3841 = vsel %vm1058, %v3839, %v3840
      %v3842 = vrot.slane %v3840, 4
      %v3843 = vrot.slane %v2820, 5
      %v3844 = vsel %vm1058, %v3842, %v3843
      %s3845 = scalar_lea.vmem %s4, 20
      %v3846 = vld [vmem:[%s3845] sm:$0xf]
      %v3847 = vunpack.c.l.b16 %v3841
      %v3848 = vunpack.c.l.b16 %v3844
      %v3849 = vpack.c.b16 %v3848, %v3847
      %v3851 = vsel %vm3043, %v3849, 0
      %v3854 = vsel %vm3068, %v3846, 0
      %3856 = vmatprep.subr.bf16.mxu0 0
      %3857 = vmatpush1.bf16.msra.mxu0 %v3854
      %3858 = vmatprep.subr.bf16.mxu0 0
      %3859 = vmatpush1.bf16.msra.mxu0 0
      %3860 = vmatprep.subr.bf16.mxu0 0
      %3861 = vmatpush1.bf16.msra.mxu0 0
      %3862 = vmatprep.subr.bf16.mxu0 0
      %3863 = vmatpush1.bf16.msra.mxu0 0
      %3864 = vmatprep.subr.bf16.mxu0 0
      %3865 = vmatpush1.bf16.msra.mxu0 0
      %3866 = vmatprep.subr.bf16.mxu0 0
      %3867 = vmatpush1.bf16.msra.mxu0 0
      %3868 = vmatprep.subr.bf16.mxu0 0
      %3869 = vmatpush1.bf16.msra.mxu0 0
      %3870 = vmatprep.subr.bf16.mxu0 0
      %3871 = vmatpush1.bf16.msra.mxu0 0
      %3872 = vmatprep.subr.bf16.mxu0 0
      %3873 = vmatpush1.bf16.msra.mxu0 0
      %3874 = vmatprep.subr.bf16.mxu0 0
      %3875 = vmatpush1.bf16.msra.mxu0 0
      %3876 = vmatprep.subr.bf16.mxu0 0
      %3877 = vmatpush1.bf16.msra.mxu0 0
      %3878 = vmatprep.subr.bf16.mxu0 0
      %3879 = vmatpush1.bf16.msra.mxu0 0
      %3880 = vmatprep.subr.bf16.mxu0 0
      %3881 = vmatpush1.bf16.msra.mxu0 0
      %3882 = vmatprep.subr.bf16.mxu0 0
      %3883 = vmatpush1.bf16.msra.mxu0 0
      %3884 = vmatprep.subr.bf16.mxu0 0
      %3885 = vmatpush1.bf16.msra.mxu0 0
      %3886 = vmatprep.subr.bf16.mxu0 0
      %3887 = vmatpush1.bf16.msra.mxu0 0
      %3888 = vmatprep.mubr.bf16.mxu0 0
      %3889 = vmatmul.mubr.bf16.gmra.mrb[0].mxu0 %v3427
      %v3890 = vpop.f32.mrb[0].mxu0
      %v3891 = vadd.f32 0.0, %v3890
      %v3892 = vpop.f32.mrb[0].mxu0
      %v3893 = vpop.f32.mrb[0].mxu0
      %v3894 = vadd.f32 0.0, %v3893
      %v3895 = vpop.f32.mrb[0].mxu0
      %3896 = vmatprep.mubr.bf16.mxu0 0
      %3897 = vmatmul.mubr.bf16.gmra.mrb[0].mxu0 %v3430
      %v3898 = vpop.f32.mrb[0].mxu0
      %v3899 = vadd.f32 0.0, %v3898
      %v3900 = vpop.f32.mrb[0].mxu0
      %v3901 = vpop.f32.mrb[0].mxu0
      %v3902 = vadd.f32 0.0, %v3901
      %v3903 = vpop.f32.mrb[0].mxu0
      %3904 = vmatprep.mubr.bf16.mxu0 0
      %3905 = vmatmul.mubr.bf16.gmra.mrb[0].mxu0 %v3433
      %v3906 = vpop.f32.mrb[0].mxu0
      %v3907 = vadd.f32 0.0, %v3906
      %v3908 = vpop.f32.mrb[0].mxu0
      %v3909 = vpop.f32.mrb[0].mxu0
      %v3910 = vadd.f32 0.0, %v3909
      %v3911 = vpop.f32.mrb[0].mxu0
      %3912 = vmatprep.mubr.bf16.mxu0 0
      %3913 = vmatmul.mubr.bf16.gmra.mrb[0].mxu0 %v3436
      %v3914 = vpop.f32.mrb[0].mxu0
      %v3915 = vadd.f32 0.0, %v3914
      %v3916 = vpop.f32.mrb[0].mxu0
      %v3917 = vpop.f32.mrb[0].mxu0
      %v3918 = vadd.f32 0.0, %v3917
      %v3919 = vpop.f32.mrb[0].mxu0
      %3920 = vmatprep.mubr.bf16.mxu0 0
      %3921 = vmatmul.mubr.bf16.gmra.mrb[0].mxu0 %v3439
      %v3922 = vpop.f32.mrb[0].mxu0
      %v3923 = vadd.f32 0.0, %v3922
      %v3924 = vpop.f32.mrb[0].mxu0
      %v3925 = vpop.f32.mrb[0].mxu0
      %v3926 = vadd.f32 0.0, %v3925
      %v3927 = vpop.f32.mrb[0].mxu0
      %3928 = vmatprep.mubr.bf16.mxu0 0
      %3929 = vmatmul.mubr.bf16.gmra.mrb[0].mxu0 %v3442
      %v3930 = vpop.f32.mrb[0].mxu0
      %v3931 = vadd.f32 0.0, %v3930
      %v3932 = vpop.f32.mrb[0].mxu0
      %v3933 = vpop.f32.mrb[0].mxu0
      %v3934 = vadd.f32 0.0, %v3933
      %v3935 = vpop.f32.mrb[0].mxu0
      %3936 = vmatprep.mubr.bf16.mxu0 0
      %3937 = vmatmul.mubr.bf16.gmra.mrb[0].mxu0 %v3445
      %v3938 = vpop.f32.mrb[0].mxu0
      %v3939 = vadd.f32 0.0, %v3938
      %v3940 = vpop.f32.mrb[0].mxu0
      %v3941 = vpop.f32.mrb[0].mxu0
      %v3942 = vadd.f32 0.0, %v3941
      %v3943 = vpop.f32.mrb[0].mxu0
      %3944 = vmatprep.mubr.bf16.mxu0 0
      %3945 = vmatmul.mubr.bf16.gmra.mrb[0].mxu0 %v3851
      %v3946 = vpop.f32.mrb[0].mxu0
      %v3947 = vadd.f32 0.0, %v3946
      %v3948 = vpop.f32.mrb[0].mxu0
      %v3949 = vpop.f32.mrb[0].mxu0
      %v3950 = vadd.f32 0.0, %v3949
      %v3951 = vpop.f32.mrb[0].mxu0
      %3952 = vdwg.mxu0
      %v3953 = vadd.f32 %v3821, %v3891
      %v3954 = vadd.f32 %v3822, %v3894
      %v3955 = vadd.f32 %v3823, %v3899
      %v3956 = vadd.f32 %v3824, %v3902
      %v3957 = vadd.f32 %v3825, %v3907
      %v3958 = vadd.f32 %v3826, %v3910
      %v3959 = vadd.f32 %v3827, %v3915
      %v3960 = vadd.f32 %v3828, %v3918
      %v3961 = vadd.f32 %v3829, %v3923
      %v3962 = vadd.f32 %v3830, %v3926
      %v3963 = vadd.f32 %v3831, %v3931
      %v3964 = vadd.f32 %v3832, %v3934
      %v3965 = vadd.f32 %v3833, %v3939
      %v3966 = vadd.f32 %v3834, %v3942
      %v3967 = vadd.f32 %v3835, %v3947
      %v3968 = vadd.f32 %v3836, %v3950
      %s3969 = scalar_lea.vmem %s4, 24
      %v3970 = vld [vmem:[%s3969] sm:$0xf]
      %v3973 = vunpack.c.l.b16 %v2821
      %v3974 = vunpack.c.l.b16 %v2822
      %v3975 = vpack.c.b16 %v3974, %v3973
      %v3977 = vsel %vm3043, %v3975, 0
      %v3980 = vsel %vm3068, %v3970, 0
      %3982 = vmatprep.subr.bf16.mxu0 0
      %3983 = vmatpush1.bf16.msra.mxu0 %v3980
      %3984 = vmatprep.subr.bf16.mxu0 0
      %3985 = vmatpush1.bf16.msra.mxu0 0
      %3986 = vmatprep.subr.bf16.mxu0 0
      %3987 = vmatpush1.bf16.msra.mxu0 0
      %3988 = vmatprep.subr.bf16.mxu0 0
      %3989 = vmatpush1.bf16.msra.mxu0 0
      %3990 = vmatprep.subr.bf16.mxu0 0
      %3991 = vmatpush1.bf16.msra.mxu0 0
      %3992 = vmatprep.subr.bf16.mxu0 0
      %3993 = vmatpush1.bf16.msra.mxu0 0
      %3994 = vmatprep.subr.bf16.mxu0 0
      %3995 = vmatpush1.bf16.msra.mxu0 0
      %3996 = vmatprep.subr.bf16.mxu0 0
      %3997 = vmatpush1.bf16.msra.mxu0 0
      %3998 = vmatprep.subr.bf16.mxu0 0
      %3999 = vmatpush1.bf16.msra.mxu0 0
      %4000 = vmatprep.subr.bf16.mxu0 0
      %4001 = vmatpush1.bf16.msra.mxu0 0
      %4002 = vmatprep.subr.bf16.mxu0 0
      %4003 = vmatpush1.bf16.msra.mxu0 0
      %4004 = vmatprep.subr.bf16.mxu0 0
      %4005 = vmatpush1.bf16.msra.mxu0 0
      %4006 = vmatprep.subr.bf16.mxu0 0
      %4007 = vmatpush1.bf16.msra.mxu0 0
      %4008 = vmatprep.subr.bf16.mxu0 0
      %4009 = vmatpush1.bf16.msra.mxu0 0
      %4010 = vmatprep.subr.bf16.mxu0 0
      %4011 = vmatpush1.bf16.msra.mxu0 0
      %4012 = vmatprep.subr.bf16.mxu0 0
      %4013 = vmatpush1.bf16.msra.mxu0 0
      %4014 = vmatprep.mubr.bf16.mxu0 0
      %4015 = vmatmul.mubr.bf16.gmra.mrb[0].mxu0 %v3216
      %v4016 = vpop.f32.mrb[0].mxu0
      %v4017 = vadd.f32 0.0, %v4016
      %v4018 = vpop.f32.mrb[0].mxu0
      %v4019 = vpop.f32.mrb[0].mxu0
      %v4020 = vadd.f32 0.0, %v4019
      %v4021 = vpop.f32.mrb[0].mxu0
      %4022 = vmatprep.mubr.bf16.mxu0 0
      %4023 = vmatmul.mubr.bf16.gmra.mrb[0].mxu0 %v3219
      %v4024 = vpop.f32.mrb[0].mxu0
      %v4025 = vadd.f32 0.0, %v4024
      %v4026 = vpop.f32.mrb[0].mxu0
      %v4027 = vpop.f32.mrb[0].mxu0
      %v4028 = vadd.f32 0.0, %v4027
      %v4029 = vpop.f32.mrb[0].mxu0
      %4030 = vmatprep.mubr.bf16.mxu0 0
      %4031 = vmatmul.mubr.bf16.gmra.mrb[0].mxu0 %v3222
      %v4032 = vpop.f32.mrb[0].mxu0
      %v4033 = vadd.f32 0.0, %v4032
      %v4034 = vpop.f32.mrb[0].mxu0
      %v4035 = vpop.f32.mrb[0].mxu0
      %v4036 = vadd.f32 0.0, %v4035
      %v4037 = vpop.f32.mrb[0].mxu0
      %4038 = vmatprep.mubr.bf16.mxu0 0
      %4039 = vmatmul.mubr.bf16.gmra.mrb[0].mxu0 %v3225
      %v4040 = vpop.f32.mrb[0].mxu0
      %v4041 = vadd.f32 0.0, %v4040
      %v4042 = vpop.f32.mrb[0].mxu0
      %v4043 = vpop.f32.mrb[0].mxu0
      %v4044 = vadd.f32 0.0, %v4043
      %v4045 = vpop.f32.mrb[0].mxu0
      %4046 = vmatprep.mubr.bf16.mxu0 0
      %4047 = vmatmul.mubr.bf16.gmra.mrb[0].mxu0 %v3228
      %v4048 = vpop.f32.mrb[0].mxu0
      %v4049 = vadd.f32 0.0, %v4048
      %v4050 = vpop.f32.mrb[0].mxu0
      %v4051 = vpop.f32.mrb[0].mxu0
      %v4052 = vadd.f32 0.0, %v4051
      %v4053 = vpop.f32.mrb[0].mxu0
      %4054 = vmatprep.mubr.bf16.mxu0 0
      %4055 = vmatmul.mubr.bf16.gmra.mrb[0].mxu0 %v3231
      %v4056 = vpop.f32.mrb[0].mxu0
      %v4057 = vadd.f32 0.0, %v4056
      %v4058 = vpop.f32.mrb[0].mxu0
      %v4059 = vpop.f32.mrb[0].mxu0
      %v4060 = vadd.f32 0.0, %v4059
      %v4061 = vpop.f32.mrb[0].mxu0
      %4062 = vmatprep.mubr.bf16.mxu0 0
      %4063 = vmatmul.mubr.bf16.gmra.mrb[0].mxu0 %v3571
      %v4064 = vpop.f32.mrb[0].mxu0
      %v4065 = vadd.f32 0.0, %v4064
      %v4066 = vpop.f32.mrb[0].mxu0
      %v4067 = vpop.f32.mrb[0].mxu0
      %v4068 = vadd.f32 0.0, %v4067
      %v4069 = vpop.f32.mrb[0].mxu0
      %4070 = vmatprep.mubr.bf16.mxu0 0
      %4071 = vmatmul.mubr.bf16.gmra.mrb[0].mxu0 %v3977
      %v4072 = vpop.f32.mrb[0].mxu0
      %v4073 = vadd.f32 0.0, %v4072
      %v4074 = vpop.f32.mrb[0].mxu0
      %v4075 = vpop.f32.mrb[0].mxu0
      %v4076 = vadd.f32 0.0, %v4075
      %v4077 = vpop.f32.mrb[0].mxu0
      %4078 = vdwg.mxu0
      %v4079 = vadd.f32 %v3953, %v4017
      %v4080 = vadd.f32 %v3954, %v4020
      %v4081 = vadd.f32 %v3955, %v4025
      %v4082 = vadd.f32 %v3956, %v4028
      %v4083 = vadd.f32 %v3957, %v4033
      %v4084 = vadd.f32 %v3958, %v4036
      %v4085 = vadd.f32 %v3959, %v4041
      %v4086 = vadd.f32 %v3960, %v4044
      %v4087 = vadd.f32 %v3961, %v4049
      %v4088 = vadd.f32 %v3962, %v4052
      %v4089 = vadd.f32 %v3963, %v4057
      %v4090 = vadd.f32 %v3964, %v4060
      %v4091 = vadd.f32 %v3965, %v4065
      %v4092 = vadd.f32 %v3966, %v4068
      %v4093 = vadd.f32 %v3967, %v4073
      %v4094 = vadd.f32 %v3968, %v4076
      %v4096 = vshrl.u32 %v2821, 16
      %v4098 = vrot.slane %v4096, 4
      %v4099 = vshll.u32 %v2821, 16
      %v4101 = vrot.slane %v4099, 5
      %v4102 = vor.u32 %v4098, %v4101
      %v4103 = vrot.slane %v4102, 4
      %v4105 = vshll.u32 %v2822, 16
      %v4107 = vrot.slane %v4105, 5
      %v4108 = vsel %vm429, %v4103, %v4107
      %v4109 = vshrl.u32 %v2822, 16
      %v4111 = vrot.slane %v4109, 4
      %v4112 = vor.u32 %v4111, %v4107
      %v4113 = vrot.slane %v4112, 4
      %v4115 = vshll.u32 %v2823, 16
      %v4117 = vrot.slane %v4115, 5
      %v4118 = vsel %vm429, %v4113, %v4117
      %s4119 = scalar_lea.vmem %s4, 28
      %v4120 = vld [vmem:[%s4119] sm:$0xf]
      %v4121 = vunpack.c.l.b16 %v4108
      %v4122 = vunpack.c.l.b16 %v4118
      %v4123 = vpack.c.b16 %v4122, %v4121
      %v4125 = vsel %vm3043, %v4123, 0
      %v4128 = vsel %vm3068, %v4120, 0
      %4130 = vmatprep.subr.bf16.mxu0 0
      %4131 = vmatpush1.bf16.msra.mxu0 %v4128
      %4132 = vmatprep.subr.bf16.mxu0 0
      %4133 = vmatpush1.bf16.msra.mxu0 0
      %4134 = vmatprep.subr.bf16.mxu0 0
      %4135 = vmatpush1.bf16.msra.mxu0 0
      %4136 = vmatprep.subr.bf16.mxu0 0
      %4137 = vmatpush1.bf16.msra.mxu0 0
      %4138 = vmatprep.subr.bf16.mxu0 0
      %4139 = vmatpush1.bf16.msra.mxu0 0
      %4140 = vmatprep.subr.bf16.mxu0 0
      %4141 = vmatpush1.bf16.msra.mxu0 0
      %4142 = vmatprep.subr.bf16.mxu0 0
      %4143 = vmatpush1.bf16.msra.mxu0 0
      %4144 = vmatprep.subr.bf16.mxu0 0
      %4145 = vmatpush1.bf16.msra.mxu0 0
      %4146 = vmatprep.subr.bf16.mxu0 0
      %4147 = vmatpush1.bf16.msra.mxu0 0
      %4148 = vmatprep.subr.bf16.mxu0 0
      %4149 = vmatpush1.bf16.msra.mxu0 0
      %4150 = vmatprep.subr.bf16.mxu0 0
      %4151 = vmatpush1.bf16.msra.mxu0 0
      %4152 = vmatprep.subr.bf16.mxu0 0
      %4153 = vmatpush1.bf16.msra.mxu0 0
      %4154 = vmatprep.subr.bf16.mxu0 0
      %4155 = vmatpush1.bf16.msra.mxu0 0
      %4156 = vmatprep.subr.bf16.mxu0 0
      %4157 = vmatpush1.bf16.msra.mxu0 0
      %4158 = vmatprep.subr.bf16.mxu0 0
      %4159 = vmatpush1.bf16.msra.mxu0 0
      %4160 = vmatprep.subr.bf16.mxu0 0
      %4161 = vmatpush1.bf16.msra.mxu0 0
      %4162 = vmatprep.mubr.bf16.mxu0 0
      %4163 = vmatmul.mubr.bf16.gmra.mrb[0].mxu0 %v3051
      %v4164 = vpop.f32.mrb[0].mxu0
      %v4165 = vadd.f32 0.0, %v4164
      %v4166 = vpop.f32.mrb[0].mxu0
      %v4167 = vpop.f32.mrb[0].mxu0
      %v4168 = vadd.f32 0.0, %v4167
      %v4169 = vpop.f32.mrb[0].mxu0
      %4170 = vmatprep.mubr.bf16.mxu0 0
      %4171 = vmatmul.mubr.bf16.gmra.mrb[0].mxu0 %v3054
      %v4172 = vpop.f32.mrb[0].mxu0
      %v4173 = vadd.f32 0.0, %v4172
      %v4174 = vpop.f32.mrb[0].mxu0
      %v4175 = vpop.f32.mrb[0].mxu0
      %v4176 = vadd.f32 0.0, %v4175
      %v4177 = vpop.f32.mrb[0].mxu0
      %4178 = vmatprep.mubr.bf16.mxu0 0
      %4179 = vmatmul.mubr.bf16.gmra.mrb[0].mxu0 %v3057
      %v4180 = vpop.f32.mrb[0].mxu0
      %v4181 = vadd.f32 0.0, %v4180
      %v4182 = vpop.f32.mrb[0].mxu0
      %v4183 = vpop.f32.mrb[0].mxu0
      %v4184 = vadd.f32 0.0, %v4183
      %v4185 = vpop.f32.mrb[0].mxu0
      %4186 = vmatprep.mubr.bf16.mxu0 0
      %4187 = vmatmul.mubr.bf16.gmra.mrb[0].mxu0 %v3060
      %v4188 = vpop.f32.mrb[0].mxu0
      %v4189 = vadd.f32 0.0, %v4188
      %v4190 = vpop.f32.mrb[0].mxu0
      %v4191 = vpop.f32.mrb[0].mxu0
      %v4192 = vadd.f32 0.0, %v4191
      %v4193 = vpop.f32.mrb[0].mxu0
      %4194 = vmatprep.mubr.bf16.mxu0 0
      %4195 = vmatmul.mubr.bf16.gmra.mrb[0].mxu0 %v3063
      %v4196 = vpop.f32.mrb[0].mxu0
      %v4197 = vadd.f32 0.0, %v4196
      %v4198 = vpop.f32.mrb[0].mxu0
      %v4199 = vpop.f32.mrb[0].mxu0
      %v4200 = vadd.f32 0.0, %v4199
      %v4201 = vpop.f32.mrb[0].mxu0
      %4202 = vmatprep.mubr.bf16.mxu0 0
      %4203 = vmatmul.mubr.bf16.gmra.mrb[0].mxu0 %v3066
      %v4204 = vpop.f32.mrb[0].mxu0
      %v4205 = vadd.f32 0.0, %v4204
      %v4206 = vpop.f32.mrb[0].mxu0
      %v4207 = vpop.f32.mrb[0].mxu0
      %v4208 = vadd.f32 0.0, %v4207
      %v4209 = vpop.f32.mrb[0].mxu0
      %4210 = vmatprep.mubr.bf16.mxu0 0
      %4211 = vmatmul.mubr.bf16.gmra.mrb[0].mxu0 %v3719
      %v4212 = vpop.f32.mrb[0].mxu0
      %v4213 = vadd.f32 0.0, %v4212
      %v4214 = vpop.f32.mrb[0].mxu0
      %v4215 = vpop.f32.mrb[0].mxu0
      %v4216 = vadd.f32 0.0, %v4215
      %v4217 = vpop.f32.mrb[0].mxu0
      %4218 = vmatprep.mubr.bf16.mxu0 0
      %4219 = vmatmul.mubr.bf16.gmra.mrb[0].mxu0 %v4125
      %v4220 = vpop.f32.mrb[0].mxu0
      %v4221 = vadd.f32 0.0, %v4220
      %v4222 = vpop.f32.mrb[0].mxu0
      %v4223 = vpop.f32.mrb[0].mxu0
      %v4224 = vadd.f32 0.0, %v4223
      %v4225 = vpop.f32.mrb[0].mxu0
      %4226 = vdwg.mxu0
      %v4227 = vadd.f32 %v4079, %v4165
      %v4228 = vadd.f32 %v4080, %v4168
      %v4229 = vadd.f32 %v4081, %v4173
      %v4230 = vadd.f32 %v4082, %v4176
      %v4231 = vadd.f32 %v4083, %v4181
      %v4232 = vadd.f32 %v4084, %v4184
      %v4233 = vadd.f32 %v4085, %v4189
      %v4234 = vadd.f32 %v4086, %v4192
      %v4235 = vadd.f32 %v4087, %v4197
      %v4236 = vadd.f32 %v4088, %v4200
      %v4237 = vadd.f32 %v4089, %v4205
      %v4238 = vadd.f32 %v4090, %v4208
      %v4239 = vadd.f32 %v4091, %v4213
      %v4240 = vadd.f32 %v4092, %v4216
      %v4241 = vadd.f32 %v4093, %v4221
      %v4242 = vadd.f32 %v4094, %v4224
      %v4244 = vrot.slane %v2821, 5
      %v4245 = vrot.slane %v4244, 4
      %v4246 = vrot.slane %v2822, 5
      %v4247 = vsel %vm1058, %v4245, %v4246
      %v4248 = vrot.slane %v4246, 4
      %v4249 = vrot.slane %v2823, 5
      %v4250 = vsel %vm1058, %v4248, %v4249
      %s4251 = scalar_lea.vmem %s4, 32
      %v4252 = vld [vmem:[%s4251] sm:$0xf]
      %v4253 = vunpack.c.l.b16 %v4247
      %v4254 = vunpack.c.l.b16 %v4250
      %v4255 = vpack.c.b16 %v4254, %v4253
      %v4257 = vsel %vm3043, %v4255, 0
      %v4260 = vsel %vm3068, %v4252, 0
      %4262 = vmatprep.subr.bf16.mxu0 0
      %4263 = vmatpush1.bf16.msra.mxu0 %v4260
      %4264 = vmatprep.subr.bf16.mxu0 0
      %4265 = vmatpush1.bf16.msra.mxu0 0
      %4266 = vmatprep.subr.bf16.mxu0 0
      %4267 = vmatpush1.bf16.msra.mxu0 0
      %4268 = vmatprep.subr.bf16.mxu0 0
      %4269 = vmatpush1.bf16.msra.mxu0 0
      %4270 = vmatprep.subr.bf16.mxu0 0
      %4271 = vmatpush1.bf16.msra.mxu0 0
      %4272 = vmatprep.subr.bf16.mxu0 0
      %4273 = vmatpush1.bf16.msra.mxu0 0
      %4274 = vmatprep.subr.bf16.mxu0 0
      %4275 = vmatpush1.bf16.msra.mxu0 0
      %4276 = vmatprep.subr.bf16.mxu0 0
      %4277 = vmatpush1.bf16.msra.mxu0 0
      %4278 = vmatprep.subr.bf16.mxu0 0
      %4279 = vmatpush1.bf16.msra.mxu0 0
      %4280 = vmatprep.subr.bf16.mxu0 0
      %4281 = vmatpush1.bf16.msra.mxu0 0
      %4282 = vmatprep.subr.bf16.mxu0 0
      %4283 = vmatpush1.bf16.msra.mxu0 0
      %4284 = vmatprep.subr.bf16.mxu0 0
      %4285 = vmatpush1.bf16.msra.mxu0 0
      %4286 = vmatprep.subr.bf16.mxu0 0
      %4287 = vmatpush1.bf16.msra.mxu0 0
      %4288 = vmatprep.subr.bf16.mxu0 0
      %4289 = vmatpush1.bf16.msra.mxu0 0
      %4290 = vmatprep.subr.bf16.mxu0 0
      %4291 = vmatpush1.bf16.msra.mxu0 0
      %4292 = vmatprep.subr.bf16.mxu0 0
      %4293 = vmatpush1.bf16.msra.mxu0 0
      %4294 = vmatprep.mubr.bf16.mxu0 0
      %4295 = vmatmul.mubr.bf16.gmra.mrb[0].mxu0 %v3430
      %v4296 = vpop.f32.mrb[0].mxu0
      %v4297 = vadd.f32 0.0, %v4296
      %v4298 = vpop.f32.mrb[0].mxu0
      %v4299 = vpop.f32.mrb[0].mxu0
      %v4300 = vadd.f32 0.0, %v4299
      %v4301 = vpop.f32.mrb[0].mxu0
      %4302 = vmatprep.mubr.bf16.mxu0 0
      %4303 = vmatmul.mubr.bf16.gmra.mrb[0].mxu0 %v3433
      %v4304 = vpop.f32.mrb[0].mxu0
      %v4305 = vadd.f32 0.0, %v4304
      %v4306 = vpop.f32.mrb[0].mxu0
      %v4307 = vpop.f32.mrb[0].mxu0
      %v4308 = vadd.f32 0.0, %v4307
      %v4309 = vpop.f32.mrb[0].mxu0
      %4310 = vmatprep.mubr.bf16.mxu0 0
      %4311 = vmatmul.mubr.bf16.gmra.mrb[0].mxu0 %v3436
      %v4312 = vpop.f32.mrb[0].mxu0
      %v4313 = vadd.f32 0.0, %v4312
      %v4314 = vpop.f32.mrb[0].mxu0
      %v4315 = vpop.f32.mrb[0].mxu0
      %v4316 = vadd.f32 0.0, %v4315
      %v4317 = vpop.f32.mrb[0].mxu0
      %4318 = vmatprep.mubr.bf16.mxu0 0
      %4319 = vmatmul.mubr.bf16.gmra.mrb[0].mxu0 %v3439
      %v4320 = vpop.f32.mrb[0].mxu0
      %v4321 = vadd.f32 0.0, %v4320
      %v4322 = vpop.f32.mrb[0].mxu0
      %v4323 = vpop.f32.mrb[0].mxu0
      %v4324 = vadd.f32 0.0, %v4323
      %v4325 = vpop.f32.mrb[0].mxu0
      %4326 = vmatprep.mubr.bf16.mxu0 0
      %4327 = vmatmul.mubr.bf16.gmra.mrb[0].mxu0 %v3442
      %v4328 = vpop.f32.mrb[0].mxu0
      %v4329 = vadd.f32 0.0, %v4328
      %v4330 = vpop.f32.mrb[0].mxu0
      %v4331 = vpop.f32.mrb[0].mxu0
      %v4332 = vadd.f32 0.0, %v4331
      %v4333 = vpop.f32.mrb[0].mxu0
      %4334 = vmatprep.mubr.bf16.mxu0 0
      %4335 = vmatmul.mubr.bf16.gmra.mrb[0].mxu0 %v3445
      %v4336 = vpop.f32.mrb[0].mxu0
      %v4337 = vadd.f32 0.0, %v4336
      %v4338 = vpop.f32.mrb[0].mxu0
      %v4339 = vpop.f32.mrb[0].mxu0
      %v4340 = vadd.f32 0.0, %v4339
      %v4341 = vpop.f32.mrb[0].mxu0
      %4342 = vmatprep.mubr.bf16.mxu0 0
      %4343 = vmatmul.mubr.bf16.gmra.mrb[0].mxu0 %v3851
      %v4344 = vpop.f32.mrb[0].mxu0
      %v4345 = vadd.f32 0.0, %v4344
      %v4346 = vpop.f32.mrb[0].mxu0
      %v4347 = vpop.f32.mrb[0].mxu0
      %v4348 = vadd.f32 0.0, %v4347
      %v4349 = vpop.f32.mrb[0].mxu0
      %4350 = vmatprep.mubr.bf16.mxu0 0
      %4351 = vmatmul.mubr.bf16.gmra.mrb[0].mxu0 %v4257
      %v4352 = vpop.f32.mrb[0].mxu0
      %v4353 = vadd.f32 0.0, %v4352
      %v4354 = vpop.f32.mrb[0].mxu0
      %v4355 = vpop.f32.mrb[0].mxu0
      %v4356 = vadd.f32 0.0, %v4355
      %v4357 = vpop.f32.mrb[0].mxu0
      %4358 = vdwg.mxu0
      %v4359 = vadd.f32 %v4227, %v4297
      %v4360 = vadd.f32 %v4228, %v4300
      %v4361 = vadd.f32 %v4229, %v4305
      %v4362 = vadd.f32 %v4230, %v4308
      %v4363 = vadd.f32 %v4231, %v4313
      %v4364 = vadd.f32 %v4232, %v4316
      %v4365 = vadd.f32 %v4233, %v4321
      %v4366 = vadd.f32 %v4234, %v4324
      %v4367 = vadd.f32 %v4235, %v4329
      %v4368 = vadd.f32 %v4236, %v4332
      %v4369 = vadd.f32 %v4237, %v4337
      %v4370 = vadd.f32 %v4238, %v4340
      %v4371 = vadd.f32 %v4239, %v4345
      %v4372 = vadd.f32 %v4240, %v4348
      %v4373 = vadd.f32 %v4241, %v4353
      %v4374 = vadd.f32 %v4242, %v4356
      %v4375 = vld [vmem:[%s5] sm:$0x1]
      %v4377 = vlaneseq
      %v4378 = vshrl.u32 %v4377, 7
      %v4379 = vsub.s32 0, %v4378
      %v4380 = vrot.slane %v4375, %v4379
      %v4382 = vmul.f32 %v4359, %v4380
      %v4383 = vmul.f32 %v4360, %v4380
      %v4384 = vmul.f32 %v4361, %v4380
      %v4385 = vmul.f32 %v4362, %v4380
      %v4386 = vmul.f32 %v4363, %v4380
      %v4387 = vmul.f32 %v4364, %v4380
      %v4388 = vmul.f32 %v4365, %v4380
      %v4389 = vmul.f32 %v4366, %v4380
      %v4390 = vmul.f32 %v4367, %v4380
      %v4391 = vmul.f32 %v4368, %v4380
      %v4392 = vmul.f32 %v4369, %v4380
      %v4393 = vmul.f32 %v4370, %v4380
      %v4394 = vmul.f32 %v4371, %v4380
      %v4395 = vmul.f32 %v4372, %v4380
      %v4396 = vmul.f32 %v4373, %v4380
      %v4397 = vmul.f32 %v4374, %v4380
      %v4398 = vld [vmem:[%s6] sm:$0x1]
      %v4400 = vlaneseq
      %v4401 = vshrl.u32 %v4400, 7
      %v4402 = vsub.s32 0, %v4401
      %v4403 = vrot.slane %v4398, %v4402
      %v4405 = vadd.f32 %v4382, %v4403
      %v4406 = vadd.f32 %v4383, %v4403
      %v4407 = vadd.f32 %v4384, %v4403
      %v4408 = vadd.f32 %v4385, %v4403
      %v4409 = vadd.f32 %v4386, %v4403
      %v4410 = vadd.f32 %v4387, %v4403
      %v4411 = vadd.f32 %v4388, %v4403
      %v4412 = vadd.f32 %v4389, %v4403
      %v4413 = vadd.f32 %v4390, %v4403
      %v4414 = vadd.f32 %v4391, %v4403
      %v4415 = vadd.f32 %v4392, %v4403
      %v4416 = vadd.f32 %v4393, %v4403
      %v4417 = vadd.f32 %v4394, %v4403
      %v4418 = vadd.f32 %v4395, %v4403
      %v4419 = vadd.f32 %v4396, %v4403
      %v4420 = vadd.f32 %v4397, %v4403
      %v4421 = vld [vmem:[%s7] sm:$0x3]
      %v4423 = vsel %vm733, %v4421, 0
      %4425 = vmatprep.subr.bf16.mxu0 0
      %4426 = vmatpush1.bf16.msra.mxu0 %v4423
      %4427 = vmatprep.subr.bf16.mxu0 0
      %4428 = vmatpush1.bf16.msra.mxu0 0
      %4429 = vmatprep.subr.bf16.mxu0 0
      %4430 = vmatpush1.bf16.msra.mxu0 0
      %4431 = vmatprep.subr.bf16.mxu0 0
      %4432 = vmatpush1.bf16.msra.mxu0 0
      %4433 = vmatprep.subr.bf16.mxu0 0
      %4434 = vmatpush1.bf16.msra.mxu0 0
      %4435 = vmatprep.subr.bf16.mxu0 0
      %4436 = vmatpush1.bf16.msra.mxu0 0
      %4437 = vmatprep.subr.bf16.mxu0 0
      %4438 = vmatpush1.bf16.msra.mxu0 0
      %4439 = vmatprep.subr.bf16.mxu0 0
      %4440 = vmatpush1.bf16.msra.mxu0 0
      %4441 = vmatprep.subr.bf16.mxu0 0
      %4442 = vmatpush1.bf16.msra.mxu0 0
      %4443 = vmatprep.subr.bf16.mxu0 0
      %4444 = vmatpush1.bf16.msra.mxu0 0
      %4445 = vmatprep.subr.bf16.mxu0 0
      %4446 = vmatpush1.bf16.msra.mxu0 0
      %4447 = vmatprep.subr.bf16.mxu0 0
      %4448 = vmatpush1.bf16.msra.mxu0 0
      %4449 = vmatprep.subr.bf16.mxu0 0
      %4450 = vmatpush1.bf16.msra.mxu0 0
      %4451 = vmatprep.subr.bf16.mxu0 0
      %4452 = vmatpush1.bf16.msra.mxu0 0
      %4453 = vmatprep.subr.bf16.mxu0 0
      %4454 = vmatpush1.bf16.msra.mxu0 0
      %4455 = vmatprep.subr.bf16.mxu0 0
      %4456 = vmatpush1.bf16.msra.mxu0 0
      %4457 = vmatprep.mubr.bf16.mxu0 0
      %4458 = vmatmul.mubr.bf16.gmra.mrb[0].mxu0 %v710
      %v4459 = vpop.f32.mrb[0].mxu0
      %v4460 = vadd.f32 0.0, %v4459
      %v4461 = vpop.f32.mrb[0].mxu0
      %v4462 = vpop.f32.mrb[0].mxu0
      %v4463 = vadd.f32 0.0, %v4462
      %v4464 = vpop.f32.mrb[0].mxu0
      %4465 = vmatprep.mubr.bf16.mxu0 0
      %4466 = vmatmul.mubr.bf16.gmra.mrb[0].mxu0 %v713
      %v4467 = vpop.f32.mrb[0].mxu0
      %v4468 = vadd.f32 0.0, %v4467
      %v4469 = vpop.f32.mrb[0].mxu0
      %v4470 = vpop.f32.mrb[0].mxu0
      %v4471 = vadd.f32 0.0, %v4470
      %v4472 = vpop.f32.mrb[0].mxu0
      %4473 = vmatprep.mubr.bf16.mxu0 0
      %4474 = vmatmul.mubr.bf16.gmra.mrb[0].mxu0 %v716
      %v4475 = vpop.f32.mrb[0].mxu0
      %v4476 = vadd.f32 0.0, %v4475
      %v4477 = vpop.f32.mrb[0].mxu0
      %v4478 = vpop.f32.mrb[0].mxu0
      %v4479 = vadd.f32 0.0, %v4478
      %v4480 = vpop.f32.mrb[0].mxu0
      %4481 = vmatprep.mubr.bf16.mxu0 0
      %4482 = vmatmul.mubr.bf16.gmra.mrb[0].mxu0 %v719
      %v4483 = vpop.f32.mrb[0].mxu0
      %v4484 = vadd.f32 0.0, %v4483
      %v4485 = vpop.f32.mrb[0].mxu0
      %v4486 = vpop.f32.mrb[0].mxu0
      %v4487 = vadd.f32 0.0, %v4486
      %v4488 = vpop.f32.mrb[0].mxu0
      %4489 = vmatprep.mubr.bf16.mxu0 0
      %4490 = vmatmul.mubr.bf16.gmra.mrb[0].mxu0 %v722
      %v4491 = vpop.f32.mrb[0].mxu0
      %v4492 = vadd.f32 0.0, %v4491
      %v4493 = vpop.f32.mrb[0].mxu0
      %v4494 = vpop.f32.mrb[0].mxu0
      %v4495 = vadd.f32 0.0, %v4494
      %v4496 = vpop.f32.mrb[0].mxu0
      %4497 = vmatprep.mubr.bf16.mxu0 0
      %4498 = vmatmul.mubr.bf16.gmra.mrb[0].mxu0 %v725
      %v4499 = vpop.f32.mrb[0].mxu0
      %v4500 = vadd.f32 0.0, %v4499
      %v4501 = vpop.f32.mrb[0].mxu0
      %v4502 = vpop.f32.mrb[0].mxu0
      %v4503 = vadd.f32 0.0, %v4502
      %v4504 = vpop.f32.mrb[0].mxu0
      %4505 = vmatprep.mubr.bf16.mxu0 0
      %4506 = vmatmul.mubr.bf16.gmra.mrb[0].mxu0 %v728
      %v4507 = vpop.f32.mrb[0].mxu0
      %v4508 = vadd.f32 0.0, %v4507
      %v4509 = vpop.f32.mrb[0].mxu0
      %v4510 = vpop.f32.mrb[0].mxu0
      %v4511 = vadd.f32 0.0, %v4510
      %v4512 = vpop.f32.mrb[0].mxu0
      %4513 = vmatprep.mubr.bf16.mxu0 0
      %4514 = vmatmul.mubr.bf16.gmra.mrb[0].mxu0 %v731
      %v4515 = vpop.f32.mrb[0].mxu0
      %v4516 = vadd.f32 0.0, %v4515
      %v4517 = vpop.f32.mrb[0].mxu0
      %v4518 = vpop.f32.mrb[0].mxu0
      %v4519 = vadd.f32 0.0, %v4518
      %v4520 = vpop.f32.mrb[0].mxu0
      %4521 = vdwg.mxu0
      %v4522 = vld [vmem:[%s8] sm:$0x1]
      %v4524 = vlaneseq
      %v4525 = vshrl.u32 %v4524, 7
      %v4526 = vsub.s32 0, %v4525
      %v4527 = vrot.slane %v4522, %v4526
      %v4529 = vmul.f32 %v4460, %v4527
      %v4530 = vmul.f32 %v4463, %v4527
      %v4531 = vmul.f32 %v4468, %v4527
      %v4532 = vmul.f32 %v4471, %v4527
      %v4533 = vmul.f32 %v4476, %v4527
      %v4534 = vmul.f32 %v4479, %v4527
      %v4535 = vmul.f32 %v4484, %v4527
      %v4536 = vmul.f32 %v4487, %v4527
      %v4537 = vmul.f32 %v4492, %v4527
      %v4538 = vmul.f32 %v4495, %v4527
      %v4539 = vmul.f32 %v4500, %v4527
      %v4540 = vmul.f32 %v4503, %v4527
      %v4541 = vmul.f32 %v4508, %v4527
      %v4542 = vmul.f32 %v4511, %v4527
      %v4543 = vmul.f32 %v4516, %v4527
      %v4544 = vmul.f32 %v4519, %v4527
      %v4545 = vld [vmem:[%s9] sm:$0x1]
      %v4547 = vlaneseq
      %v4548 = vshrl.u32 %v4547, 7
      %v4549 = vsub.s32 0, %v4548
      %v4550 = vrot.slane %v4545, %v4549
      %v4552 = vadd.f32 %v4529, %v4550
      %v4553 = vadd.f32 %v4530, %v4550
      %v4554 = vadd.f32 %v4531, %v4550
      %v4555 = vadd.f32 %v4532, %v4550
      %v4556 = vadd.f32 %v4533, %v4550
      %v4557 = vadd.f32 %v4534, %v4550
      %v4558 = vadd.f32 %v4535, %v4550
      %v4559 = vadd.f32 %v4536, %v4550
      %v4560 = vadd.f32 %v4537, %v4550
      %v4561 = vadd.f32 %v4538, %v4550
      %v4562 = vadd.f32 %v4539, %v4550
      %v4563 = vadd.f32 %v4540, %v4550
      %v4564 = vadd.f32 %v4541, %v4550
      %v4565 = vadd.f32 %v4542, %v4550
      %v4566 = vadd.f32 %v4543, %v4550
      %v4567 = vadd.f32 %v4544, %v4550
      %v4568 = vadd.f32 %v4405, %v4552
      %v4569 = vadd.f32 %v4406, %v4553
      %v4570 = vadd.f32 %v4407, %v4554
      %v4571 = vadd.f32 %v4408, %v4555
      %v4572 = vadd.f32 %v4409, %v4556
      %v4573 = vadd.f32 %v4410, %v4557
      %v4574 = vadd.f32 %v4411, %v4558
      %v4575 = vadd.f32 %v4412, %v4559
      %v4576 = vadd.f32 %v4413, %v4560
      %v4577 = vadd.f32 %v4414, %v4561
      %v4578 = vadd.f32 %v4415, %v4562
      %v4579 = vadd.f32 %v4416, %v4563
      %v4580 = vadd.f32 %v4417, %v4564
      %v4581 = vadd.f32 %v4418, %v4565
      %v4582 = vadd.f32 %v4419, %v4566
      %v4583 = vadd.f32 %v4420, %v4567
      %v4584 = vmax.f32 %v4568, 0.0
      %v4585 = vmax.f32 %v4569, 0.0
      %v4586 = vmax.f32 %v4570, 0.0
      %v4587 = vmax.f32 %v4571, 0.0
      %v4588 = vmax.f32 %v4572, 0.0
      %v4589 = vmax.f32 %v4573, 0.0
      %v4590 = vmax.f32 %v4574, 0.0
      %v4591 = vmax.f32 %v4575, 0.0
      %v4592 = vmax.f32 %v4576, 0.0
      %v4593 = vmax.f32 %v4577, 0.0
      %v4594 = vmax.f32 %v4578, 0.0
      %v4595 = vmax.f32 %v4579, 0.0
      %v4596 = vmax.f32 %v4580, 0.0
      %v4597 = vmax.f32 %v4581, 0.0
      %v4598 = vmax.f32 %v4582, 0.0
      %v4599 = vmax.f32 %v4583, 0.0
      %4600 = vst.msk [vmem:[%s383] sm:$0xff] %vm3043, %v4584
      %4601 = vst.msk [vmem:[%s383 + $0x8] sm:$0xff] %vm3043, %v4585
      %4602 = vst.msk [vmem:[%s383 + $0x10] sm:$0xff] %vm3043, %v4586
      %4603 = vst.msk [vmem:[%s383 + $0x18] sm:$0xff] %vm3043, %v4587
      %4604 = vst.msk [vmem:[%s383 + $0x20] sm:$0xff] %vm3043, %v4588
      %4605 = vst.msk [vmem:[%s383 + $0x28] sm:$0xff] %vm3043, %v4589
      %4606 = vst.msk [vmem:[%s383 + $0x30] sm:$0xff] %vm3043, %v4590
      %4607 = vst.msk [vmem:[%s383 + $0x38] sm:$0xff] %vm3043, %v4591
      %4608 = vst.msk [vmem:[%s383 + $0x40] sm:$0xff] %vm3043, %v4592
      %4609 = vst.msk [vmem:[%s383 + $0x48] sm:$0xff] %vm3043, %v4593
      %4610 = vst.msk [vmem:[%s383 + $0x50] sm:$0xff] %vm3043, %v4594
      %4611 = vst.msk [vmem:[%s383 + $0x58] sm:$0xff] %vm3043, %v4595
      %4612 = vst.msk [vmem:[%s383 + $0x60] sm:$0xff] %vm3043, %v4596
      %4613 = vst.msk [vmem:[%s383 + $0x68] sm:$0xff] %vm3043, %v4597
      %4614 = vst.msk [vmem:[%s383 + $0x70] sm:$0xff] %vm3043, %v4598
      %4615 = vst.msk [vmem:[%s383 + $0x78] sm:$0xff] %vm3043, %v4599
      %s4616 = smul.u32 8, %s26
      %p4617 = scmp.lt.s32.totalorder %s25, 1
      %s4618 = scalar_select %p4617, %s25, 1
      %p4619 = scmp.lt.s32.totalorder %s4616, 15
      %s4620 = scalar_select %p4619, %s4616, 15
      %s4621 = smul.addr %s4620, 2
      %s4622 = smul.addr %s4618, 32
      %s4623 = sadd.s32 %s4621, %s4622
      %s4624 = smul.addr %s4623, 8
      %s4625 = scalar_lea.vmem %s10, %s4624
      // Predicated region
      $region61: #{tpu_custom_call.1} parent=59 // pred_check
        %p4626 = pneg %p268
      $region62: #{tpu_custom_call.1} parent=59 // pred_check_branch
        %4628 = sbr.rel (%p4626) target = $region64
      $region63: #{tpu_custom_call.1} parent=59 // pred_region
        %s4629 = smul.u32 8, %s26
      $region64: #{tpu_custom_call.1} parent=59 // pred_fallthru
        _
    $region60: #{tpu_custom_call.1} parent=5 // pred_fallthru
      _
    %p4630 = scmp.le.s32.totalorder 2, %s16
    // Predicated region
    $region65: #{tpu_custom_call.1} parent=5 // pred_check
      %p4631 = pneg %p4630
    $region66: #{tpu_custom_call.1} parent=5 // pred_check_branch
      %4633 = sbr.rel (%p4631) target = $region68
    $region67: #{tpu_custom_call.1} parent=5 // pred_region
      %s4634 = ssub.s32 %s16, 2
      // Predicated region
      $region69: #{tpu_custom_call.1} parent=67 // pred_check
        %p4635 = pneg %p274
      $region70: #{tpu_custom_call.1} parent=67 // pred_check_branch
        %4637 = sbr.rel (%p4635) target = $region72
      $region71: #{tpu_custom_call.1} parent=67 // pred_region
        %s4638 = smul.u32 8, %s28
        %p4639 = scmp.lt.s32.totalorder %s27, 1
        %s4640 = scalar_select %p4639, %s27, 1
        %p4641 = scmp.lt.s32.totalorder %s4638, 15
        %s4642 = scalar_select %p4641, %s4638, 15
        %s4643 = smul.addr %s4642, 2
        %s4644 = smul.addr %s4640, 32
        %s4645 = sadd.s32 %s4643, %s4644
        %s4646 = smul.addr %s4645, 8
        %s4647 = scalar_lea.vmem %s10, %s4646
      $region72: #{tpu_custom_call.1} parent=67 // pred_fallthru
        _
    $region68: #{tpu_custom_call.1} parent=5 // pred_fallthru
      _
  $region6: #{tpu_custom_call.1} parent=0 // loop_footer
    %s20 = sadd.s32 1, %s16
  $region7: #{tpu_custom_call.1} parent=0 // loop_footer_branch
    %15 = sbr.rel target = $region3
  $region8: #{tpu_custom_call.1} parent=0 // loop_exit
    _

</llo_original>
